<compile_context>
chip_gen: v6e
topology: v6e:2x2x1
jax: 0.10.0
libtpu: 0.0.40
codegen_flags: <defaults>
</compile_context>

<pallas_src>
import math

import jax
import jax.numpy as jnp
from jax import lax
from jax.experimental import pallas as pl
from jax.experimental.pallas import tpu as pltpu

_VMEM_TILE_BUDGET = 24 * 1024 * 1024   # per-tile staging budget (safe on v7x 64 MiB)
_VMEM_LIMIT_BYTES = 48 * 1024 * 1024   # scoped VMEM limit (>16/32 MiB defaults, <64 MiB)


def _round_up(x, m):
    return ((x + m - 1) // m) * m


# ----------------------------------------------------------------------------
# Kernel 1: fused stacked-GRU layer kernel (input projection + recurrence,
#           all layers, inter-layer activation kept in VMEM)
# ----------------------------------------------------------------------------
def _gru_stack_kernel(x_ref, wih_ref, bih_ref, whh_ref, bhn_ref, y_ref,
                      act_ref, gx_ref):
    # x_ref   : (L, TB, Dp)   bf16 layer-0 input tile (time-major)
    # wih_ref : (NL, Dp, 3Dp) bf16 gate-concatenated W_ih^T per layer
    # bih_ref : (NL, 1, 3Dp)  f32  effective input bias (b_ih + folded b_hh[r,z])
    # whh_ref : (NL, Dp, 3Dp) bf16 gate-concatenated W_hh^T per layer
    # bhn_ref : (NL, 1, Dp)   f32  b_hn (must stay inside r*(gh_n + b_hn))
    # y_ref   : (L, TB, Dp)   bf16 final-layer output
    # act_ref : (L, TB, Dp)   bf16 VMEM scratch: inter-layer activation
    # gx_ref  : (L, TB, 3Dp)  f32  VMEM scratch: hoisted input projection
    #            (kept f32: cheap at chosen tiles, avoids extra rounding on the
    #             latency-critical gate adds)
    NL = wih_ref.shape[0]
    L, TB, Dp = y_ref.shape
    G3 = 3 * Dp

    for layer in range(NL):
        src = x_ref if layer == 0 else act_ref
        dst = y_ref if layer == NL - 1 else act_ref

        # --- hoisted input projection: ONE (L*TB, Dp) @ (Dp, 3Dp) MXU matmul ---
        x2d = src[...].reshape(L * TB, Dp)                       # bf16
        gx = jnp.dot(x2d, wih_ref[layer],
                     preferred_element_type=jnp.float32)         # (L*TB, 3Dp) f32
        gx = gx + bih_ref[layer]                                 # (1, 3Dp) broadcast
        gx_ref[...] = gx.reshape(L, TB, G3)

        # hoisted weight load & bias broadcast (off the latency-critical loop)
        w_hh = whh_ref[layer]                                    # (Dp, 3Dp) bf16
        b_n = jnp.broadcast_to(bhn_ref[layer], (TB, Dp))         # (TB, Dp) f32

        def step(t, h):
            # single gate-concatenated hidden matmul per serial timestep
            gh = jnp.dot(h.astype(jnp.bfloat16), w_hh,
                         preferred_element_type=jnp.float32)     # (TB, 3Dp)
            gx_t = gx_ref[t]                                     # (TB, 3Dp)
            # lane-aligned static gate slices (Dp is a multiple of 128)
            r = jax.nn.sigmoid(gx_t[:, 0:Dp] + gh[:, 0:Dp])
            z = jax.nn.sigmoid(gx_t[:, Dp:2 * Dp] + gh[:, Dp:2 * Dp])
            n = jnp.tanh(gx_t[:, 2 * Dp:G3] + r * (gh[:, 2 * Dp:G3] + b_n))
            h_new = (1.0 - z) * n + z * h
            dst[t] = h_new.astype(dst.dtype)
            return h_new

        unroll = True if L <= 32 else 8
        lax.fori_loop(0, L, step, jnp.zeros((TB, Dp), jnp.float32),
                      unroll=unroll)


# ----------------------------------------------------------------------------
# Kernel 2: scores = select @ emb^T, with emb pre-transposed once to (Dp, N)
#           (K-major RHS -> MXU-native, no per-tile XLU transpose)
# ----------------------------------------------------------------------------
def _scores_kernel(sel_ref, embt_ref, out_ref):
    out_ref[...] = jnp.dot(sel_ref[...], embt_ref[...],
                           preferred_element_type=jnp.float32
                           ).astype(out_ref.dtype)


# ----------------------------------------------------------------------------
# Tiling helpers
# ----------------------------------------------------------------------------
def _pad_batch(B):
    # multiple of 8 for small batches (tile == full dim), multiple of 16 otherwise
    # (bf16 sublane packing when the tile is smaller than the full batch dim)
    return 8 if B <= 8 else _round_up(B, 16)


def _pick_batch_tile(B_pad, L, Dp, NL):
    """Largest batch tile that (a) fits the per-tile VMEM budget, (b) keeps vreg
    pressure bounded (<=64 rows), (c) leaves >=2 grid tiles when B_pad > 16 so
    both v7x TensorCores get work."""
    def tile_bytes(tb):
        io = 2 * 2 * (L * tb * Dp * 2)               # double-buffered bf16 x + y
        scr = L * tb * Dp * 2 + L * tb * 3 * Dp * 4  # act (bf16) + gx (f32) scratch
        w = 2 * 2 * (NL * Dp * 3 * Dp * 2)           # double-buffered bf16 W_ih + W_hh
        return io + scr + w

    if B_pad <= 16:
        return B_pad                                  # single full-dim tile (legal)
    cap = min(64, B_pad // 2)                         # vreg pressure + >=2 tiles
    tb = 16
    for cand in range(16, cap + 1, 16):
        if B_pad % cand == 0 and tile_bytes(cand) <= _VMEM_TILE_BUDGET:
            tb = cand
    return tb


# ----------------------------------------------------------------------------
# Wrappers
# ----------------------------------------------------------------------------
def gru4rec_forward(params, input_ids):
    """input_ids: (B, L) int32 item ids. Returns gru_out (B, L, D) float32."""
    B, L = input_ids.shape
    D, Dp = params["dim"], params["dim_padded"]
    NL = params["wih_stack"].shape[0]

    B_pad = _pad_batch(B)
    ids = input_ids
    if B_pad != B:
        ids = jnp.pad(input_ids, ((0, B_pad - B), (0, 0)))   # pad rows use padding_idx=0

    # embedding lookup (XLA gather glue); single key => stack().mean(0) is identity;
    # emb_dropout in eval mode is identity.  bf16 MXU operands, time-major layout.
    x = params["embedding_padded"][ids.T].astype(jnp.bfloat16)     # (L, B_pad, Dp)

    tb = _pick_batch_tile(B_pad, L, Dp, NL)
    y = pl.pallas_call(
        _gru_stack_kernel,
        out_shape=jax.ShapeDtypeStruct((L, B_pad, Dp), jnp.bfloat16),
        grid_spec=pltpu.PrefetchScalarGridSpec(
            num_scalar_prefetch=0,
            grid=(B_pad // tb,),
            in_specs=[
                pl.BlockSpec((L, tb, Dp), lambda b: (0, b, 0)),        # x tile
                pl.BlockSpec((NL, Dp, 3 * Dp), lambda b: (0, 0, 0)),   # W_ih^T stack
                pl.BlockSpec((NL, 1, 3 * Dp), lambda b: (0, 0, 0)),    # eff. input bias
                pl.BlockSpec((NL, Dp, 3 * Dp), lambda b: (0, 0, 0)),   # W_hh^T stack
                pl.BlockSpec((NL, 1, Dp), lambda b: (0, 0, 0)),        # b_hn stack
            ],
            out_specs=pl.BlockSpec((L, tb, Dp), lambda b: (0, b, 0)),
            scratch_shapes=[
                pltpu.VMEM((L, tb, Dp), jnp.bfloat16),        # inter-layer activation
                pltpu.VMEM((L, tb, 3 * Dp), jnp.float32),     # hoisted gx
            ],
        ),
        compiler_params=pltpu.CompilerParams(
            dimension_semantics=("parallel",),
            vmem_limit_bytes=_VMEM_LIMIT_BYTES,
        ),
    )(x, params["wih_stack"], params["bih_stack"],
      params["whh_stack"], params["bhn_stack"])

    out = jnp.transpose(y, (1, 0, 2))[:B, :, :D]            # unpad batch + lanes
    return out.astype(jnp.float32)


def compute_scores_pallas(select, emb_t, tn_max=8192):
    """select: (B, Dp) bf16; emb_t: (Dp, N) bf16 -> (B, N) f32 = select @ emb^T."""
    Bp, Dp = select.shape
    N = emb_t.shape[1]

    # lane-dense item tiles; keep double-buffered emb + out tiles within budget;
    # prefer >=2 tiles when N is large enough (v7x dual TensorCore)
    per_col_bytes = 2 * (Dp * 2) + 2 * (Bp * 4)
    cap = max(128, (_VMEM_TILE_BUDGET // max(per_col_bytes, 1)) // 128 * 128)
    tn_cap = min(tn_max, cap)
    if N <= 256:
        tn = N
    elif N <= tn_cap:
        tn = min(tn_cap, _round_up(pl.cdiv(N, 2), 128))
    else:
        tn = tn_cap

    return pl.pallas_call(
        _scores_kernel,
        out_shape=jax.ShapeDtypeStruct((Bp, N), jnp.float32),
        grid_spec=pltpu.PrefetchScalarGridSpec(
            num_scalar_prefetch=0,
            grid=(pl.cdiv(N, tn),),
            in_specs=[
                pl.BlockSpec((Bp, Dp), lambda n: (0, 0)),    # select resident
                pl.BlockSpec((Dp, tn), lambda n: (0, n)),    # item-embedding tile
            ],
            out_specs=pl.BlockSpec((Bp, tn), lambda n: (0, n)),
        ),
        compiler_params=pltpu.CompilerParams(
            dimension_semantics=("parallel",),
            vmem_limit_bytes=_VMEM_LIMIT_BYTES,
        ),
    )(select, emb_t)


def gru4rec_compute_scores(params, gru_out):
    D, Dp = params["dim"], params["dim_padded"]
    select = gru_out[:, -1]                                   # (B, D) last timestep
    if Dp != D:
        select = jnp.pad(select, ((0, 0), (0, Dp - D)))
    return compute_scores_pallas(select.astype(jnp.bfloat16), params["emb_t_bf16"])


# ----------------------------------------------------------------------------
# Parameter layout prep (torch fused-gate layout -> gate-concatenated padded layout)
# ----------------------------------------------------------------------------
def _prepare_layer(layer, D, Dp):
    w_ih, w_hh = layer["w_ih"], layer["w_hh"]      # (3D, D), rows = [r; z; n]
    b_ih, b_hh = layer["b_ih"], layer["b_hh"]      # (3D,)

    def cat_pad(w):                                 # -> (Dp, 3Dp) W^T, gate-concat
        out = jnp.zeros((Dp, 3 * Dp), jnp.float32)
        for g in range(3):
            out = out.at[:D, g * Dp:g * Dp + D].set(w[g * D:(g + 1) * D, :].T)
        return out.astype(jnp.bfloat16)

    wih_cat = cat_pad(w_ih)
    whh_cat = cat_pad(w_hh)

    # fold b_hh of r/z gates into the input bias; b_hn stays inside r*(gh_n + b_hn)
    bih_eff = jnp.zeros((1, 3 * Dp), jnp.float32)
    bih_eff = bih_eff.at[0, 0:D].set(b_ih[0:D] + b_hh[0:D])
    bih_eff = bih_eff.at[0, Dp:Dp + D].set(b_ih[D:2 * D] + b_hh[D:2 * D])
    bih_eff = bih_eff.at[0, 2 * Dp:2 * Dp + D].set(b_ih[2 * D:3 * D])
    bhn = jnp.zeros((1, Dp), jnp.float32).at[0, :D].set(b_hh[2 * D:3 * D])
    return wih_cat, whh_cat, bih_eff, bhn


def prepare_params(emb, raw_layers):
    n_nodes, D = emb.shape
    Dp = _round_up(D, 128)
    emb_pad = jnp.pad(emb, ((0, 0), (0, Dp - D))) if Dp != D else emb

    wih_l, whh_l, bih_l, bhn_l = [], [], [], []
    for layer in raw_layers:
        wih, whh, bih, bhn = _prepare_layer(layer, D, Dp)
        wih_l.append(wih); whh_l.append(whh); bih_l.append(bih); bhn_l.append(bhn)

    return {
        "dim": D,
        "dim_padded": Dp,
        "embedding": emb,                                  # (N, D) f32 original
        "embedding_padded": emb_pad,                       # (N, Dp) f32 for lookup
        "emb_t_bf16": emb_pad.T.astype(jnp.bfloat16),      # (Dp, N) pre-transposed once
        "wih_stack": jnp.stack(wih_l),                     # (NL, Dp, 3Dp) bf16
        "whh_stack": jnp.stack(whh_l),                     # (NL, Dp, 3Dp) bf16
        "bih_stack": jnp.stack(bih_l),                     # (NL, 1, 3Dp) f32
        "bhn_stack": jnp.stack(bhn_l),                     # (NL, 1, Dp) f32
        "gru_layers_raw": raw_layers,
    }


# ----------------------------------------------------------------------------
# Pure-JAX reference (torch.nn.GRU semantics, raw fused-gate f32 layout)
# ----------------------------------------------------------------------------
def _ref_gru_layer(x, w_ih, w_hh, b_ih, b_hh):
    B, L, D = x.shape

    def step(h, x_t):
        gx = x_t @ w_ih.T + b_ih
        gh = h @ w_hh.T + b_hh
        r = jax.nn.sigmoid(gx[:, :D] + gh[:, :D])
        z = jax.nn.sigmoid(gx[:, D:2 * D] + gh[:, D:2 * D])
        n = jnp.tanh(gx[:, 2 * D:] + r * gh[:, 2 * D:])
        h_new = (1.0 - z) * n + z * h
        return h_new, h_new

    h0 = jnp.zeros((B, D), jnp.float32)
    _, ys = lax.scan(step, h0, jnp.swapaxes(x, 0, 1))
    return jnp.swapaxes(ys, 0, 1)


def ref_forward(params, input_ids):
    x = params["embedding"][input_ids]
    for layer in params["gru_layers_raw"]:
        x = _ref_gru_layer(x, layer["w_ih"], layer["w_hh"],
                           layer["b_ih"], layer["b_hh"])
    return x


# ----------------------------------------------------------------------------
# Deterministic parameter init (mirrors GRU4Rec.reset_parameters for weights).
# NOTE: reset_parameters zeros all biases; nonzero biases are used here so the
# correctness check exercises the bias-folding / n-gate-bias placement paths.
# ----------------------------------------------------------------------------
def init_params(key, n_nodes, dim, n_layers):
    stdv = 1.0 / math.sqrt(dim)
    keys = jax.random.split(key, 1 + 4 * n_layers)

    emb = jax.random.uniform(keys[0], (n_nodes, dim), jnp.float32, -stdv, stdv)
    emb = emb.at[0].set(0.0)  # padding_idx=0

    raw_layers = []
    for l in range(n_layers):
        k = keys[1 + 4 * l: 1 + 4 * (l + 1)]
        raw_layers.append({
            "w_ih": jax.random.uniform(k[0], (3 * dim, dim), jnp.float32, -stdv, stdv),
            "w_hh": jax.random.uniform(k[1], (3 * dim, dim), jnp.float32, -stdv, stdv),
            "b_ih": jax.random.uniform(k[2], (3 * dim,), jnp.float32, -stdv, stdv),
            "b_hh": jax.random.uniform(k[3], (3 * dim,), jnp.float32, -stdv, stdv),
        })
    return prepare_params(emb, raw_layers)


# ----------------------------------------------------------------------------
if __name__ == "__main__":
    B, L, D = 2, 8, 32
    N_NODES = 100
    N_LAYERS = 2  # opt.n_iter

    key = jax.random.PRNGKey(0)
    pkey, ikey = jax.random.split(key)
    params = init_params(pkey, N_NODES, D, N_LAYERS)

    input_ids = jax.random.randint(ikey, (B, L), 1, N_NODES, dtype=jnp.int32)

    gru_out = gru4rec_forward(params, input_ids)
    scores = gru4rec_compute_scores(params, gru_out)
    jax.block_until_ready(gru_out)
    jax.block_until_ready(scores)

    # correctness: GRU vs pure-JAX f32 reference (bf16 MXU operands -> loose tol),
    # and the scores kernel vs a direct matmul on the kernel's own gru_out.
    ref_out = ref_forward(params, input_ids)
    ref_scores_kernel_in = gru_out[:, -1] @ params["embedding"].T
    assert jnp.allclose(gru_out, ref_out, atol=5e-2, rtol=5e-2), "GRU mismatch"
    assert jnp.allclose(scores, ref_scores_kernel_in, atol=3e-2, rtol=3e-2), \
        "scores mismatch"

    print("KERNEL_OK")
</pallas_src>

<mosaic_0001>
module attributes {stable_mosaic.version = 11 : i64} {
  func.func @_gru_stack_kernel(%arg0: i32, %arg1: memref<8x8x128xbf16, #tpu.memory_space<vmem>>, %arg2: memref<2x128x384xbf16, #tpu.memory_space<vmem>>, %arg3: memref<2x1x384xf32, #tpu.memory_space<vmem>>, %arg4: memref<2x128x384xbf16, #tpu.memory_space<vmem>>, %arg5: memref<2x1x128xf32, #tpu.memory_space<vmem>>, %arg6: memref<8x8x128xbf16, #tpu.memory_space<vmem>>, %arg7: memref<8x8x128xbf16, #tpu.memory_space<vmem>>, %arg8: memref<8x8x384xf32, #tpu.memory_space<vmem>>) attributes {dimension_semantics = [#tpu.dimension_semantics<parallel>], iteration_bounds = array<i64: 1>, scalar_prefetch = 0 : i64, scratch_operands = 2 : i64, tpu.core_type = #tpu.core_type<tc>, window_params = [{transform_indices = @transform_0, window_bounds = array<i64: 8, 8, 128>}, {pipeline_mode = #tpu.pipeline_mode<synchronous>, transform_indices = @transform_1, window_bounds = array<i64: 2, 128, 384>}, {pipeline_mode = #tpu.pipeline_mode<synchronous>, transform_indices = @transform_2, window_bounds = array<i64: 2, 1, 384>}, {pipeline_mode = #tpu.pipeline_mode<synchronous>, transform_indices = @transform_3, window_bounds = array<i64: 2, 128, 384>}, {pipeline_mode = #tpu.pipeline_mode<synchronous>, transform_indices = @transform_4, window_bounds = array<i64: 2, 1, 128>}, {transform_indices = @transform_5, window_bounds = array<i64: 8, 8, 128>}]} {
    %c0 = arith.constant 0 : index
    %c0_0 = arith.constant 0 : index
    %c0_1 = arith.constant 0 : index
    %0 = vector.load %arg1[%c0, %c0_0, %c0_1] : memref<8x8x128xbf16, #tpu.memory_space<vmem>>, vector<8x8x128xbf16>
    %1 = vector.shape_cast %0 : vector<8x8x128xbf16> to vector<64x128xbf16>
    %c0_2 = arith.constant 0 : index
    %c0_3 = arith.constant 0 : index
    %c0_4 = arith.constant 0 : index
    %2 = vector.load %arg2[%c0_2, %c0_3, %c0_4] : memref<2x128x384xbf16, #tpu.memory_space<vmem>>, vector<1x128x384xbf16>
    %3 = vector.shape_cast %2 : vector<1x128x384xbf16> to vector<128x384xbf16>
    %cst = arith.constant dense<0.000000e+00> : vector<64x384xf32>
    %4 = tpu.matmul %1, %3, %cst {dimension_numbers = #tpu.dot_dimension_numbers<[1], [0], [0], [1], [0, 0, 1, 1], [], []>} : vector<64x128xbf16>, vector<128x384xbf16>, vector<64x384xf32> -> vector<64x384xf32>
    %c0_5 = arith.constant 0 : index
    %c0_6 = arith.constant 0 : index
    %c0_7 = arith.constant 0 : index
    %5 = vector.load %arg3[%c0_5, %c0_6, %c0_7] : memref<2x1x384xf32, #tpu.memory_space<vmem>>, vector<1x1x384xf32>
    %6 = vector.shape_cast %5 : vector<1x1x384xf32> to vector<1x384xf32>
    %7 = vector.broadcast %6 : vector<1x384xf32> to vector<64x384xf32>
    %8 = arith.addf %4, %7 : vector<64x384xf32>
    %9 = vector.shape_cast %8 : vector<64x384xf32> to vector<8x8x384xf32>
    %c0_8 = arith.constant 0 : index
    %c0_9 = arith.constant 0 : index
    %c0_10 = arith.constant 0 : index
    %10 = vector.load %arg8[%c0_8, %c0_9, %c0_10] : memref<8x8x384xf32, #tpu.memory_space<vmem>>, vector<8x8x384xf32>
    tpu.vector_store %arg8[%c0_8, %c0_9, %c0_10], %9 {strides = array<i32>} : memref<8x8x384xf32, #tpu.memory_space<vmem>>, vector<8x8x384xf32>,
    %c0_11 = arith.constant 0 : index
    %c0_12 = arith.constant 0 : index
    %c0_13 = arith.constant 0 : index
    %11 = vector.load %arg4[%c0_11, %c0_12, %c0_13] : memref<2x128x384xbf16, #tpu.memory_space<vmem>>, vector<1x128x384xbf16>
    %12 = vector.shape_cast %11 : vector<1x128x384xbf16> to vector<128x384xbf16>
    %c0_14 = arith.constant 0 : index
    %c0_15 = arith.constant 0 : index
    %c0_16 = arith.constant 0 : index
    %13 = vector.load %arg5[%c0_14, %c0_15, %c0_16] : memref<2x1x128xf32, #tpu.memory_space<vmem>>, vector<1x1x128xf32>
    %14 = vector.shape_cast %13 : vector<1x1x128xf32> to vector<1x128xf32>
    %15 = vector.shape_cast %14 : vector<1x128xf32> to vector<1x128xf32>
    %16 = vector.broadcast %15 : vector<1x128xf32> to vector<8x128xf32>
    %cst_17 = arith.constant 0.000000e+00 : f32
    %17 = vector.broadcast %cst_17 : f32 to vector<8x128xf32>
    %c0_i32 = arith.constant 0 : i32
    %18 = arith.truncf %17 : vector<8x128xf32> to vector<8x128xbf16>
    %cst_18 = arith.constant dense<0.000000e+00> : vector<8x384xf32>
    %19 = tpu.matmul %18, %12, %cst_18 {dimension_numbers = #tpu.dot_dimension_numbers<[1], [0], [0], [1], [0, 0, 1, 1], [], []>} : vector<8x128xbf16>, vector<128x384xbf16>, vector<8x384xf32> -> vector<8x384xf32>
    %20 = arith.index_cast %c0_i32 : i32 to index
    %c0_19 = arith.constant 0 : index
    %c0_20 = arith.constant 0 : index
    %21 = vector.load %arg8[%20, %c0_19, %c0_20] : memref<8x8x384xf32, #tpu.memory_space<vmem>>, vector<1x8x384xf32>
    %22 = vector.shape_cast %21 : vector<1x8x384xf32> to vector<8x384xf32>
    %23 = vector.extract_strided_slice %22 {offsets = [0, 0], sizes = [8, 128], strides = [1, 1]} : vector<8x384xf32> to vector<8x128xf32>
    %24 = vector.extract_strided_slice %19 {offsets = [0, 0], sizes = [8, 128], strides = [1, 1]} : vector<8x384xf32> to vector<8x128xf32>
    %25 = arith.addf %23, %24 : vector<8x128xf32>
    %26 = arith.negf %25 : vector<8x128xf32>
    %27 = math.exp %26 : vector<8x128xf32>
    %cst_21 = arith.constant 1.000000e+00 : f32
    %28 = vector.broadcast %cst_21 : f32 to vector<8x128xf32>
    %29 = arith.addf %28, %27 : vector<8x128xf32>
    %30 = arith.divf %28, %29 : vector<8x128xf32>
    %31 = vector.extract_strided_slice %22 {offsets = [0, 128], sizes = [8, 128], strides = [1, 1]} : vector<8x384xf32> to vector<8x128xf32>
    %32 = vector.extract_strided_slice %19 {offsets = [0, 128], sizes = [8, 128], strides = [1, 1]} : vector<8x384xf32> to vector<8x128xf32>
    %33 = arith.addf %31, %32 : vector<8x128xf32>
    %34 = arith.negf %33 : vector<8x128xf32>
    %35 = math.exp %34 : vector<8x128xf32>
    %cst_22 = arith.constant 1.000000e+00 : f32
    %36 = vector.broadcast %cst_22 : f32 to vector<8x128xf32>
    %37 = arith.addf %36, %35 : vector<8x128xf32>
    %38 = arith.divf %36, %37 : vector<8x128xf32>
    %39 = vector.extract_strided_slice %22 {offsets = [0, 256], sizes = [8, 128], strides = [1, 1]} : vector<8x384xf32> to vector<8x128xf32>
    %40 = vector.extract_strided_slice %19 {offsets = [0, 256], sizes = [8, 128], strides = [1, 1]} : vector<8x384xf32> to vector<8x128xf32>
    %41 = arith.addf %40, %16 : vector<8x128xf32>
    %42 = arith.mulf %30, %41 : vector<8x128xf32>
    %43 = arith.addf %39, %42 : vector<8x128xf32>
    %44 = math.tanh %43 : vector<8x128xf32>
    %cst_23 = arith.constant 1.000000e+00 : f32
    %45 = vector.broadcast %cst_23 : f32 to vector<8x128xf32>
    %46 = arith.subf %45, %38 : vector<8x128xf32>
    %47 = arith.mulf %46, %44 : vector<8x128xf32>
    %48 = arith.mulf %38, %17 : vector<8x128xf32>
    %49 = arith.addf %47, %48 : vector<8x128xf32>
    %50 = arith.truncf %49 : vector<8x128xf32> to vector<8x128xbf16>
    %51 = arith.index_cast %c0_i32 : i32 to index
    %c0_24 = arith.constant 0 : index
    %c0_25 = arith.constant 0 : index
    %52 = vector.load %arg7[%51, %c0_24, %c0_25] : memref<8x8x128xbf16, #tpu.memory_space<vmem>>, vector<1x8x128xbf16>
    %53 = vector.shape_cast %52 : vector<1x8x128xbf16> to vector<8x128xbf16>
    %54 = vector.shape_cast %50 : vector<8x128xbf16> to vector<1x8x128xbf16>
    tpu.vector_store %arg7[%51, %c0_24, %c0_25], %54 {strides = array<i32>} : memref<8x8x128xbf16, #tpu.memory_space<vmem>>, vector<1x8x128xbf16>,
    %c1_i32 = arith.constant 1 : i32
    %55 = arith.truncf %49 : vector<8x128xf32> to vector<8x128xbf16>
    %cst_26 = arith.constant dense<0.000000e+00> : vector<8x384xf32>
    %56 = tpu.matmul %55, %12, %cst_26 {dimension_numbers = #tpu.dot_dimension_numbers<[1], [0], [0], [1], [0, 0, 1, 1], [], []>} : vector<8x128xbf16>, vector<128x384xbf16>, vector<8x384xf32> -> vector<8x384xf32>
    %57 = arith.index_cast %c1_i32 : i32 to index
    %c0_27 = arith.constant 0 : index
    %c0_28 = arith.constant 0 : index
    %58 = vector.load %arg8[%57, %c0_27, %c0_28] : memref<8x8x384xf32, #tpu.memory_space<vmem>>, vector<1x8x384xf32>
    %59 = vector.shape_cast %58 : vector<1x8x384xf32> to vector<8x384xf32>
    %60 = vector.extract_strided_slice %59 {offsets = [0, 0], sizes = [8, 128], strides = [1, 1]} : vector<8x384xf32> to vector<8x128xf32>
    %61 = vector.extract_strided_slice %56 {offsets = [0, 0], sizes = [8, 128], strides = [1, 1]} : vector<8x384xf32> to vector<8x128xf32>
    %62 = arith.addf %60, %61 : vector<8x128xf32>
    %63 = arith.negf %62 : vector<8x128xf32>
    %64 = math.exp %63 : vector<8x128xf32>
    %cst_29 = arith.constant 1.000000e+00 : f32
    %65 = vector.broadcast %cst_29 : f32 to vector<8x128xf32>
    %66 = arith.addf %65, %64 : vector<8x128xf32>
    %67 = arith.divf %65, %66 : vector<8x128xf32>
    %68 = vector.extract_strided_slice %59 {offsets = [0, 128], sizes = [8, 128], strides = [1, 1]} : vector<8x384xf32> to vector<8x128xf32>
    %69 = vector.extract_strided_slice %56 {offsets = [0, 128], sizes = [8, 128], strides = [1, 1]} : vector<8x384xf32> to vector<8x128xf32>
    %70 = arith.addf %68, %69 : vector<8x128xf32>
    %71 = arith.negf %70 : vector<8x128xf32>
    %72 = math.exp %71 : vector<8x128xf32>
    %cst_30 = arith.constant 1.000000e+00 : f32
    %73 = vector.broadcast %cst_30 : f32 to vector<8x128xf32>
    %74 = arith.addf %73, %72 : vector<8x128xf32>
    %75 = arith.divf %73, %74 : vector<8x128xf32>
    %76 = vector.extract_strided_slice %59 {offsets = [0, 256], sizes = [8, 128], strides = [1, 1]} : vector<8x384xf32> to vector<8x128xf32>
    %77 = vector.extract_strided_slice %56 {offsets = [0, 256], sizes = [8, 128], strides = [1, 1]} : vector<8x384xf32> to vector<8x128xf32>
    %78 = arith.addf %77, %16 : vector<8x128xf32>
    %79 = arith.mulf %67, %78 : vector<8x128xf32>
    %80 = arith.addf %76, %79 : vector<8x128xf32>
    %81 = math.tanh %80 : vector<8x128xf32>
    %cst_31 = arith.constant 1.000000e+00 : f32
    %82 = vector.broadcast %cst_31 : f32 to vector<8x128xf32>
    %83 = arith.subf %82, %75 : vector<8x128xf32>
    %84 = arith.mulf %83, %81 : vector<8x128xf32>
    %85 = arith.mulf %75, %49 : vector<8x128xf32>
    %86 = arith.addf %84, %85 : vector<8x128xf32>
    %87 = arith.truncf %86 : vector<8x128xf32> to vector<8x128xbf16>
    %88 = arith.index_cast %c1_i32 : i32 to index
    %c0_32 = arith.constant 0 : index
    %c0_33 = arith.constant 0 : index
    %89 = vector.load %arg7[%88, %c0_32, %c0_33] : memref<8x8x128xbf16, #tpu.memory_space<vmem>>, vector<1x8x128xbf16>
    %90 = vector.shape_cast %89 : vector<1x8x128xbf16> to vector<8x128xbf16>
    %91 = vector.shape_cast %87 : vector<8x128xbf16> to vector<1x8x128xbf16>
    tpu.vector_store %arg7[%88, %c0_32, %c0_33], %91 {strides = array<i32>} : memref<8x8x128xbf16, #tpu.memory_space<vmem>>, vector<1x8x128xbf16>,
    %c2_i32 = arith.constant 2 : i32
    %92 = arith.truncf %86 : vector<8x128xf32> to vector<8x128xbf16>
    %cst_34 = arith.constant dense<0.000000e+00> : vector<8x384xf32>
    %93 = tpu.matmul %92, %12, %cst_34 {dimension_numbers = #tpu.dot_dimension_numbers<[1], [0], [0], [1], [0, 0, 1, 1], [], []>} : vector<8x128xbf16>, vector<128x384xbf16>, vector<8x384xf32> -> vector<8x384xf32>
    %94 = arith.index_cast %c2_i32 : i32 to index
    %c0_35 = arith.constant 0 : index
    %c0_36 = arith.constant 0 : index
    %95 = vector.load %arg8[%94, %c0_35, %c0_36] : memref<8x8x384xf32, #tpu.memory_space<vmem>>, vector<1x8x384xf32>
    %96 = vector.shape_cast %95 : vector<1x8x384xf32> to vector<8x384xf32>
    %97 = vector.extract_strided_slice %96 {offsets = [0, 0], sizes = [8, 128], strides = [1, 1]} : vector<8x384xf32> to vector<8x128xf32>
    %98 = vector.extract_strided_slice %93 {offsets = [0, 0], sizes = [8, 128], strides = [1, 1]} : vector<8x384xf32> to vector<8x128xf32>
    %99 = arith.addf %97, %98 : vector<8x128xf32>
    %100 = arith.negf %99 : vector<8x128xf32>
    %101 = math.exp %100 : vector<8x128xf32>
    %cst_37 = arith.constant 1.000000e+00 : f32
    %102 = vector.broadcast %cst_37 : f32 to vector<8x128xf32>
    %103 = arith.addf %102, %101 : vector<8x128xf32>
    %104 = arith.divf %102, %103 : vector<8x128xf32>
    %105 = vector.extract_strided_slice %96 {offsets = [0, 128], sizes = [8, 128], strides = [1, 1]} : vector<8x384xf32> to vector<8x128xf32>
    %106 = vector.extract_strided_slice %93 {offsets = [0, 128], sizes = [8, 128], strides = [1, 1]} : vector<8x384xf32> to vector<8x128xf32>
    %107 = arith.addf %105, %106 : vector<8x128xf32>
    %108 = arith.negf %107 : vector<8x128xf32>
    %109 = math.exp %108 : vector<8x128xf32>
    %cst_38 = arith.constant 1.000000e+00 : f32
    %110 = vector.broadcast %cst_38 : f32 to vector<8x128xf32>
    %111 = arith.addf %110, %109 : vector<8x128xf32>
    %112 = arith.divf %110, %111 : vector<8x128xf32>
    %113 = vector.extract_strided_slice %96 {offsets = [0, 256], sizes = [8, 128], strides = [1, 1]} : vector<8x384xf32> to vector<8x128xf32>
    %114 = vector.extract_strided_slice %93 {offsets = [0, 256], sizes = [8, 128], strides = [1, 1]} : vector<8x384xf32> to vector<8x128xf32>
    %115 = arith.addf %114, %16 : vector<8x128xf32>
    %116 = arith.mulf %104, %115 : vector<8x128xf32>
    %117 = arith.addf %113, %116 : vector<8x128xf32>
    %118 = math.tanh %117 : vector<8x128xf32>
    %cst_39 = arith.constant 1.000000e+00 : f32
    %119 = vector.broadcast %cst_39 : f32 to vector<8x128xf32>
    %120 = arith.subf %119, %112 : vector<8x128xf32>
    %121 = arith.mulf %120, %118 : vector<8x128xf32>
    %122 = arith.mulf %112, %86 : vector<8x128xf32>
    %123 = arith.addf %121, %122 : vector<8x128xf32>
    %124 = arith.truncf %123 : vector<8x128xf32> to vector<8x128xbf16>
    %125 = arith.index_cast %c2_i32 : i32 to index
    %c0_40 = arith.constant 0 : index
    %c0_41 = arith.constant 0 : index
    %126 = vector.load %arg7[%125, %c0_40, %c0_41] : memref<8x8x128xbf16, #tpu.memory_space<vmem>>, vector<1x8x128xbf16>
    %127 = vector.shape_cast %126 : vector<1x8x128xbf16> to vector<8x128xbf16>
    %128 = vector.shape_cast %124 : vector<8x128xbf16> to vector<1x8x128xbf16>
    tpu.vector_store %arg7[%125, %c0_40, %c0_41], %128 {strides = array<i32>} : memref<8x8x128xbf16, #tpu.memory_space<vmem>>, vector<1x8x128xbf16>,
    %c3_i32 = arith.constant 3 : i32
    %129 = arith.truncf %123 : vector<8x128xf32> to vector<8x128xbf16>
    %cst_42 = arith.constant dense<0.000000e+00> : vector<8x384xf32>
    %130 = tpu.matmul %129, %12, %cst_42 {dimension_numbers = #tpu.dot_dimension_numbers<[1], [0], [0], [1], [0, 0, 1, 1], [], []>} : vector<8x128xbf16>, vector<128x384xbf16>, vector<8x384xf32> -> vector<8x384xf32>
    %131 = arith.index_cast %c3_i32 : i32 to index
    %c0_43 = arith.constant 0 : index
    %c0_44 = arith.constant 0 : index
    %132 = vector.load %arg8[%131, %c0_43, %c0_44] : memref<8x8x384xf32, #tpu.memory_space<vmem>>, vector<1x8x384xf32>
    %133 = vector.shape_cast %132 : vector<1x8x384xf32> to vector<8x384xf32>
    %134 = vector.extract_strided_slice %133 {offsets = [0, 0], sizes = [8, 128], strides = [1, 1]} : vector<8x384xf32> to vector<8x128xf32>
    %135 = vector.extract_strided_slice %130 {offsets = [0, 0], sizes = [8, 128], strides = [1, 1]} : vector<8x384xf32> to vector<8x128xf32>
    %136 = arith.addf %134, %135 : vector<8x128xf32>
    %137 = arith.negf %136 : vector<8x128xf32>
    %138 = math.exp %137 : vector<8x128xf32>
    %cst_45 = arith.constant 1.000000e+00 : f32
    %139 = vector.broadcast %cst_45 : f32 to vector<8x128xf32>
    %140 = arith.addf %139, %138 : vector<8x128xf32>
    %141 = arith.divf %139, %140 : vector<8x128xf32>
    %142 = vector.extract_strided_slice %133 {offsets = [0, 128], sizes = [8, 128], strides = [1, 1]} : vector<8x384xf32> to vector<8x128xf32>
    %143 = vector.extract_strided_slice %130 {offsets = [0, 128], sizes = [8, 128], strides = [1, 1]} : vector<8x384xf32> to vector<8x128xf32>
    %144 = arith.addf %142, %143 : vector<8x128xf32>
    %145 = arith.negf %144 : vector<8x128xf32>
    %146 = math.exp %145 : vector<8x128xf32>
    %cst_46 = arith.constant 1.000000e+00 : f32
    %147 = vector.broadcast %cst_46 : f32 to vector<8x128xf32>
    %148 = arith.addf %147, %146 : vector<8x128xf32>
    %149 = arith.divf %147, %148 : vector<8x128xf32>
    %150 = vector.extract_strided_slice %133 {offsets = [0, 256], sizes = [8, 128], strides = [1, 1]} : vector<8x384xf32> to vector<8x128xf32>
    %151 = vector.extract_strided_slice %130 {offsets = [0, 256], sizes = [8, 128], strides = [1, 1]} : vector<8x384xf32> to vector<8x128xf32>
    %152 = arith.addf %151, %16 : vector<8x128xf32>
    %153 = arith.mulf %141, %152 : vector<8x128xf32>
    %154 = arith.addf %150, %153 : vector<8x128xf32>
    %155 = math.tanh %154 : vector<8x128xf32>
    %cst_47 = arith.constant 1.000000e+00 : f32
    %156 = vector.broadcast %cst_47 : f32 to vector<8x128xf32>
    %157 = arith.subf %156, %149 : vector<8x128xf32>
    %158 = arith.mulf %157, %155 : vector<8x128xf32>
    %159 = arith.mulf %149, %123 : vector<8x128xf32>
    %160 = arith.addf %158, %159 : vector<8x128xf32>
    %161 = arith.truncf %160 : vector<8x128xf32> to vector<8x128xbf16>
    %162 = arith.index_cast %c3_i32 : i32 to index
    %c0_48 = arith.constant 0 : index
    %c0_49 = arith.constant 0 : index
    %163 = vector.load %arg7[%162, %c0_48, %c0_49] : memref<8x8x128xbf16, #tpu.memory_space<vmem>>, vector<1x8x128xbf16>
    %164 = vector.shape_cast %163 : vector<1x8x128xbf16> to vector<8x128xbf16>
    %165 = vector.shape_cast %161 : vector<8x128xbf16> to vector<1x8x128xbf16>
    tpu.vector_store %arg7[%162, %c0_48, %c0_49], %165 {strides = array<i32>} : memref<8x8x128xbf16, #tpu.memory_space<vmem>>, vector<1x8x128xbf16>,
    %c4_i32 = arith.constant 4 : i32
    %166 = arith.truncf %160 : vector<8x128xf32> to vector<8x128xbf16>
    %cst_50 = arith.constant dense<0.000000e+00> : vector<8x384xf32>
    %167 = tpu.matmul %166, %12, %cst_50 {dimension_numbers = #tpu.dot_dimension_numbers<[1], [0], [0], [1], [0, 0, 1, 1], [], []>} : vector<8x128xbf16>, vector<128x384xbf16>, vector<8x384xf32> -> vector<8x384xf32>
    %168 = arith.index_cast %c4_i32 : i32 to index
    %c0_51 = arith.constant 0 : index
    %c0_52 = arith.constant 0 : index
    %169 = vector.load %arg8[%168, %c0_51, %c0_52] : memref<8x8x384xf32, #tpu.memory_space<vmem>>, vector<1x8x384xf32>
    %170 = vector.shape_cast %169 : vector<1x8x384xf32> to vector<8x384xf32>
    %171 = vector.extract_strided_slice %170 {offsets = [0, 0], sizes = [8, 128], strides = [1, 1]} : vector<8x384xf32> to vector<8x128xf32>
    %172 = vector.extract_strided_slice %167 {offsets = [0, 0], sizes = [8, 128], strides = [1, 1]} : vector<8x384xf32> to vector<8x128xf32>
    %173 = arith.addf %171, %172 : vector<8x128xf32>
    %174 = arith.negf %173 : vector<8x128xf32>
    %175 = math.exp %174 : vector<8x128xf32>
    %cst_53 = arith.constant 1.000000e+00 : f32
    %176 = vector.broadcast %cst_53 : f32 to vector<8x128xf32>
    %177 = arith.addf %176, %175 : vector<8x128xf32>
    %178 = arith.divf %176, %177 : vector<8x128xf32>
    %179 = vector.extract_strided_slice %170 {offsets = [0, 128], sizes = [8, 128], strides = [1, 1]} : vector<8x384xf32> to vector<8x128xf32>
    %180 = vector.extract_strided_slice %167 {offsets = [0, 128], sizes = [8, 128], strides = [1, 1]} : vector<8x384xf32> to vector<8x128xf32>
    %181 = arith.addf %179, %180 : vector<8x128xf32>
    %182 = arith.negf %181 : vector<8x128xf32>
    %183 = math.exp %182 : vector<8x128xf32>
    %cst_54 = arith.constant 1.000000e+00 : f32
    %184 = vector.broadcast %cst_54 : f32 to vector<8x128xf32>
    %185 = arith.addf %184, %183 : vector<8x128xf32>
    %186 = arith.divf %184, %185 : vector<8x128xf32>
    %187 = vector.extract_strided_slice %170 {offsets = [0, 256], sizes = [8, 128], strides = [1, 1]} : vector<8x384xf32> to vector<8x128xf32>
    %188 = vector.extract_strided_slice %167 {offsets = [0, 256], sizes = [8, 128], strides = [1, 1]} : vector<8x384xf32> to vector<8x128xf32>
    %189 = arith.addf %188, %16 : vector<8x128xf32>
    %190 = arith.mulf %178, %189 : vector<8x128xf32>
    %191 = arith.addf %187, %190 : vector<8x128xf32>
    %192 = math.tanh %191 : vector<8x128xf32>
    %cst_55 = arith.constant 1.000000e+00 : f32
    %193 = vector.broadcast %cst_55 : f32 to vector<8x128xf32>
    %194 = arith.subf %193, %186 : vector<8x128xf32>
    %195 = arith.mulf %194, %192 : vector<8x128xf32>
    %196 = arith.mulf %186, %160 : vector<8x128xf32>
    %197 = arith.addf %195, %196 : vector<8x128xf32>
    %198 = arith.truncf %197 : vector<8x128xf32> to vector<8x128xbf16>
    %199 = arith.index_cast %c4_i32 : i32 to index
    %c0_56 = arith.constant 0 : index
    %c0_57 = arith.constant 0 : index
    %200 = vector.load %arg7[%199, %c0_56, %c0_57] : memref<8x8x128xbf16, #tpu.memory_space<vmem>>, vector<1x8x128xbf16>
    %201 = vector.shape_cast %200 : vector<1x8x128xbf16> to vector<8x128xbf16>
    %202 = vector.shape_cast %198 : vector<8x128xbf16> to vector<1x8x128xbf16>
    tpu.vector_store %arg7[%199, %c0_56, %c0_57], %202 {strides = array<i32>} : memref<8x8x128xbf16, #tpu.memory_space<vmem>>, vector<1x8x128xbf16>,
    %c5_i32 = arith.constant 5 : i32
    %203 = arith.truncf %197 : vector<8x128xf32> to vector<8x128xbf16>
    %cst_58 = arith.constant dense<0.000000e+00> : vector<8x384xf32>
    %204 = tpu.matmul %203, %12, %cst_58 {dimension_numbers = #tpu.dot_dimension_numbers<[1], [0], [0], [1], [0, 0, 1, 1], [], []>} : vector<8x128xbf16>, vector<128x384xbf16>, vector<8x384xf32> -> vector<8x384xf32>
    %205 = arith.index_cast %c5_i32 : i32 to index
    %c0_59 = arith.constant 0 : index
    %c0_60 = arith.constant 0 : index
    %206 = vector.load %arg8[%205, %c0_59, %c0_60] : memref<8x8x384xf32, #tpu.memory_space<vmem>>, vector<1x8x384xf32>
    %207 = vector.shape_cast %206 : vector<1x8x384xf32> to vector<8x384xf32>
    %208 = vector.extract_strided_slice %207 {offsets = [0, 0], sizes = [8, 128], strides = [1, 1]} : vector<8x384xf32> to vector<8x128xf32>
    %209 = vector.extract_strided_slice %204 {offsets = [0, 0], sizes = [8, 128], strides = [1, 1]} : vector<8x384xf32> to vector<8x128xf32>
    %210 = arith.addf %208, %209 : vector<8x128xf32>
    %211 = arith.negf %210 : vector<8x128xf32>
    %212 = math.exp %211 : vector<8x128xf32>
    %cst_61 = arith.constant 1.000000e+00 : f32
    %213 = vector.broadcast %cst_61 : f32 to vector<8x128xf32>
    %214 = arith.addf %213, %212 : vector<8x128xf32>
    %215 = arith.divf %213, %214 : vector<8x128xf32>
    %216 = vector.extract_strided_slice %207 {offsets = [0, 128], sizes = [8, 128], strides = [1, 1]} : vector<8x384xf32> to vector<8x128xf32>
    %217 = vector.extract_strided_slice %204 {offsets = [0, 128], sizes = [8, 128], strides = [1, 1]} : vector<8x384xf32> to vector<8x128xf32>
    %218 = arith.addf %216, %217 : vector<8x128xf32>
    %219 = arith.negf %218 : vector<8x128xf32>
    %220 = math.exp %219 : vector<8x128xf32>
    %cst_62 = arith.constant 1.000000e+00 : f32
    %221 = vector.broadcast %cst_62 : f32 to vector<8x128xf32>
    %222 = arith.addf %221, %220 : vector<8x128xf32>
    %223 = arith.divf %221, %222 : vector<8x128xf32>
    %224 = vector.extract_strided_slice %207 {offsets = [0, 256], sizes = [8, 128], strides = [1, 1]} : vector<8x384xf32> to vector<8x128xf32>
    %225 = vector.extract_strided_slice %204 {offsets = [0, 256], sizes = [8, 128], strides = [1, 1]} : vector<8x384xf32> to vector<8x128xf32>
    %226 = arith.addf %225, %16 : vector<8x128xf32>
    %227 = arith.mulf %215, %226 : vector<8x128xf32>
    %228 = arith.addf %224, %227 : vector<8x128xf32>
    %229 = math.tanh %228 : vector<8x128xf32>
    %cst_63 = arith.constant 1.000000e+00 : f32
    %230 = vector.broadcast %cst_63 : f32 to vector<8x128xf32>
    %231 = arith.subf %230, %223 : vector<8x128xf32>
    %232 = arith.mulf %231, %229 : vector<8x128xf32>
    %233 = arith.mulf %223, %197 : vector<8x128xf32>
    %234 = arith.addf %232, %233 : vector<8x128xf32>
    %235 = arith.truncf %234 : vector<8x128xf32> to vector<8x128xbf16>
    %236 = arith.index_cast %c5_i32 : i32 to index
    %c0_64 = arith.constant 0 : index
    %c0_65 = arith.constant 0 : index
    %237 = vector.load %arg7[%236, %c0_64, %c0_65] : memref<8x8x128xbf16, #tpu.memory_space<vmem>>, vector<1x8x128xbf16>
    %238 = vector.shape_cast %237 : vector<1x8x128xbf16> to vector<8x128xbf16>
    %239 = vector.shape_cast %235 : vector<8x128xbf16> to vector<1x8x128xbf16>
    tpu.vector_store %arg7[%236, %c0_64, %c0_65], %239 {strides = array<i32>} : memref<8x8x128xbf16, #tpu.memory_space<vmem>>, vector<1x8x128xbf16>,
    %c6_i32 = arith.constant 6 : i32
    %240 = arith.truncf %234 : vector<8x128xf32> to vector<8x128xbf16>
    %cst_66 = arith.constant dense<0.000000e+00> : vector<8x384xf32>
    %241 = tpu.matmul %240, %12, %cst_66 {dimension_numbers = #tpu.dot_dimension_numbers<[1], [0], [0], [1], [0, 0, 1, 1], [], []>} : vector<8x128xbf16>, vector<128x384xbf16>, vector<8x384xf32> -> vector<8x384xf32>
    %242 = arith.index_cast %c6_i32 : i32 to index
    %c0_67 = arith.constant 0 : index
    %c0_68 = arith.constant 0 : index
    %243 = vector.load %arg8[%242, %c0_67, %c0_68] : memref<8x8x384xf32, #tpu.memory_space<vmem>>, vector<1x8x384xf32>
    %244 = vector.shape_cast %243 : vector<1x8x384xf32> to vector<8x384xf32>
    %245 = vector.extract_strided_slice %244 {offsets = [0, 0], sizes = [8, 128], strides = [1, 1]} : vector<8x384xf32> to vector<8x128xf32>
    %246 = vector.extract_strided_slice %241 {offsets = [0, 0], sizes = [8, 128], strides = [1, 1]} : vector<8x384xf32> to vector<8x128xf32>
    %247 = arith.addf %245, %246 : vector<8x128xf32>
    %248 = arith.negf %247 : vector<8x128xf32>
    %249 = math.exp %248 : vector<8x128xf32>
    %cst_69 = arith.constant 1.000000e+00 : f32
    %250 = vector.broadcast %cst_69 : f32 to vector<8x128xf32>
    %251 = arith.addf %250, %249 : vector<8x128xf32>
    %252 = arith.divf %250, %251 : vector<8x128xf32>
    %253 = vector.extract_strided_slice %244 {offsets = [0, 128], sizes = [8, 128], strides = [1, 1]} : vector<8x384xf32> to vector<8x128xf32>
    %254 = vector.extract_strided_slice %241 {offsets = [0, 128], sizes = [8, 128], strides = [1, 1]} : vector<8x384xf32> to vector<8x128xf32>
    %255 = arith.addf %253, %254 : vector<8x128xf32>
    %256 = arith.negf %255 : vector<8x128xf32>
    %257 = math.exp %256 : vector<8x128xf32>
    %cst_70 = arith.constant 1.000000e+00 : f32
    %258 = vector.broadcast %cst_70 : f32 to vector<8x128xf32>
    %259 = arith.addf %258, %257 : vector<8x128xf32>
    %260 = arith.divf %258, %259 : vector<8x128xf32>
    %261 = vector.extract_strided_slice %244 {offsets = [0, 256], sizes = [8, 128], strides = [1, 1]} : vector<8x384xf32> to vector<8x128xf32>
    %262 = vector.extract_strided_slice %241 {offsets = [0, 256], sizes = [8, 128], strides = [1, 1]} : vector<8x384xf32> to vector<8x128xf32>
    %263 = arith.addf %262, %16 : vector<8x128xf32>
    %264 = arith.mulf %252, %263 : vector<8x128xf32>
    %265 = arith.addf %261, %264 : vector<8x128xf32>
    %266 = math.tanh %265 : vector<8x128xf32>
    %cst_71 = arith.constant 1.000000e+00 : f32
    %267 = vector.broadcast %cst_71 : f32 to vector<8x128xf32>
    %268 = arith.subf %267, %260 : vector<8x128xf32>
    %269 = arith.mulf %268, %266 : vector<8x128xf32>
    %270 = arith.mulf %260, %234 : vector<8x128xf32>
    %271 = arith.addf %269, %270 : vector<8x128xf32>
    %272 = arith.truncf %271 : vector<8x128xf32> to vector<8x128xbf16>
    %273 = arith.index_cast %c6_i32 : i32 to index
    %c0_72 = arith.constant 0 : index
    %c0_73 = arith.constant 0 : index
    %274 = vector.load %arg7[%273, %c0_72, %c0_73] : memref<8x8x128xbf16, #tpu.memory_space<vmem>>, vector<1x8x128xbf16>
    %275 = vector.shape_cast %274 : vector<1x8x128xbf16> to vector<8x128xbf16>
    %276 = vector.shape_cast %272 : vector<8x128xbf16> to vector<1x8x128xbf16>
    tpu.vector_store %arg7[%273, %c0_72, %c0_73], %276 {strides = array<i32>} : memref<8x8x128xbf16, #tpu.memory_space<vmem>>, vector<1x8x128xbf16>,
    %c7_i32 = arith.constant 7 : i32
    %277 = arith.truncf %271 : vector<8x128xf32> to vector<8x128xbf16>
    %cst_74 = arith.constant dense<0.000000e+00> : vector<8x384xf32>
    %278 = tpu.matmul %277, %12, %cst_74 {dimension_numbers = #tpu.dot_dimension_numbers<[1], [0], [0], [1], [0, 0, 1, 1], [], []>} : vector<8x128xbf16>, vector<128x384xbf16>, vector<8x384xf32> -> vector<8x384xf32>
    %279 = arith.index_cast %c7_i32 : i32 to index
    %c0_75 = arith.constant 0 : index
    %c0_76 = arith.constant 0 : index
    %280 = vector.load %arg8[%279, %c0_75, %c0_76] : memref<8x8x384xf32, #tpu.memory_space<vmem>>, vector<1x8x384xf32>
    %281 = vector.shape_cast %280 : vector<1x8x384xf32> to vector<8x384xf32>
    %282 = vector.extract_strided_slice %281 {offsets = [0, 0], sizes = [8, 128], strides = [1, 1]} : vector<8x384xf32> to vector<8x128xf32>
    %283 = vector.extract_strided_slice %278 {offsets = [0, 0], sizes = [8, 128], strides = [1, 1]} : vector<8x384xf32> to vector<8x128xf32>
    %284 = arith.addf %282, %283 : vector<8x128xf32>
    %285 = arith.negf %284 : vector<8x128xf32>
    %286 = math.exp %285 : vector<8x128xf32>
    %cst_77 = arith.constant 1.000000e+00 : f32
    %287 = vector.broadcast %cst_77 : f32 to vector<8x128xf32>
    %288 = arith.addf %287, %286 : vector<8x128xf32>
    %289 = arith.divf %287, %288 : vector<8x128xf32>
    %290 = vector.extract_strided_slice %281 {offsets = [0, 128], sizes = [8, 128], strides = [1, 1]} : vector<8x384xf32> to vector<8x128xf32>
    %291 = vector.extract_strided_slice %278 {offsets = [0, 128], sizes = [8, 128], strides = [1, 1]} : vector<8x384xf32> to vector<8x128xf32>
    %292 = arith.addf %290, %291 : vector<8x128xf32>
    %293 = arith.negf %292 : vector<8x128xf32>
    %294 = math.exp %293 : vector<8x128xf32>
    %cst_78 = arith.constant 1.000000e+00 : f32
    %295 = vector.broadcast %cst_78 : f32 to vector<8x128xf32>
    %296 = arith.addf %295, %294 : vector<8x128xf32>
    %297 = arith.divf %295, %296 : vector<8x128xf32>
    %298 = vector.extract_strided_slice %281 {offsets = [0, 256], sizes = [8, 128], strides = [1, 1]} : vector<8x384xf32> to vector<8x128xf32>
    %299 = vector.extract_strided_slice %278 {offsets = [0, 256], sizes = [8, 128], strides = [1, 1]} : vector<8x384xf32> to vector<8x128xf32>
    %300 = arith.addf %299, %16 : vector<8x128xf32>
    %301 = arith.mulf %289, %300 : vector<8x128xf32>
    %302 = arith.addf %298, %301 : vector<8x128xf32>
    %303 = math.tanh %302 : vector<8x128xf32>
    %cst_79 = arith.constant 1.000000e+00 : f32
    %304 = vector.broadcast %cst_79 : f32 to vector<8x128xf32>
    %305 = arith.subf %304, %297 : vector<8x128xf32>
    %306 = arith.mulf %305, %303 : vector<8x128xf32>
    %307 = arith.mulf %297, %271 : vector<8x128xf32>
    %308 = arith.addf %306, %307 : vector<8x128xf32>
    %309 = arith.truncf %308 : vector<8x128xf32> to vector<8x128xbf16>
    %310 = arith.index_cast %c7_i32 : i32 to index
    %c0_80 = arith.constant 0 : index
    %c0_81 = arith.constant 0 : index
    %311 = vector.load %arg7[%310, %c0_80, %c0_81] : memref<8x8x128xbf16, #tpu.memory_space<vmem>>, vector<1x8x128xbf16>
    %312 = vector.shape_cast %311 : vector<1x8x128xbf16> to vector<8x128xbf16>
    %313 = vector.shape_cast %309 : vector<8x128xbf16> to vector<1x8x128xbf16>
    tpu.vector_store %arg7[%310, %c0_80, %c0_81], %313 {strides = array<i32>} : memref<8x8x128xbf16, #tpu.memory_space<vmem>>, vector<1x8x128xbf16>,
    %c8_i32 = arith.constant 8 : i32
    %c0_82 = arith.constant 0 : index
    %c0_83 = arith.constant 0 : index
    %c0_84 = arith.constant 0 : index
    %314 = vector.load %arg7[%c0_82, %c0_83, %c0_84] : memref<8x8x128xbf16, #tpu.memory_space<vmem>>, vector<8x8x128xbf16>
    %315 = vector.shape_cast %314 : vector<8x8x128xbf16> to vector<64x128xbf16>
    %c1 = arith.constant 1 : index
    %c0_85 = arith.constant 0 : index
    %c0_86 = arith.constant 0 : index
    %316 = vector.load %arg2[%c1, %c0_85, %c0_86] : memref<2x128x384xbf16, #tpu.memory_space<vmem>>, vector<1x128x384xbf16>
    %317 = vector.shape_cast %316 : vector<1x128x384xbf16> to vector<128x384xbf16>
    %cst_87 = arith.constant dense<0.000000e+00> : vector<64x384xf32>
    %318 = tpu.matmul %315, %317, %cst_87 {dimension_numbers = #tpu.dot_dimension_numbers<[1], [0], [0], [1], [0, 0, 1, 1], [], []>} : vector<64x128xbf16>, vector<128x384xbf16>, vector<64x384xf32> -> vector<64x384xf32>
    %c1_88 = arith.constant 1 : index
    %c0_89 = arith.constant 0 : index
    %c0_90 = arith.constant 0 : index
    %319 = vector.load %arg3[%c1_88, %c0_89, %c0_90] : memref<2x1x384xf32, #tpu.memory_space<vmem>>, vector<1x1x384xf32>
    %320 = vector.shape_cast %319 : vector<1x1x384xf32> to vector<1x384xf32>
    %321 = vector.broadcast %320 : vector<1x384xf32> to vector<64x384xf32>
    %322 = arith.addf %318, %321 : vector<64x384xf32>
    %323 = vector.shape_cast %322 : vector<64x384xf32> to vector<8x8x384xf32>
    %c0_91 = arith.constant 0 : index
    %c0_92 = arith.constant 0 : index
    %c0_93 = arith.constant 0 : index
    %324 = vector.load %arg8[%c0_91, %c0_92, %c0_93] : memref<8x8x384xf32, #tpu.memory_space<vmem>>, vector<8x8x384xf32>
    tpu.vector_store %arg8[%c0_91, %c0_92, %c0_93], %323 {strides = array<i32>} : memref<8x8x384xf32, #tpu.memory_space<vmem>>, vector<8x8x384xf32>,
    %c1_94 = arith.constant 1 : index
    %c0_95 = arith.constant 0 : index
    %c0_96 = arith.constant 0 : index
    %325 = vector.load %arg4[%c1_94, %c0_95, %c0_96] : memref<2x128x384xbf16, #tpu.memory_space<vmem>>, vector<1x128x384xbf16>
    %326 = vector.shape_cast %325 : vector<1x128x384xbf16> to vector<128x384xbf16>
    %c1_97 = arith.constant 1 : index
    %c0_98 = arith.constant 0 : index
    %c0_99 = arith.constant 0 : index
    %327 = vector.load %arg5[%c1_97, %c0_98, %c0_99] : memref<2x1x128xf32, #tpu.memory_space<vmem>>, vector<1x1x128xf32>
    %328 = vector.shape_cast %327 : vector<1x1x128xf32> to vector<1x128xf32>
    %329 = vector.shape_cast %328 : vector<1x128xf32> to vector<1x128xf32>
    %330 = vector.broadcast %329 : vector<1x128xf32> to vector<8x128xf32>
    %cst_100 = arith.constant 0.000000e+00 : f32
    %331 = vector.broadcast %cst_100 : f32 to vector<8x128xf32>
    %c0_i32_101 = arith.constant 0 : i32
    %332 = arith.truncf %331 : vector<8x128xf32> to vector<8x128xbf16>
    %cst_102 = arith.constant dense<0.000000e+00> : vector<8x384xf32>
    %333 = tpu.matmul %332, %326, %cst_102 {dimension_numbers = #tpu.dot_dimension_numbers<[1], [0], [0], [1], [0, 0, 1, 1], [], []>} : vector<8x128xbf16>, vector<128x384xbf16>, vector<8x384xf32> -> vector<8x384xf32>
    %334 = arith.index_cast %c0_i32_101 : i32 to index
    %c0_103 = arith.constant 0 : index
    %c0_104 = arith.constant 0 : index
    %335 = vector.load %arg8[%334, %c0_103, %c0_104] : memref<8x8x384xf32, #tpu.memory_space<vmem>>, vector<1x8x384xf32>
    %336 = vector.shape_cast %335 : vector<1x8x384xf32> to vector<8x384xf32>
    %337 = vector.extract_strided_slice %336 {offsets = [0, 0], sizes = [8, 128], strides = [1, 1]} : vector<8x384xf32> to vector<8x128xf32>
    %338 = vector.extract_strided_slice %333 {offsets = [0, 0], sizes = [8, 128], strides = [1, 1]} : vector<8x384xf32> to vector<8x128xf32>
    %339 = arith.addf %337, %338 : vector<8x128xf32>
    %340 = arith.negf %339 : vector<8x128xf32>
    %341 = math.exp %340 : vector<8x128xf32>
    %cst_105 = arith.constant 1.000000e+00 : f32
    %342 = vector.broadcast %cst_105 : f32 to vector<8x128xf32>
    %343 = arith.addf %342, %341 : vector<8x128xf32>
    %344 = arith.divf %342, %343 : vector<8x128xf32>
    %345 = vector.extract_strided_slice %336 {offsets = [0, 128], sizes = [8, 128], strides = [1, 1]} : vector<8x384xf32> to vector<8x128xf32>
    %346 = vector.extract_strided_slice %333 {offsets = [0, 128], sizes = [8, 128], strides = [1, 1]} : vector<8x384xf32> to vector<8x128xf32>
    %347 = arith.addf %345, %346 : vector<8x128xf32>
    %348 = arith.negf %347 : vector<8x128xf32>
    %349 = math.exp %348 : vector<8x128xf32>
    %cst_106 = arith.constant 1.000000e+00 : f32
    %350 = vector.broadcast %cst_106 : f32 to vector<8x128xf32>
    %351 = arith.addf %350, %349 : vector<8x128xf32>
    %352 = arith.divf %350, %351 : vector<8x128xf32>
    %353 = vector.extract_strided_slice %336 {offsets = [0, 256], sizes = [8, 128], strides = [1, 1]} : vector<8x384xf32> to vector<8x128xf32>
    %354 = vector.extract_strided_slice %333 {offsets = [0, 256], sizes = [8, 128], strides = [1, 1]} : vector<8x384xf32> to vector<8x128xf32>
    %355 = arith.addf %354, %330 : vector<8x128xf32>
    %356 = arith.mulf %344, %355 : vector<8x128xf32>
    %357 = arith.addf %353, %356 : vector<8x128xf32>
    %358 = math.tanh %357 : vector<8x128xf32>
    %cst_107 = arith.constant 1.000000e+00 : f32
    %359 = vector.broadcast %cst_107 : f32 to vector<8x128xf32>
    %360 = arith.subf %359, %352 : vector<8x128xf32>
    %361 = arith.mulf %360, %358 : vector<8x128xf32>
    %362 = arith.mulf %352, %331 : vector<8x128xf32>
    %363 = arith.addf %361, %362 : vector<8x128xf32>
    %364 = arith.truncf %363 : vector<8x128xf32> to vector<8x128xbf16>
    %365 = arith.index_cast %c0_i32_101 : i32 to index
    %c0_108 = arith.constant 0 : index
    %c0_109 = arith.constant 0 : index
    %366 = vector.load %arg6[%365, %c0_108, %c0_109] : memref<8x8x128xbf16, #tpu.memory_space<vmem>>, vector<1x8x128xbf16>
    %367 = vector.shape_cast %366 : vector<1x8x128xbf16> to vector<8x128xbf16>
    %368 = vector.shape_cast %364 : vector<8x128xbf16> to vector<1x8x128xbf16>
    tpu.vector_store %arg6[%365, %c0_108, %c0_109], %368 {strides = array<i32>} : memref<8x8x128xbf16, #tpu.memory_space<vmem>>, vector<1x8x128xbf16>,
    %c1_i32_110 = arith.constant 1 : i32
    %369 = arith.truncf %363 : vector<8x128xf32> to vector<8x128xbf16>
    %cst_111 = arith.constant dense<0.000000e+00> : vector<8x384xf32>
    %370 = tpu.matmul %369, %326, %cst_111 {dimension_numbers = #tpu.dot_dimension_numbers<[1], [0], [0], [1], [0, 0, 1, 1], [], []>} : vector<8x128xbf16>, vector<128x384xbf16>, vector<8x384xf32> -> vector<8x384xf32>
    %371 = arith.index_cast %c1_i32_110 : i32 to index
    %c0_112 = arith.constant 0 : index
    %c0_113 = arith.constant 0 : index
    %372 = vector.load %arg8[%371, %c0_112, %c0_113] : memref<8x8x384xf32, #tpu.memory_space<vmem>>, vector<1x8x384xf32>
    %373 = vector.shape_cast %372 : vector<1x8x384xf32> to vector<8x384xf32>
    %374 = vector.extract_strided_slice %373 {offsets = [0, 0], sizes = [8, 128], strides = [1, 1]} : vector<8x384xf32> to vector<8x128xf32>
    %375 = vector.extract_strided_slice %370 {offsets = [0, 0], sizes = [8, 128], strides = [1, 1]} : vector<8x384xf32> to vector<8x128xf32>
    %376 = arith.addf %374, %375 : vector<8x128xf32>
    %377 = arith.negf %376 : vector<8x128xf32>
    %378 = math.exp %377 : vector<8x128xf32>
    %cst_114 = arith.constant 1.000000e+00 : f32
    %379 = vector.broadcast %cst_114 : f32 to vector<8x128xf32>
    %380 = arith.addf %379, %378 : vector<8x128xf32>
    %381 = arith.divf %379, %380 : vector<8x128xf32>
    %382 = vector.extract_strided_slice %373 {offsets = [0, 128], sizes = [8, 128], strides = [1, 1]} : vector<8x384xf32> to vector<8x128xf32>
    %383 = vector.extract_strided_slice %370 {offsets = [0, 128], sizes = [8, 128], strides = [1, 1]} : vector<8x384xf32> to vector<8x128xf32>
    %384 = arith.addf %382, %383 : vector<8x128xf32>
    %385 = arith.negf %384 : vector<8x128xf32>
    %386 = math.exp %385 : vector<8x128xf32>
    %cst_115 = arith.constant 1.000000e+00 : f32
    %387 = vector.broadcast %cst_115 : f32 to vector<8x128xf32>
    %388 = arith.addf %387, %386 : vector<8x128xf32>
    %389 = arith.divf %387, %388 : vector<8x128xf32>
    %390 = vector.extract_strided_slice %373 {offsets = [0, 256], sizes = [8, 128], strides = [1, 1]} : vector<8x384xf32> to vector<8x128xf32>
    %391 = vector.extract_strided_slice %370 {offsets = [0, 256], sizes = [8, 128], strides = [1, 1]} : vector<8x384xf32> to vector<8x128xf32>
    %392 = arith.addf %391, %330 : vector<8x128xf32>
    %393 = arith.mulf %381, %392 : vector<8x128xf32>
    %394 = arith.addf %390, %393 : vector<8x128xf32>
    %395 = math.tanh %394 : vector<8x128xf32>
    %cst_116 = arith.constant 1.000000e+00 : f32
    %396 = vector.broadcast %cst_116 : f32 to vector<8x128xf32>
    %397 = arith.subf %396, %389 : vector<8x128xf32>
    %398 = arith.mulf %397, %395 : vector<8x128xf32>
    %399 = arith.mulf %389, %363 : vector<8x128xf32>
    %400 = arith.addf %398, %399 : vector<8x128xf32>
    %401 = arith.truncf %400 : vector<8x128xf32> to vector<8x128xbf16>
    %402 = arith.index_cast %c1_i32_110 : i32 to index
    %c0_117 = arith.constant 0 : index
    %c0_118 = arith.constant 0 : index
    %403 = vector.load %arg6[%402, %c0_117, %c0_118] : memref<8x8x128xbf16, #tpu.memory_space<vmem>>, vector<1x8x128xbf16>
    %404 = vector.shape_cast %403 : vector<1x8x128xbf16> to vector<8x128xbf16>
    %405 = vector.shape_cast %401 : vector<8x128xbf16> to vector<1x8x128xbf16>
    tpu.vector_store %arg6[%402, %c0_117, %c0_118], %405 {strides = array<i32>} : memref<8x8x128xbf16, #tpu.memory_space<vmem>>, vector<1x8x128xbf16>,
    %c2_i32_119 = arith.constant 2 : i32
    %406 = arith.truncf %400 : vector<8x128xf32> to vector<8x128xbf16>
    %cst_120 = arith.constant dense<0.000000e+00> : vector<8x384xf32>
    %407 = tpu.matmul %406, %326, %cst_120 {dimension_numbers = #tpu.dot_dimension_numbers<[1], [0], [0], [1], [0, 0, 1, 1], [], []>} : vector<8x128xbf16>, vector<128x384xbf16>, vector<8x384xf32> -> vector<8x384xf32>
    %408 = arith.index_cast %c2_i32_119 : i32 to index
    %c0_121 = arith.constant 0 : index
    %c0_122 = arith.constant 0 : index
    %409 = vector.load %arg8[%408, %c0_121, %c0_122] : memref<8x8x384xf32, #tpu.memory_space<vmem>>, vector<1x8x384xf32>
    %410 = vector.shape_cast %409 : vector<1x8x384xf32> to vector<8x384xf32>
    %411 = vector.extract_strided_slice %410 {offsets = [0, 0], sizes = [8, 128], strides = [1, 1]} : vector<8x384xf32> to vector<8x128xf32>
    %412 = vector.extract_strided_slice %407 {offsets = [0, 0], sizes = [8, 128], strides = [1, 1]} : vector<8x384xf32> to vector<8x128xf32>
    %413 = arith.addf %411, %412 : vector<8x128xf32>
    %414 = arith.negf %413 : vector<8x128xf32>
    %415 = math.exp %414 : vector<8x128xf32>
    %cst_123 = arith.constant 1.000000e+00 : f32
    %416 = vector.broadcast %cst_123 : f32 to vector<8x128xf32>
    %417 = arith.addf %416, %415 : vector<8x128xf32>
    %418 = arith.divf %416, %417 : vector<8x128xf32>
    %419 = vector.extract_strided_slice %410 {offsets = [0, 128], sizes = [8, 128], strides = [1, 1]} : vector<8x384xf32> to vector<8x128xf32>
    %420 = vector.extract_strided_slice %407 {offsets = [0, 128], sizes = [8, 128], strides = [1, 1]} : vector<8x384xf32> to vector<8x128xf32>
    %421 = arith.addf %419, %420 : vector<8x128xf32>
    %422 = arith.negf %421 : vector<8x128xf32>
    %423 = math.exp %422 : vector<8x128xf32>
    %cst_124 = arith.constant 1.000000e+00 : f32
    %424 = vector.broadcast %cst_124 : f32 to vector<8x128xf32>
    %425 = arith.addf %424, %423 : vector<8x128xf32>
    %426 = arith.divf %424, %425 : vector<8x128xf32>
    %427 = vector.extract_strided_slice %410 {offsets = [0, 256], sizes = [8, 128], strides = [1, 1]} : vector<8x384xf32> to vector<8x128xf32>
    %428 = vector.extract_strided_slice %407 {offsets = [0, 256], sizes = [8, 128], strides = [1, 1]} : vector<8x384xf32> to vector<8x128xf32>
    %429 = arith.addf %428, %330 : vector<8x128xf32>
    %430 = arith.mulf %418, %429 : vector<8x128xf32>
    %431 = arith.addf %427, %430 : vector<8x128xf32>
    %432 = math.tanh %431 : vector<8x128xf32>
    %cst_125 = arith.constant 1.000000e+00 : f32
    %433 = vector.broadcast %cst_125 : f32 to vector<8x128xf32>
    %434 = arith.subf %433, %426 : vector<8x128xf32>
    %435 = arith.mulf %434, %432 : vector<8x128xf32>
    %436 = arith.mulf %426, %400 : vector<8x128xf32>
    %437 = arith.addf %435, %436 : vector<8x128xf32>
    %438 = arith.truncf %437 : vector<8x128xf32> to vector<8x128xbf16>
    %439 = arith.index_cast %c2_i32_119 : i32 to index
    %c0_126 = arith.constant 0 : index
    %c0_127 = arith.constant 0 : index
    %440 = vector.load %arg6[%439, %c0_126, %c0_127] : memref<8x8x128xbf16, #tpu.memory_space<vmem>>, vector<1x8x128xbf16>
    %441 = vector.shape_cast %440 : vector<1x8x128xbf16> to vector<8x128xbf16>
    %442 = vector.shape_cast %438 : vector<8x128xbf16> to vector<1x8x128xbf16>
    tpu.vector_store %arg6[%439, %c0_126, %c0_127], %442 {strides = array<i32>} : memref<8x8x128xbf16, #tpu.memory_space<vmem>>, vector<1x8x128xbf16>,
    %c3_i32_128 = arith.constant 3 : i32
    %443 = arith.truncf %437 : vector<8x128xf32> to vector<8x128xbf16>
    %cst_129 = arith.constant dense<0.000000e+00> : vector<8x384xf32>
    %444 = tpu.matmul %443, %326, %cst_129 {dimension_numbers = #tpu.dot_dimension_numbers<[1], [0], [0], [1], [0, 0, 1, 1], [], []>} : vector<8x128xbf16>, vector<128x384xbf16>, vector<8x384xf32> -> vector<8x384xf32>
    %445 = arith.index_cast %c3_i32_128 : i32 to index
    %c0_130 = arith.constant 0 : index
    %c0_131 = arith.constant 0 : index
    %446 = vector.load %arg8[%445, %c0_130, %c0_131] : memref<8x8x384xf32, #tpu.memory_space<vmem>>, vector<1x8x384xf32>
    %447 = vector.shape_cast %446 : vector<1x8x384xf32> to vector<8x384xf32>
    %448 = vector.extract_strided_slice %447 {offsets = [0, 0], sizes = [8, 128], strides = [1, 1]} : vector<8x384xf32> to vector<8x128xf32>
    %449 = vector.extract_strided_slice %444 {offsets = [0, 0], sizes = [8, 128], strides = [1, 1]} : vector<8x384xf32> to vector<8x128xf32>
    %450 = arith.addf %448, %449 : vector<8x128xf32>
    %451 = arith.negf %450 : vector<8x128xf32>
    %452 = math.exp %451 : vector<8x128xf32>
    %cst_132 = arith.constant 1.000000e+00 : f32
    %453 = vector.broadcast %cst_132 : f32 to vector<8x128xf32>
    %454 = arith.addf %453, %452 : vector<8x128xf32>
    %455 = arith.divf %453, %454 : vector<8x128xf32>
    %456 = vector.extract_strided_slice %447 {offsets = [0, 128], sizes = [8, 128], strides = [1, 1]} : vector<8x384xf32> to vector<8x128xf32>
    %457 = vector.extract_strided_slice %444 {offsets = [0, 128], sizes = [8, 128], strides = [1, 1]} : vector<8x384xf32> to vector<8x128xf32>
    %458 = arith.addf %456, %457 : vector<8x128xf32>
    %459 = arith.negf %458 : vector<8x128xf32>
    %460 = math.exp %459 : vector<8x128xf32>
    %cst_133 = arith.constant 1.000000e+00 : f32
    %461 = vector.broadcast %cst_133 : f32 to vector<8x128xf32>
    %462 = arith.addf %461, %460 : vector<8x128xf32>
    %463 = arith.divf %461, %462 : vector<8x128xf32>
    %464 = vector.extract_strided_slice %447 {offsets = [0, 256], sizes = [8, 128], strides = [1, 1]} : vector<8x384xf32> to vector<8x128xf32>
    %465 = vector.extract_strided_slice %444 {offsets = [0, 256], sizes = [8, 128], strides = [1, 1]} : vector<8x384xf32> to vector<8x128xf32>
    %466 = arith.addf %465, %330 : vector<8x128xf32>
    %467 = arith.mulf %455, %466 : vector<8x128xf32>
    %468 = arith.addf %464, %467 : vector<8x128xf32>
    %469 = math.tanh %468 : vector<8x128xf32>
    %cst_134 = arith.constant 1.000000e+00 : f32
    %470 = vector.broadcast %cst_134 : f32 to vector<8x128xf32>
    %471 = arith.subf %470, %463 : vector<8x128xf32>
    %472 = arith.mulf %471, %469 : vector<8x128xf32>
    %473 = arith.mulf %463, %437 : vector<8x128xf32>
    %474 = arith.addf %472, %473 : vector<8x128xf32>
    %475 = arith.truncf %474 : vector<8x128xf32> to vector<8x128xbf16>
    %476 = arith.index_cast %c3_i32_128 : i32 to index
    %c0_135 = arith.constant 0 : index
    %c0_136 = arith.constant 0 : index
    %477 = vector.load %arg6[%476, %c0_135, %c0_136] : memref<8x8x128xbf16, #tpu.memory_space<vmem>>, vector<1x8x128xbf16>
    %478 = vector.shape_cast %477 : vector<1x8x128xbf16> to vector<8x128xbf16>
    %479 = vector.shape_cast %475 : vector<8x128xbf16> to vector<1x8x128xbf16>
    tpu.vector_store %arg6[%476, %c0_135, %c0_136], %479 {strides = array<i32>} : memref<8x8x128xbf16, #tpu.memory_space<vmem>>, vector<1x8x128xbf16>,
    %c4_i32_137 = arith.constant 4 : i32
    %480 = arith.truncf %474 : vector<8x128xf32> to vector<8x128xbf16>
    %cst_138 = arith.constant dense<0.000000e+00> : vector<8x384xf32>
    %481 = tpu.matmul %480, %326, %cst_138 {dimension_numbers = #tpu.dot_dimension_numbers<[1], [0], [0], [1], [0, 0, 1, 1], [], []>} : vector<8x128xbf16>, vector<128x384xbf16>, vector<8x384xf32> -> vector<8x384xf32>
    %482 = arith.index_cast %c4_i32_137 : i32 to index
    %c0_139 = arith.constant 0 : index
    %c0_140 = arith.constant 0 : index
    %483 = vector.load %arg8[%482, %c0_139, %c0_140] : memref<8x8x384xf32, #tpu.memory_space<vmem>>, vector<1x8x384xf32>
    %484 = vector.shape_cast %483 : vector<1x8x384xf32> to vector<8x384xf32>
    %485 = vector.extract_strided_slice %484 {offsets = [0, 0], sizes = [8, 128], strides = [1, 1]} : vector<8x384xf32> to vector<8x128xf32>
    %486 = vector.extract_strided_slice %481 {offsets = [0, 0], sizes = [8, 128], strides = [1, 1]} : vector<8x384xf32> to vector<8x128xf32>
    %487 = arith.addf %485, %486 : vector<8x128xf32>
    %488 = arith.negf %487 : vector<8x128xf32>
    %489 = math.exp %488 : vector<8x128xf32>
    %cst_141 = arith.constant 1.000000e+00 : f32
    %490 = vector.broadcast %cst_141 : f32 to vector<8x128xf32>
    %491 = arith.addf %490, %489 : vector<8x128xf32>
    %492 = arith.divf %490, %491 : vector<8x128xf32>
    %493 = vector.extract_strided_slice %484 {offsets = [0, 128], sizes = [8, 128], strides = [1, 1]} : vector<8x384xf32> to vector<8x128xf32>
    %494 = vector.extract_strided_slice %481 {offsets = [0, 128], sizes = [8, 128], strides = [1, 1]} : vector<8x384xf32> to vector<8x128xf32>
    %495 = arith.addf %493, %494 : vector<8x128xf32>
    %496 = arith.negf %495 : vector<8x128xf32>
    %497 = math.exp %496 : vector<8x128xf32>
    %cst_142 = arith.constant 1.000000e+00 : f32
    %498 = vector.broadcast %cst_142 : f32 to vector<8x128xf32>
    %499 = arith.addf %498, %497 : vector<8x128xf32>
    %500 = arith.divf %498, %499 : vector<8x128xf32>
    %501 = vector.extract_strided_slice %484 {offsets = [0, 256], sizes = [8, 128], strides = [1, 1]} : vector<8x384xf32> to vector<8x128xf32>
    %502 = vector.extract_strided_slice %481 {offsets = [0, 256], sizes = [8, 128], strides = [1, 1]} : vector<8x384xf32> to vector<8x128xf32>
    %503 = arith.addf %502, %330 : vector<8x128xf32>
    %504 = arith.mulf %492, %503 : vector<8x128xf32>
    %505 = arith.addf %501, %504 : vector<8x128xf32>
    %506 = math.tanh %505 : vector<8x128xf32>
    %cst_143 = arith.constant 1.000000e+00 : f32
    %507 = vector.broadcast %cst_143 : f32 to vector<8x128xf32>
    %508 = arith.subf %507, %500 : vector<8x128xf32>
    %509 = arith.mulf %508, %506 : vector<8x128xf32>
    %510 = arith.mulf %500, %474 : vector<8x128xf32>
    %511 = arith.addf %509, %510 : vector<8x128xf32>
    %512 = arith.truncf %511 : vector<8x128xf32> to vector<8x128xbf16>
    %513 = arith.index_cast %c4_i32_137 : i32 to index
    %c0_144 = arith.constant 0 : index
    %c0_145 = arith.constant 0 : index
    %514 = vector.load %arg6[%513, %c0_144, %c0_145] : memref<8x8x128xbf16, #tpu.memory_space<vmem>>, vector<1x8x128xbf16>
    %515 = vector.shape_cast %514 : vector<1x8x128xbf16> to vector<8x128xbf16>
    %516 = vector.shape_cast %512 : vector<8x128xbf16> to vector<1x8x128xbf16>
    tpu.vector_store %arg6[%513, %c0_144, %c0_145], %516 {strides = array<i32>} : memref<8x8x128xbf16, #tpu.memory_space<vmem>>, vector<1x8x128xbf16>,
    %c5_i32_146 = arith.constant 5 : i32
    %517 = arith.truncf %511 : vector<8x128xf32> to vector<8x128xbf16>
    %cst_147 = arith.constant dense<0.000000e+00> : vector<8x384xf32>
    %518 = tpu.matmul %517, %326, %cst_147 {dimension_numbers = #tpu.dot_dimension_numbers<[1], [0], [0], [1], [0, 0, 1, 1], [], []>} : vector<8x128xbf16>, vector<128x384xbf16>, vector<8x384xf32> -> vector<8x384xf32>
    %519 = arith.index_cast %c5_i32_146 : i32 to index
    %c0_148 = arith.constant 0 : index
    %c0_149 = arith.constant 0 : index
    %520 = vector.load %arg8[%519, %c0_148, %c0_149] : memref<8x8x384xf32, #tpu.memory_space<vmem>>, vector<1x8x384xf32>
    %521 = vector.shape_cast %520 : vector<1x8x384xf32> to vector<8x384xf32>
    %522 = vector.extract_strided_slice %521 {offsets = [0, 0], sizes = [8, 128], strides = [1, 1]} : vector<8x384xf32> to vector<8x128xf32>
    %523 = vector.extract_strided_slice %518 {offsets = [0, 0], sizes = [8, 128], strides = [1, 1]} : vector<8x384xf32> to vector<8x128xf32>
    %524 = arith.addf %522, %523 : vector<8x128xf32>
    %525 = arith.negf %524 : vector<8x128xf32>
    %526 = math.exp %525 : vector<8x128xf32>
    %cst_150 = arith.constant 1.000000e+00 : f32
    %527 = vector.broadcast %cst_150 : f32 to vector<8x128xf32>
    %528 = arith.addf %527, %526 : vector<8x128xf32>
    %529 = arith.divf %527, %528 : vector<8x128xf32>
    %530 = vector.extract_strided_slice %521 {offsets = [0, 128], sizes = [8, 128], strides = [1, 1]} : vector<8x384xf32> to vector<8x128xf32>
    %531 = vector.extract_strided_slice %518 {offsets = [0, 128], sizes = [8, 128], strides = [1, 1]} : vector<8x384xf32> to vector<8x128xf32>
    %532 = arith.addf %530, %531 : vector<8x128xf32>
    %533 = arith.negf %532 : vector<8x128xf32>
    %534 = math.exp %533 : vector<8x128xf32>
    %cst_151 = arith.constant 1.000000e+00 : f32
    %535 = vector.broadcast %cst_151 : f32 to vector<8x128xf32>
    %536 = arith.addf %535, %534 : vector<8x128xf32>
    %537 = arith.divf %535, %536 : vector<8x128xf32>
    %538 = vector.extract_strided_slice %521 {offsets = [0, 256], sizes = [8, 128], strides = [1, 1]} : vector<8x384xf32> to vector<8x128xf32>
    %539 = vector.extract_strided_slice %518 {offsets = [0, 256], sizes = [8, 128], strides = [1, 1]} : vector<8x384xf32> to vector<8x128xf32>
    %540 = arith.addf %539, %330 : vector<8x128xf32>
    %541 = arith.mulf %529, %540 : vector<8x128xf32>
    %542 = arith.addf %538, %541 : vector<8x128xf32>
    %543 = math.tanh %542 : vector<8x128xf32>
    %cst_152 = arith.constant 1.000000e+00 : f32
    %544 = vector.broadcast %cst_152 : f32 to vector<8x128xf32>
    %545 = arith.subf %544, %537 : vector<8x128xf32>
    %546 = arith.mulf %545, %543 : vector<8x128xf32>
    %547 = arith.mulf %537, %511 : vector<8x128xf32>
    %548 = arith.addf %546, %547 : vector<8x128xf32>
    %549 = arith.truncf %548 : vector<8x128xf32> to vector<8x128xbf16>
    %550 = arith.index_cast %c5_i32_146 : i32 to index
    %c0_153 = arith.constant 0 : index
    %c0_154 = arith.constant 0 : index
    %551 = vector.load %arg6[%550, %c0_153, %c0_154] : memref<8x8x128xbf16, #tpu.memory_space<vmem>>, vector<1x8x128xbf16>
    %552 = vector.shape_cast %551 : vector<1x8x128xbf16> to vector<8x128xbf16>
    %553 = vector.shape_cast %549 : vector<8x128xbf16> to vector<1x8x128xbf16>
    tpu.vector_store %arg6[%550, %c0_153, %c0_154], %553 {strides = array<i32>} : memref<8x8x128xbf16, #tpu.memory_space<vmem>>, vector<1x8x128xbf16>,
    %c6_i32_155 = arith.constant 6 : i32
    %554 = arith.truncf %548 : vector<8x128xf32> to vector<8x128xbf16>
    %cst_156 = arith.constant dense<0.000000e+00> : vector<8x384xf32>
    %555 = tpu.matmul %554, %326, %cst_156 {dimension_numbers = #tpu.dot_dimension_numbers<[1], [0], [0], [1], [0, 0, 1, 1], [], []>} : vector<8x128xbf16>, vector<128x384xbf16>, vector<8x384xf32> -> vector<8x384xf32>
    %556 = arith.index_cast %c6_i32_155 : i32 to index
    %c0_157 = arith.constant 0 : index
    %c0_158 = arith.constant 0 : index
    %557 = vector.load %arg8[%556, %c0_157, %c0_158] : memref<8x8x384xf32, #tpu.memory_space<vmem>>, vector<1x8x384xf32>
    %558 = vector.shape_cast %557 : vector<1x8x384xf32> to vector<8x384xf32>
    %559 = vector.extract_strided_slice %558 {offsets = [0, 0], sizes = [8, 128], strides = [1, 1]} : vector<8x384xf32> to vector<8x128xf32>
    %560 = vector.extract_strided_slice %555 {offsets = [0, 0], sizes = [8, 128], strides = [1, 1]} : vector<8x384xf32> to vector<8x128xf32>
    %561 = arith.addf %559, %560 : vector<8x128xf32>
    %562 = arith.negf %561 : vector<8x128xf32>
    %563 = math.exp %562 : vector<8x128xf32>
    %cst_159 = arith.constant 1.000000e+00 : f32
    %564 = vector.broadcast %cst_159 : f32 to vector<8x128xf32>
    %565 = arith.addf %564, %563 : vector<8x128xf32>
    %566 = arith.divf %564, %565 : vector<8x128xf32>
    %567 = vector.extract_strided_slice %558 {offsets = [0, 128], sizes = [8, 128], strides = [1, 1]} : vector<8x384xf32> to vector<8x128xf32>
    %568 = vector.extract_strided_slice %555 {offsets = [0, 128], sizes = [8, 128], strides = [1, 1]} : vector<8x384xf32> to vector<8x128xf32>
    %569 = arith.addf %567, %568 : vector<8x128xf32>
    %570 = arith.negf %569 : vector<8x128xf32>
    %571 = math.exp %570 : vector<8x128xf32>
    %cst_160 = arith.constant 1.000000e+00 : f32
    %572 = vector.broadcast %cst_160 : f32 to vector<8x128xf32>
    %573 = arith.addf %572, %571 : vector<8x128xf32>
    %574 = arith.divf %572, %573 : vector<8x128xf32>
    %575 = vector.extract_strided_slice %558 {offsets = [0, 256], sizes = [8, 128], strides = [1, 1]} : vector<8x384xf32> to vector<8x128xf32>
    %576 = vector.extract_strided_slice %555 {offsets = [0, 256], sizes = [8, 128], strides = [1, 1]} : vector<8x384xf32> to vector<8x128xf32>
    %577 = arith.addf %576, %330 : vector<8x128xf32>
    %578 = arith.mulf %566, %577 : vector<8x128xf32>
    %579 = arith.addf %575, %578 : vector<8x128xf32>
    %580 = math.tanh %579 : vector<8x128xf32>
    %cst_161 = arith.constant 1.000000e+00 : f32
    %581 = vector.broadcast %cst_161 : f32 to vector<8x128xf32>
    %582 = arith.subf %581, %574 : vector<8x128xf32>
    %583 = arith.mulf %582, %580 : vector<8x128xf32>
    %584 = arith.mulf %574, %548 : vector<8x128xf32>
    %585 = arith.addf %583, %584 : vector<8x128xf32>
    %586 = arith.truncf %585 : vector<8x128xf32> to vector<8x128xbf16>
    %587 = arith.index_cast %c6_i32_155 : i32 to index
    %c0_162 = arith.constant 0 : index
    %c0_163 = arith.constant 0 : index
    %588 = vector.load %arg6[%587, %c0_162, %c0_163] : memref<8x8x128xbf16, #tpu.memory_space<vmem>>, vector<1x8x128xbf16>
    %589 = vector.shape_cast %588 : vector<1x8x128xbf16> to vector<8x128xbf16>
    %590 = vector.shape_cast %586 : vector<8x128xbf16> to vector<1x8x128xbf16>
    tpu.vector_store %arg6[%587, %c0_162, %c0_163], %590 {strides = array<i32>} : memref<8x8x128xbf16, #tpu.memory_space<vmem>>, vector<1x8x128xbf16>,
    %c7_i32_164 = arith.constant 7 : i32
    %591 = arith.truncf %585 : vector<8x128xf32> to vector<8x128xbf16>
    %cst_165 = arith.constant dense<0.000000e+00> : vector<8x384xf32>
    %592 = tpu.matmul %591, %326, %cst_165 {dimension_numbers = #tpu.dot_dimension_numbers<[1], [0], [0], [1], [0, 0, 1, 1], [], []>} : vector<8x128xbf16>, vector<128x384xbf16>, vector<8x384xf32> -> vector<8x384xf32>
    %593 = arith.index_cast %c7_i32_164 : i32 to index
    %c0_166 = arith.constant 0 : index
    %c0_167 = arith.constant 0 : index
    %594 = vector.load %arg8[%593, %c0_166, %c0_167] : memref<8x8x384xf32, #tpu.memory_space<vmem>>, vector<1x8x384xf32>
    %595 = vector.shape_cast %594 : vector<1x8x384xf32> to vector<8x384xf32>
    %596 = vector.extract_strided_slice %595 {offsets = [0, 0], sizes = [8, 128], strides = [1, 1]} : vector<8x384xf32> to vector<8x128xf32>
    %597 = vector.extract_strided_slice %592 {offsets = [0, 0], sizes = [8, 128], strides = [1, 1]} : vector<8x384xf32> to vector<8x128xf32>
    %598 = arith.addf %596, %597 : vector<8x128xf32>
    %599 = arith.negf %598 : vector<8x128xf32>
    %600 = math.exp %599 : vector<8x128xf32>
    %cst_168 = arith.constant 1.000000e+00 : f32
    %601 = vector.broadcast %cst_168 : f32 to vector<8x128xf32>
    %602 = arith.addf %601, %600 : vector<8x128xf32>
    %603 = arith.divf %601, %602 : vector<8x128xf32>
    %604 = vector.extract_strided_slice %595 {offsets = [0, 128], sizes = [8, 128], strides = [1, 1]} : vector<8x384xf32> to vector<8x128xf32>
    %605 = vector.extract_strided_slice %592 {offsets = [0, 128], sizes = [8, 128], strides = [1, 1]} : vector<8x384xf32> to vector<8x128xf32>
    %606 = arith.addf %604, %605 : vector<8x128xf32>
    %607 = arith.negf %606 : vector<8x128xf32>
    %608 = math.exp %607 : vector<8x128xf32>
    %cst_169 = arith.constant 1.000000e+00 : f32
    %609 = vector.broadcast %cst_169 : f32 to vector<8x128xf32>
    %610 = arith.addf %609, %608 : vector<8x128xf32>
    %611 = arith.divf %609, %610 : vector<8x128xf32>
    %612 = vector.extract_strided_slice %595 {offsets = [0, 256], sizes = [8, 128], strides = [1, 1]} : vector<8x384xf32> to vector<8x128xf32>
    %613 = vector.extract_strided_slice %592 {offsets = [0, 256], sizes = [8, 128], strides = [1, 1]} : vector<8x384xf32> to vector<8x128xf32>
    %614 = arith.addf %613, %330 : vector<8x128xf32>
    %615 = arith.mulf %603, %614 : vector<8x128xf32>
    %616 = arith.addf %612, %615 : vector<8x128xf32>
    %617 = math.tanh %616 : vector<8x128xf32>
    %cst_170 = arith.constant 1.000000e+00 : f32
    %618 = vector.broadcast %cst_170 : f32 to vector<8x128xf32>
    %619 = arith.subf %618, %611 : vector<8x128xf32>
    %620 = arith.mulf %619, %617 : vector<8x128xf32>
    %621 = arith.mulf %611, %585 : vector<8x128xf32>
    %622 = arith.addf %620, %621 : vector<8x128xf32>
    %623 = arith.truncf %622 : vector<8x128xf32> to vector<8x128xbf16>
    %624 = arith.index_cast %c7_i32_164 : i32 to index
    %c0_171 = arith.constant 0 : index
    %c0_172 = arith.constant 0 : index
    %625 = vector.load %arg6[%624, %c0_171, %c0_172] : memref<8x8x128xbf16, #tpu.memory_space<vmem>>, vector<1x8x128xbf16>
    %626 = vector.shape_cast %625 : vector<1x8x128xbf16> to vector<8x128xbf16>
    %627 = vector.shape_cast %623 : vector<8x128xbf16> to vector<1x8x128xbf16>
    tpu.vector_store %arg6[%624, %c0_171, %c0_172], %627 {strides = array<i32>} : memref<8x8x128xbf16, #tpu.memory_space<vmem>>, vector<1x8x128xbf16>,
    %c8_i32_173 = arith.constant 8 : i32
    return
  }
  func.func @transform_0(%arg0: i32) -> (i32, i32, i32) {
    %c0_i32 = arith.constant 0 : i32
    %c0_i32_0 = arith.constant 0 : i32
    %c0_i32_1 = arith.constant 0 : i32
    return %c0_i32, %arg0, %c0_i32_0 : i32, i32, i32
  }
  func.func @transform_1(%arg0: i32) -> (i32, i32, i32) {
    %c0_i32 = arith.constant 0 : i32
    %c0_i32_0 = arith.constant 0 : i32
    %c0_i32_1 = arith.constant 0 : i32
    %c0_i32_2 = arith.constant 0 : i32
    return %c0_i32, %c0_i32_0, %c0_i32_1 : i32, i32, i32
  }
  func.func @transform_2(%arg0: i32) -> (i32, i32, i32) {
    %c0_i32 = arith.constant 0 : i32
    %c0_i32_0 = arith.constant 0 : i32
    %c0_i32_1 = arith.constant 0 : i32
    %c0_i32_2 = arith.constant 0 : i32
    return %c0_i32, %c0_i32_0, %c0_i32_1 : i32, i32, i32
  }
  func.func @transform_3(%arg0: i32) -> (i32, i32, i32) {
    %c0_i32 = arith.constant 0 : i32
    %c0_i32_0 = arith.constant 0 : i32
    %c0_i32_1 = arith.constant 0 : i32
    %c0_i32_2 = arith.constant 0 : i32
    return %c0_i32, %c0_i32_0, %c0_i32_1 : i32, i32, i32
  }
  func.func @transform_4(%arg0: i32) -> (i32, i32, i32) {
    %c0_i32 = arith.constant 0 : i32
    %c0_i32_0 = arith.constant 0 : i32
    %c0_i32_1 = arith.constant 0 : i32
    %c0_i32_2 = arith.constant 0 : i32
    return %c0_i32, %c0_i32_0, %c0_i32_1 : i32, i32, i32
  }
  func.func @transform_5(%arg0: i32) -> (i32, i32, i32) {
    %c0_i32 = arith.constant 0 : i32
    %c0_i32_0 = arith.constant 0 : i32
    %c0_i32_1 = arith.constant 0 : i32
    return %c0_i32, %arg0, %c0_i32_0 : i32, i32, i32
  }
}

</mosaic_0001>

<llo_original>
// kernel: tpu_custom_call.1
$region0: #{tpu_custom_call.1}
  #allocation0 [shape = 'u32[]', space=smem, size = 0x4, offset = 0x4, fixed_abs, tag = 'smem constant byte address 0x4 - core index']
  #allocation1 [shape = 'u32[144,128]{1,0:T(1,128)}', space=vmem, size = 0x12000, scoped, tag = 'internal scratch']
  #allocation2 [shape = 'bf16[8,8,128]{2,1,0:T(8,128)(2,1)}', space=vmem, size = 0x4000, scoped, tag = 'scratch operand']
  #allocation3 [shape = 'f32[8,8,384]{2,1,0:T(8,128)}', space=vmem, size = 0x18000, scoped, tag = 'scratch operand']
  %s0 = inlined_call_operand.hbm [shape: bf16[8,8,128], index: 0, kind: input, shape index: {}]
  %s1 = inlined_call_operand.hbm [shape: bf16[2,128,384], index: 1, kind: input, shape index: {}]
  %s2 = inlined_call_operand.hbm [shape: f32[2,1,384], index: 2, kind: input, shape index: {}]
  %s3 = inlined_call_operand.hbm [shape: bf16[2,128,384], index: 3, kind: input, shape index: {}]
  %s4 = inlined_call_operand.vmem [shape: f32[2,1,128], index: 4, kind: input, shape index: {}]
  %s5 = inlined_call_operand.hbm [shape: bf16[8,8,128], index: 5, kind: output, shape index: {}]
  %s6 = sld [smem:[#allocation0]]
  $region46: #{tpu_custom_call.1} parent=0
    _
  %s8 = ssub.s32 1, %s6
  %s9 = scalar_select 0, %s8, %s6
  $region1: #{tpu_custom_call.1} parent=0
    #allocation4 [shape = 'u8[16384]{0}', space=vmem, size = 0x4000, scoped, tag = 'input window, operand 0, single buffered']
    #allocation5 [shape = 's32[1]{0}', space=sflag, size = 0x4, scoped, tag = 'scoped memory for tpu_custom_call.1']
    #allocation6 [shape = 's32[1]{0}', space=sflag, size = 0x4, scoped, tag = 'scoped memory for tpu_custom_call.1']
    #allocation7 [shape = 'u8[196608]{0}', space=vmem, size = 0x30000, scoped, tag = 'input window, operand 1, single buffered']
    #allocation8 [shape = 's32[1]{0}', space=sflag, size = 0x4, scoped, tag = 'scoped memory for tpu_custom_call.1']
    #allocation9 [shape = 'u8[3072]{0}', space=vmem, size = 0xc00, scoped, tag = 'input window, operand 2, single buffered']
    #allocation10 [shape = 'u8[196608]{0}', space=vmem, size = 0x30000, scoped, tag = 'input window, operand 3, single buffered']
    #allocation11 [shape = 's32[1]{0}', space=sflag, size = 0x4, scoped, tag = 'scoped memory for tpu_custom_call.1']
    #allocation12 [shape = 'u8[16384]{0}', space=vmem, size = 0x4000, scoped, tag = 'output window, operand 0, single buffered']
    %10 = vsyncpa [#allocation5], 0
    %11 = vsyncpa [#allocation8], 0
    %12 = vsyncpa [#allocation11], 0
    %13 = vsyncpa [#allocation6], 0
    // Predicated region
    $region2: #{tpu_custom_call.1} parent=1 // pred_check
      _
    $region3: #{tpu_custom_call.1} parent=1 // pred_check_branch
      %15 = sbr.rel (0) target = $region5
    $region4: #{tpu_custom_call.1} parent=1 // pred_region
      %s17 = ssub.s32 512, 512
      %18 = vsyncadd [#allocation5], %s17
      %s19 = sshll.u32 [#allocation4], 4
      %s20 = int_to_ptr.vmem [resolvable:$true] %s19
      %25 = dma.hbm_to_vmem [thread:$0]  %s0, 512, %s20, [#allocation5], 64, 64, 4
    $region5: #{tpu_custom_call.1} parent=1 // pred_fallthru
      _
    // Predicated region
    $region6: #{tpu_custom_call.1} parent=1 // pred_check
      _
    $region7: #{tpu_custom_call.1} parent=1 // pred_check_branch
      %27 = sbr.rel (0) target = $region9
    $region8: #{tpu_custom_call.1} parent=1 // pred_region
      %s29 = ssub.s32 6144, 6144
      %30 = vsyncadd [#allocation8], %s29
      %s31 = sshll.u32 [#allocation7], 4
      %s32 = int_to_ptr.vmem [resolvable:$true] %s31
      %37 = dma.hbm_to_vmem [thread:$0]  %s1, 6144, %s32, [#allocation8], 192, 192, 12
    $region9: #{tpu_custom_call.1} parent=1 // pred_fallthru
      _
    // Predicated region
    $region10: #{tpu_custom_call.1} parent=1 // pred_check
      _
    $region11: #{tpu_custom_call.1} parent=1 // pred_check_branch
      %39 = sbr.rel (0) target = $region13
    $region12: #{tpu_custom_call.1} parent=1 // pred_region
      %s41 = ssub.s32 96, 96
      %42 = vsyncadd [#allocation8], %s41
      %s43 = sshll.u32 [#allocation9], 4
      %s44 = int_to_ptr.vmem [resolvable:$true] %s43
      %49 = dma.hbm_to_vmem [thread:$0]  %s2, 96, %s44, [#allocation8], 48, 48, 3
    $region13: #{tpu_custom_call.1} parent=1 // pred_fallthru
      _
    // Predicated region
    $region14: #{tpu_custom_call.1} parent=1 // pred_check
      _
    $region15: #{tpu_custom_call.1} parent=1 // pred_check_branch
      %51 = sbr.rel (0) target = $region17
    $region16: #{tpu_custom_call.1} parent=1 // pred_region
      %s53 = ssub.s32 6144, 6144
      %54 = vsyncadd [#allocation11], %s53
      %s55 = sshll.u32 [#allocation10], 4
      %s56 = int_to_ptr.vmem [resolvable:$true] %s55
      %61 = dma.hbm_to_vmem [thread:$0]  %s3, 6144, %s56, [#allocation11], 192, 192, 12
    $region17: #{tpu_custom_call.1} parent=1 // pred_fallthru
      _
    // Predicated region
    $region18: #{tpu_custom_call.1} parent=1 // pred_check
      _
    $region19: #{tpu_custom_call.1} parent=1 // pred_check_branch
      %63 = sbr.rel (0) target = $region21
    $region20: #{tpu_custom_call.1} parent=1 // pred_region
      _
    $region21: #{tpu_custom_call.1} parent=1 // pred_fallthru
      _
    // Predicated region
    $region22: #{tpu_custom_call.1} parent=1 // pred_check
      _
    $region23: #{tpu_custom_call.1} parent=1 // pred_check_branch
      %65 = sbr.rel (0) target = $region25
    $region24: #{tpu_custom_call.1} parent=1 // pred_region
      %66 = dma.done [#allocation5], 512
    $region25: #{tpu_custom_call.1} parent=1 // pred_fallthru
      _
    // Predicated region
    $region26: #{tpu_custom_call.1} parent=1 // pred_check
      _
    $region27: #{tpu_custom_call.1} parent=1 // pred_check_branch
      %68 = sbr.rel (0) target = $region29
    $region28: #{tpu_custom_call.1} parent=1 // pred_region
      %69 = dma.done [#allocation8], 6144
    $region29: #{tpu_custom_call.1} parent=1 // pred_fallthru
      _
    // Predicated region
    $region30: #{tpu_custom_call.1} parent=1 // pred_check
      _
    $region31: #{tpu_custom_call.1} parent=1 // pred_check_branch
      %71 = sbr.rel (0) target = $region33
    $region32: #{tpu_custom_call.1} parent=1 // pred_region
      %72 = dma.done [#allocation8], 96
    $region33: #{tpu_custom_call.1} parent=1 // pred_fallthru
      _
    // Predicated region
    $region34: #{tpu_custom_call.1} parent=1 // pred_check
      _
    $region35: #{tpu_custom_call.1} parent=1 // pred_check_branch
      %74 = sbr.rel (0) target = $region37
    $region36: #{tpu_custom_call.1} parent=1 // pred_region
      %75 = dma.done [#allocation11], 6144
    $region37: #{tpu_custom_call.1} parent=1 // pred_fallthru
      _
    %v77 = vld [vmem:[#allocation4] sm:$0xf]
    %v78 = vld [vmem:[#allocation4 + $0x4] sm:$0xf]
    %v79 = vld [vmem:[#allocation4 + $0x8] sm:$0xf]
    %v80 = vld [vmem:[#allocation4 + $0xc] sm:$0xf]
    %v81 = vld [vmem:[#allocation4 + $0x10] sm:$0xf]
    %v82 = vld [vmem:[#allocation4 + $0x14] sm:$0xf]
    %v83 = vld [vmem:[#allocation4 + $0x18] sm:$0xf]
    %v84 = vld [vmem:[#allocation4 + $0x1c] sm:$0xf]
    %v85 = vld [vmem:[#allocation7] sm:$0xff]
    %v86 = vld [vmem:[#allocation7 + $0x8] sm:$0xf]
    %v87 = vld [vmem:[#allocation7 + $0xc] sm:$0xff]
    %v88 = vld [vmem:[#allocation7 + $0x14] sm:$0xf]
    %v89 = vld [vmem:[#allocation7 + $0x18] sm:$0xff]
    %v90 = vld [vmem:[#allocation7 + $0x20] sm:$0xf]
    %v91 = vld [vmem:[#allocation7 + $0x24] sm:$0xff]
    %v92 = vld [vmem:[#allocation7 + $0x2c] sm:$0xf]
    %v93 = vld [vmem:[#allocation7 + $0x30] sm:$0xff]
    %v94 = vld [vmem:[#allocation7 + $0x38] sm:$0xf]
    %v95 = vld [vmem:[#allocation7 + $0x3c] sm:$0xff]
    %v96 = vld [vmem:[#allocation7 + $0x44] sm:$0xf]
    %v97 = vld [vmem:[#allocation7 + $0x48] sm:$0xff]
    %v98 = vld [vmem:[#allocation7 + $0x50] sm:$0xf]
    %v99 = vld [vmem:[#allocation7 + $0x54] sm:$0xff]
    %v100 = vld [vmem:[#allocation7 + $0x5c] sm:$0xf]
    %v101 = vld [vmem:[#allocation7 + $0x60] sm:$0xff]
    %v102 = vld [vmem:[#allocation7 + $0x68] sm:$0xf]
    %v103 = vld [vmem:[#allocation7 + $0x6c] sm:$0xff]
    %v104 = vld [vmem:[#allocation7 + $0x74] sm:$0xf]
    %v105 = vld [vmem:[#allocation7 + $0x78] sm:$0xff]
    %v106 = vld [vmem:[#allocation7 + $0x80] sm:$0xf]
    %v107 = vld [vmem:[#allocation7 + $0x84] sm:$0xff]
    %v108 = vld [vmem:[#allocation7 + $0x8c] sm:$0xf]
    %v109 = vld [vmem:[#allocation7 + $0x90] sm:$0xff]
    %v110 = vld [vmem:[#allocation7 + $0x98] sm:$0xf]
    %v111 = vld [vmem:[#allocation7 + $0x9c] sm:$0xff]
    %v112 = vld [vmem:[#allocation7 + $0xa4] sm:$0xf]
    %v113 = vld [vmem:[#allocation7 + $0xa8] sm:$0xff]
    %v114 = vld [vmem:[#allocation7 + $0xb0] sm:$0xf]
    %v115 = vld [vmem:[#allocation7 + $0xb4] sm:$0xff]
    %v116 = vld [vmem:[#allocation7 + $0xbc] sm:$0xf]
    %v117 = vld [vmem:[#allocation9] sm:$0x7]
    %v119 = vlaneseq
    %v120 = vshrl.u32 %v119, 7
    %v121 = vsub.s32 0, %v120
    %v122 = vrot.slane %v117, %v121
    %v123 = vlaneseq
    %v124 = vshrl.u32 %v123, 7
    %v125 = vsub.s32 1, %v124
    %v126 = vrot.slane %v117, %v125
    %v127 = vlaneseq
    %v128 = vshrl.u32 %v127, 7
    %v129 = vsub.s32 2, %v128
    %v130 = vrot.slane %v117, %v129
    %v142 = vunpack.c.l.b16 %v77
    %v143 = vunpack.c.l.b16 %v78
    %v144 = vunpack.c.l.b16 %v79
    %v145 = vunpack.c.l.b16 %v80
    %v146 = vunpack.c.l.b16 %v81
    %v147 = vunpack.c.l.b16 %v82
    %v148 = vunpack.c.l.b16 %v83
    %v149 = vunpack.c.l.b16 %v84
    %v150 = vpack.c.b16 %v143, %v142
    %v151 = vpack.c.b16 %v145, %v144
    %v152 = vpack.c.b16 %v147, %v146
    %v153 = vpack.c.b16 %v149, %v148
    %v190 = vunpack.c.l.b16 %v85
    %v191 = vunpack.c.h.b16 %v85
    %v192 = vunpack.c.l.b16 %v86
    %v193 = vunpack.c.l.b16 %v87
    %v194 = vunpack.c.h.b16 %v87
    %v195 = vunpack.c.l.b16 %v88
    %v196 = vunpack.c.l.b16 %v89
    %v197 = vunpack.c.h.b16 %v89
    %v198 = vunpack.c.l.b16 %v90
    %v199 = vunpack.c.l.b16 %v91
    %v200 = vunpack.c.h.b16 %v91
    %v201 = vunpack.c.l.b16 %v92
    %v202 = vunpack.c.l.b16 %v93
    %v203 = vunpack.c.h.b16 %v93
    %v204 = vunpack.c.l.b16 %v94
    %v205 = vunpack.c.l.b16 %v95
    %v206 = vunpack.c.h.b16 %v95
    %v207 = vunpack.c.l.b16 %v96
    %v208 = vunpack.c.l.b16 %v97
    %v209 = vunpack.c.h.b16 %v97
    %v210 = vunpack.c.l.b16 %v98
    %v211 = vunpack.c.l.b16 %v99
    %v212 = vunpack.c.h.b16 %v99
    %v213 = vunpack.c.l.b16 %v100
    %v214 = vunpack.c.l.b16 %v101
    %v215 = vunpack.c.h.b16 %v101
    %v216 = vunpack.c.l.b16 %v102
    %v217 = vunpack.c.l.b16 %v103
    %v218 = vunpack.c.h.b16 %v103
    %v219 = vunpack.c.l.b16 %v104
    %v220 = vunpack.c.l.b16 %v105
    %v221 = vunpack.c.h.b16 %v105
    %v222 = vunpack.c.l.b16 %v106
    %v223 = vunpack.c.l.b16 %v107
    %v224 = vunpack.c.h.b16 %v107
    %v225 = vunpack.c.l.b16 %v108
    %v226 = vunpack.c.l.b16 %v109
    %v227 = vunpack.c.h.b16 %v109
    %v228 = vunpack.c.l.b16 %v110
    %v229 = vunpack.c.l.b16 %v111
    %v230 = vunpack.c.h.b16 %v111
    %v231 = vunpack.c.l.b16 %v112
    %v232 = vunpack.c.l.b16 %v113
    %v233 = vunpack.c.h.b16 %v113
    %v234 = vunpack.c.l.b16 %v114
    %v235 = vunpack.c.l.b16 %v115
    %v236 = vunpack.c.h.b16 %v115
    %v237 = vunpack.c.l.b16 %v116
    %v238 = vpack.c.b16 %v193, %v190
    %v239 = vpack.c.b16 %v194, %v191
    %v240 = vpack.c.b16 %v195, %v192
    %v241 = vpack.c.b16 %v199, %v196
    %v242 = vpack.c.b16 %v200, %v197
    %v243 = vpack.c.b16 %v201, %v198
    %v244 = vpack.c.b16 %v205, %v202
    %v245 = vpack.c.b16 %v206, %v203
    %v246 = vpack.c.b16 %v207, %v204
    %v247 = vpack.c.b16 %v211, %v208
    %v248 = vpack.c.b16 %v212, %v209
    %v249 = vpack.c.b16 %v213, %v210
    %v250 = vpack.c.b16 %v217, %v214
    %v251 = vpack.c.b16 %v218, %v215
    %v252 = vpack.c.b16 %v219, %v216
    %v253 = vpack.c.b16 %v223, %v220
    %v254 = vpack.c.b16 %v224, %v221
    %v255 = vpack.c.b16 %v225, %v222
    %v256 = vpack.c.b16 %v229, %v226
    %v257 = vpack.c.b16 %v230, %v227
    %v258 = vpack.c.b16 %v231, %v228
    %v259 = vpack.c.b16 %v235, %v232
    %v260 = vpack.c.b16 %v236, %v233
    %v261 = vpack.c.b16 %v237, %v234
    %286 = vmatprep.subr.bf16.mxu0 %v260
    %287 = vmatpush1.bf16.msra.mxu0 %v259
    %288 = vmatprep.subr.bf16.mxu0 %v257
    %289 = vmatpush1.bf16.msra.mxu0 %v256
    %290 = vmatprep.subr.bf16.mxu0 %v254
    %291 = vmatpush1.bf16.msra.mxu0 %v253
    %292 = vmatprep.subr.bf16.mxu0 %v251
    %293 = vmatpush1.bf16.msra.mxu0 %v250
    %294 = vmatprep.subr.bf16.mxu0 %v248
    %295 = vmatpush1.bf16.msra.mxu0 %v247
    %296 = vmatprep.subr.bf16.mxu0 %v245
    %297 = vmatpush1.bf16.msra.mxu0 %v244
    %298 = vmatprep.subr.bf16.mxu0 %v242
    %299 = vmatpush1.bf16.msra.mxu0 %v241
    %300 = vmatprep.subr.bf16.mxu0 %v239
    %301 = vmatpush1.bf16.msra.mxu0 %v238
    %302 = vmatprep.subr.bf16.mxu0 0
    %303 = vmatpush2.bf16.msra.mxu0 0
    %304 = vmatprep.subr.bf16.mxu0 0
    %305 = vmatpush2.bf16.msra.mxu0 0
    %306 = vmatprep.subr.bf16.mxu0 0
    %307 = vmatpush2.bf16.msra.mxu0 0
    %308 = vmatprep.subr.bf16.mxu0 0
    %309 = vmatpush2.bf16.msra.mxu0 0
    %310 = vmatprep.subr.bf16.mxu0 0
    %311 = vmatpush2.bf16.msra.mxu0 0
    %312 = vmatprep.subr.bf16.mxu0 0
    %313 = vmatpush2.bf16.msra.mxu0 0
    %314 = vmatprep.subr.bf16.mxu0 0
    %315 = vmatpush2.bf16.msra.mxu0 0
    %316 = vmatprep.subr.bf16.mxu0 0
    %317 = vmatpush2.bf16.msra.mxu0 0
    %318 = vmatprep.mubr.bf16.mxu0 0
    %319 = vmatmul.mubr.bf16.gmra.mxu0 %v150
    %v320 = vpop.f32.mrf.mxu0
    %v321 = vadd.f32 %v122, %v320
    %v322 = vpop.f32.mrf.mxu0
    %v323 = vadd.f32 %v126, %v322
    %v324 = vpop.f32.mrf.mxu0
    %v325 = vadd.f32 %v122, %v324
    %v326 = vpop.f32.mrf.mxu0
    %v327 = vadd.f32 %v126, %v326
    %328 = vmatprep.mubr.bf16.mxu0 0
    %329 = vmatmul.mubr.bf16.gmra.mxu0 %v151
    %v330 = vpop.f32.mrf.mxu0
    %v331 = vadd.f32 %v122, %v330
    %v332 = vpop.f32.mrf.mxu0
    %v333 = vadd.f32 %v126, %v332
    %v334 = vpop.f32.mrf.mxu0
    %v335 = vadd.f32 %v122, %v334
    %v336 = vpop.f32.mrf.mxu0
    %v337 = vadd.f32 %v126, %v336
    %338 = vmatprep.mubr.bf16.mxu0 0
    %339 = vmatmul.mubr.bf16.gmra.mxu0 %v152
    %v340 = vpop.f32.mrf.mxu0
    %v341 = vadd.f32 %v122, %v340
    %v342 = vpop.f32.mrf.mxu0
    %v343 = vadd.f32 %v126, %v342
    %v344 = vpop.f32.mrf.mxu0
    %v345 = vadd.f32 %v122, %v344
    %v346 = vpop.f32.mrf.mxu0
    %v347 = vadd.f32 %v126, %v346
    %348 = vmatprep.mubr.bf16.mxu0 0
    %349 = vmatmul.mubr.bf16.gmra.mxu0 %v153
    %v350 = vpop.f32.mrf.mxu0
    %v351 = vadd.f32 %v122, %v350
    %v352 = vpop.f32.mrf.mxu0
    %v353 = vadd.f32 %v126, %v352
    %v354 = vpop.f32.mrf.mxu0
    %v355 = vadd.f32 %v122, %v354
    %v356 = vpop.f32.mrf.mxu0
    %v357 = vadd.f32 %v126, %v356
    %358 = vdwg.mxu0
    %359 = vmatprep.subr.bf16.mxu0 0
    %360 = vmatpush1.bf16.msra.mxu0 %v261
    %361 = vmatprep.subr.bf16.mxu0 0
    %362 = vmatpush1.bf16.msra.mxu0 %v258
    %363 = vmatprep.subr.bf16.mxu0 0
    %364 = vmatpush1.bf16.msra.mxu0 %v255
    %365 = vmatprep.subr.bf16.mxu0 0
    %366 = vmatpush1.bf16.msra.mxu0 %v252
    %367 = vmatprep.subr.bf16.mxu0 0
    %368 = vmatpush1.bf16.msra.mxu0 %v249
    %369 = vmatprep.subr.bf16.mxu0 0
    %370 = vmatpush1.bf16.msra.mxu0 %v246
    %371 = vmatprep.subr.bf16.mxu0 0
    %372 = vmatpush1.bf16.msra.mxu0 %v243
    %373 = vmatprep.subr.bf16.mxu0 0
    %374 = vmatpush1.bf16.msra.mxu0 %v240
    %375 = vmatprep.subr.bf16.mxu0 0
    %376 = vmatpush2.bf16.msra.mxu0 0
    %377 = vmatprep.subr.bf16.mxu0 0
    %378 = vmatpush2.bf16.msra.mxu0 0
    %379 = vmatprep.subr.bf16.mxu0 0
    %380 = vmatpush2.bf16.msra.mxu0 0
    %381 = vmatprep.subr.bf16.mxu0 0
    %382 = vmatpush2.bf16.msra.mxu0 0
    %383 = vmatprep.subr.bf16.mxu0 0
    %384 = vmatpush2.bf16.msra.mxu0 0
    %385 = vmatprep.subr.bf16.mxu0 0
    %386 = vmatpush2.bf16.msra.mxu0 0
    %387 = vmatprep.subr.bf16.mxu0 0
    %388 = vmatpush2.bf16.msra.mxu0 0
    %389 = vmatprep.subr.bf16.mxu0 0
    %390 = vmatpush2.bf16.msra.mxu0 0
    %391 = vmatprep.mubr.bf16.mxu0 0
    %392 = vmatmul.mubr.bf16.gmra.mxu0 %v150
    %v393 = vpop.f32.mrf.mxu0
    %v394 = vadd.f32 %v130, %v393
    %v395 = vpop.f32.mrf.mxu0
    %v396 = vpop.f32.mrf.mxu0
    %v397 = vadd.f32 %v130, %v396
    %v398 = vpop.f32.mrf.mxu0
    %399 = vmatprep.mubr.bf16.mxu0 0
    %400 = vmatmul.mubr.bf16.gmra.mxu0 %v151
    %v401 = vpop.f32.mrf.mxu0
    %v402 = vadd.f32 %v130, %v401
    %v403 = vpop.f32.mrf.mxu0
    %v404 = vpop.f32.mrf.mxu0
    %v405 = vadd.f32 %v130, %v404
    %v406 = vpop.f32.mrf.mxu0
    %407 = vmatprep.mubr.bf16.mxu0 0
    %408 = vmatmul.mubr.bf16.gmra.mxu0 %v152
    %v409 = vpop.f32.mrf.mxu0
    %v410 = vadd.f32 %v130, %v409
    %v411 = vpop.f32.mrf.mxu0
    %v412 = vpop.f32.mrf.mxu0
    %v413 = vadd.f32 %v130, %v412
    %v414 = vpop.f32.mrf.mxu0
    %415 = vmatprep.mubr.bf16.mxu0 0
    %416 = vmatmul.mubr.bf16.gmra.mxu0 %v153
    %v417 = vpop.f32.mrf.mxu0
    %v418 = vadd.f32 %v130, %v417
    %v419 = vpop.f32.mrf.mxu0
    %v420 = vpop.f32.mrf.mxu0
    %v421 = vadd.f32 %v130, %v420
    %v422 = vpop.f32.mrf.mxu0
    %423 = vdwg.mxu0
    %424 = vst [vmem:[#allocation3] sm:$0xff] %v321
    %425 = vst [vmem:[#allocation3 + $0x8] sm:$0xff] %v323
    %426 = vst [vmem:[#allocation3 + $0x10] sm:$0xff] %v394
    %427 = vst [vmem:[#allocation3 + $0x18] sm:$0xff] %v325
    %428 = vst [vmem:[#allocation3 + $0x20] sm:$0xff] %v327
    %429 = vst [vmem:[#allocation3 + $0x28] sm:$0xff] %v397
    %430 = vst [vmem:[#allocation3 + $0x30] sm:$0xff] %v331
    %431 = vst [vmem:[#allocation3 + $0x38] sm:$0xff] %v333
    %432 = vst [vmem:[#allocation3 + $0x40] sm:$0xff] %v402
    %433 = vst [vmem:[#allocation3 + $0x48] sm:$0xff] %v335
    %434 = vst [vmem:[#allocation3 + $0x50] sm:$0xff] %v337
    %435 = vst [vmem:[#allocation3 + $0x58] sm:$0xff] %v405
    %436 = vst [vmem:[#allocation3 + $0x60] sm:$0xff] %v341
    %437 = vst [vmem:[#allocation3 + $0x68] sm:$0xff] %v343
    %438 = vst [vmem:[#allocation3 + $0x70] sm:$0xff] %v410
    %439 = vst [vmem:[#allocation3 + $0x78] sm:$0xff] %v345
    %440 = vst [vmem:[#allocation3 + $0x80] sm:$0xff] %v347
    %441 = vst [vmem:[#allocation3 + $0x88] sm:$0xff] %v413
    %442 = vst [vmem:[#allocation3 + $0x90] sm:$0xff] %v351
    %443 = vst [vmem:[#allocation3 + $0x98] sm:$0xff] %v353
    %444 = vst [vmem:[#allocation3 + $0xa0] sm:$0xff] %v418
    %445 = vst [vmem:[#allocation3 + $0xa8] sm:$0xff] %v355
    %446 = vst [vmem:[#allocation3 + $0xb0] sm:$0xff] %v357
    %447 = vst [vmem:[#allocation3 + $0xb8] sm:$0xff] %v421
    %v448 = vld [vmem:[#allocation10] sm:$0xff]
    %v449 = vld [vmem:[#allocation10 + $0x8] sm:$0xf]
    %v450 = vld [vmem:[#allocation10 + $0xc] sm:$0xff]
    %v451 = vld [vmem:[#allocation10 + $0x14] sm:$0xf]
    %v452 = vld [vmem:[#allocation10 + $0x18] sm:$0xff]
    %v453 = vld [vmem:[#allocation10 + $0x20] sm:$0xf]
    %v454 = vld [vmem:[#allocation10 + $0x24] sm:$0xff]
    %v455 = vld [vmem:[#allocation10 + $0x2c] sm:$0xf]
    %v456 = vld [vmem:[#allocation10 + $0x30] sm:$0xff]
    %v457 = vld [vmem:[#allocation10 + $0x38] sm:$0xf]
    %v458 = vld [vmem:[#allocation10 + $0x3c] sm:$0xff]
    %v459 = vld [vmem:[#allocation10 + $0x44] sm:$0xf]
    %v460 = vld [vmem:[#allocation10 + $0x48] sm:$0xff]
    %v461 = vld [vmem:[#allocation10 + $0x50] sm:$0xf]
    %v462 = vld [vmem:[#allocation10 + $0x54] sm:$0xff]
    %v463 = vld [vmem:[#allocation10 + $0x5c] sm:$0xf]
    %v464 = vld [vmem:[#allocation10 + $0x60] sm:$0xff]
    %v465 = vld [vmem:[#allocation10 + $0x68] sm:$0xf]
    %v466 = vld [vmem:[#allocation10 + $0x6c] sm:$0xff]
    %v467 = vld [vmem:[#allocation10 + $0x74] sm:$0xf]
    %v468 = vld [vmem:[#allocation10 + $0x78] sm:$0xff]
    %v469 = vld [vmem:[#allocation10 + $0x80] sm:$0xf]
    %v470 = vld [vmem:[#allocation10 + $0x84] sm:$0xff]
    %v471 = vld [vmem:[#allocation10 + $0x8c] sm:$0xf]
    %v472 = vld [vmem:[#allocation10 + $0x90] sm:$0xff]
    %v473 = vld [vmem:[#allocation10 + $0x98] sm:$0xf]
    %v474 = vld [vmem:[#allocation10 + $0x9c] sm:$0xff]
    %v475 = vld [vmem:[#allocation10 + $0xa4] sm:$0xf]
    %v476 = vld [vmem:[#allocation10 + $0xa8] sm:$0xff]
    %v477 = vld [vmem:[#allocation10 + $0xb0] sm:$0xf]
    %v478 = vld [vmem:[#allocation10 + $0xb4] sm:$0xff]
    %v479 = vld [vmem:[#allocation10 + $0xbc] sm:$0xf]
    %v480 = vld [vmem:[%s4] sm:$0x1]
    %v482 = vlaneseq
    %v483 = vshrl.u32 %v482, 7
    %v484 = vsub.s32 0, %v483
    %v485 = vrot.slane %v480, %v484
    %v519 = vunpack.c.l.b16 %v448
    %v520 = vunpack.c.h.b16 %v448
    %v521 = vunpack.c.l.b16 %v449
    %v522 = vunpack.c.l.b16 %v450
    %v523 = vunpack.c.h.b16 %v450
    %v524 = vunpack.c.l.b16 %v451
    %v525 = vunpack.c.l.b16 %v452
    %v526 = vunpack.c.h.b16 %v452
    %v527 = vunpack.c.l.b16 %v453
    %v528 = vunpack.c.l.b16 %v454
    %v529 = vunpack.c.h.b16 %v454
    %v530 = vunpack.c.l.b16 %v455
    %v531 = vunpack.c.l.b16 %v456
    %v532 = vunpack.c.h.b16 %v456
    %v533 = vunpack.c.l.b16 %v457
    %v534 = vunpack.c.l.b16 %v458
    %v535 = vunpack.c.h.b16 %v458
    %v536 = vunpack.c.l.b16 %v459
    %v537 = vunpack.c.l.b16 %v460
    %v538 = vunpack.c.h.b16 %v460
    %v539 = vunpack.c.l.b16 %v461
    %v540 = vunpack.c.l.b16 %v462
    %v541 = vunpack.c.h.b16 %v462
    %v542 = vunpack.c.l.b16 %v463
    %v543 = vunpack.c.l.b16 %v464
    %v544 = vunpack.c.h.b16 %v464
    %v545 = vunpack.c.l.b16 %v465
    %v546 = vunpack.c.l.b16 %v466
    %v547 = vunpack.c.h.b16 %v466
    %v548 = vunpack.c.l.b16 %v467
    %v549 = vunpack.c.l.b16 %v468
    %v550 = vunpack.c.h.b16 %v468
    %v551 = vunpack.c.l.b16 %v469
    %v552 = vunpack.c.l.b16 %v470
    %v553 = vunpack.c.h.b16 %v470
    %v554 = vunpack.c.l.b16 %v471
    %v555 = vunpack.c.l.b16 %v472
    %v556 = vunpack.c.h.b16 %v472
    %v557 = vunpack.c.l.b16 %v473
    %v558 = vunpack.c.l.b16 %v474
    %v559 = vunpack.c.h.b16 %v474
    %v560 = vunpack.c.l.b16 %v475
    %v561 = vunpack.c.l.b16 %v476
    %v562 = vunpack.c.h.b16 %v476
    %v563 = vunpack.c.l.b16 %v477
    %v564 = vunpack.c.l.b16 %v478
    %v565 = vunpack.c.h.b16 %v478
    %v566 = vunpack.c.l.b16 %v479
    %v567 = vpack.c.b16 %v522, %v519
    %v568 = vpack.c.b16 %v523, %v520
    %v569 = vpack.c.b16 %v524, %v521
    %v570 = vpack.c.b16 %v528, %v525
    %v571 = vpack.c.b16 %v529, %v526
    %v572 = vpack.c.b16 %v530, %v527
    %v573 = vpack.c.b16 %v534, %v531
    %v574 = vpack.c.b16 %v535, %v532
    %v575 = vpack.c.b16 %v536, %v533
    %v576 = vpack.c.b16 %v540, %v537
    %v577 = vpack.c.b16 %v541, %v538
    %v578 = vpack.c.b16 %v542, %v539
    %v579 = vpack.c.b16 %v546, %v543
    %v580 = vpack.c.b16 %v547, %v544
    %v581 = vpack.c.b16 %v548, %v545
    %v582 = vpack.c.b16 %v552, %v549
    %v583 = vpack.c.b16 %v553, %v550
    %v584 = vpack.c.b16 %v554, %v551
    %v585 = vpack.c.b16 %v558, %v555
    %v586 = vpack.c.b16 %v559, %v556
    %v587 = vpack.c.b16 %v560, %v557
    %v588 = vpack.c.b16 %v564, %v561
    %v589 = vpack.c.b16 %v565, %v562
    %v590 = vpack.c.b16 %v566, %v563
    %615 = vmatprep.subr.bf16.mxu0 %v589
    %616 = vmatpush1.bf16.msra.mxu0 %v588
    %617 = vmatprep.subr.bf16.mxu0 %v586
    %618 = vmatpush1.bf16.msra.mxu0 %v585
    %619 = vmatprep.subr.bf16.mxu0 %v583
    %620 = vmatpush1.bf16.msra.mxu0 %v582
    %621 = vmatprep.subr.bf16.mxu0 %v580
    %622 = vmatpush1.bf16.msra.mxu0 %v579
    %623 = vmatprep.subr.bf16.mxu0 %v577
    %624 = vmatpush1.bf16.msra.mxu0 %v576
    %625 = vmatprep.subr.bf16.mxu0 %v574
    %626 = vmatpush1.bf16.msra.mxu0 %v573
    %627 = vmatprep.subr.bf16.mxu0 %v571
    %628 = vmatpush1.bf16.msra.mxu0 %v570
    %629 = vmatprep.subr.bf16.mxu0 %v568
    %630 = vmatpush1.bf16.msra.mxu0 %v567
    %631 = vmatprep.subr.bf16.mxu0 0
    %632 = vmatpush2.bf16.msra.mxu0 0
    %633 = vmatprep.subr.bf16.mxu0 0
    %634 = vmatpush2.bf16.msra.mxu0 0
    %635 = vmatprep.subr.bf16.mxu0 0
    %636 = vmatpush2.bf16.msra.mxu0 0
    %637 = vmatprep.subr.bf16.mxu0 0
    %638 = vmatpush2.bf16.msra.mxu0 0
    %639 = vmatprep.subr.bf16.mxu0 0
    %640 = vmatpush2.bf16.msra.mxu0 0
    %641 = vmatprep.subr.bf16.mxu0 0
    %642 = vmatpush2.bf16.msra.mxu0 0
    %643 = vmatprep.subr.bf16.mxu0 0
    %644 = vmatpush2.bf16.msra.mxu0 0
    %645 = vmatprep.subr.bf16.mxu0 0
    %646 = vmatpush2.bf16.msra.mxu0 0
    %647 = vmatprep.mubr.bf16.mxu0 0
    %648 = vmatmul.mubr.bf16.gmra.mxu0 0
    %v649 = vpop.f32.mrf.mxu0
    %v650 = vadd.f32 0.0, %v649
    %v651 = vpop.f32.mrf.mxu0
    %v652 = vadd.f32 0.0, %v651
    %v653 = vpop.f32.mrf.mxu0
    %v654 = vpop.f32.mrf.mxu0
    %655 = vdwg.mxu0
    %656 = vmatprep.subr.bf16.mxu0 0
    %657 = vmatpush1.bf16.msra.mxu0 %v590
    %658 = vmatprep.subr.bf16.mxu0 0
    %659 = vmatpush1.bf16.msra.mxu0 %v587
    %660 = vmatprep.subr.bf16.mxu0 0
    %661 = vmatpush1.bf16.msra.mxu0 %v584
    %662 = vmatprep.subr.bf16.mxu0 0
    %663 = vmatpush1.bf16.msra.mxu0 %v581
    %664 = vmatprep.subr.bf16.mxu0 0
    %665 = vmatpush1.bf16.msra.mxu0 %v578
    %666 = vmatprep.subr.bf16.mxu0 0
    %667 = vmatpush1.bf16.msra.mxu0 %v575
    %668 = vmatprep.subr.bf16.mxu0 0
    %669 = vmatpush1.bf16.msra.mxu0 %v572
    %670 = vmatprep.subr.bf16.mxu0 0
    %671 = vmatpush1.bf16.msra.mxu0 %v569
    %672 = vmatprep.subr.bf16.mxu0 0
    %673 = vmatpush2.bf16.msra.mxu0 0
    %674 = vmatprep.subr.bf16.mxu0 0
    %675 = vmatpush2.bf16.msra.mxu0 0
    %676 = vmatprep.subr.bf16.mxu0 0
    %677 = vmatpush2.bf16.msra.mxu0 0
    %678 = vmatprep.subr.bf16.mxu0 0
    %679 = vmatpush2.bf16.msra.mxu0 0
    %680 = vmatprep.subr.bf16.mxu0 0
    %681 = vmatpush2.bf16.msra.mxu0 0
    %682 = vmatprep.subr.bf16.mxu0 0
    %683 = vmatpush2.bf16.msra.mxu0 0
    %684 = vmatprep.subr.bf16.mxu0 0
    %685 = vmatpush2.bf16.msra.mxu0 0
    %686 = vmatprep.subr.bf16.mxu0 0
    %687 = vmatpush2.bf16.msra.mxu0 0
    %688 = vmatprep.mubr.bf16.mxu0 0
    %689 = vmatmul.mubr.bf16.gmra.mxu0 0
    %v690 = vpop.f32.mrf.mxu0
    %v691 = vadd.f32 0.0, %v690
    %v692 = vpop.f32.mrf.mxu0
    %v693 = vpop.f32.mrf.mxu0
    %v694 = vpop.f32.mrf.mxu0
    %695 = vdwg.mxu0
    %v696 = vld [vmem:[#allocation3] sm:$0xff]
    %v697 = vld [vmem:[#allocation3 + $0x8] sm:$0xff]
    %v698 = vld [vmem:[#allocation3 + $0x10] sm:$0xff]
    %v699 = vadd.f32 %v696, %v650
    %v700 = vxor.u32 %v699, 2147483648
    %v701 = vmul.f32 %v700, 1.442695
    %v702 = vpow.pop %v701
    %v703 = vadd.f32 %v702, 1.0
    %v704 = vrcp.pop %v703
    %v705 = vmul.f32 1.0, %v704
    %v706 = vadd.f32 %v697, %v652
    %v707 = vxor.u32 %v706, 2147483648
    %v708 = vmul.f32 %v707, 1.442695
    %v709 = vpow.pop %v708
    %v710 = vadd.f32 %v709, 1.0
    %v711 = vrcp.pop %v710
    %v712 = vmul.f32 1.0, %v711
    %v713 = vadd.f32 %v691, %v485
    %v714 = vmul.f32 %v705, %v713
    %v715 = vadd.f32 %v698, %v714
    %v716 = vtanh.pop %v715
    %v717 = vsub.f32 1.0, %v712
    %v718 = vmul.f32 %v717, %v716
    %v719 = vmul.f32 %v712, 0.0
    %v720 = vadd.f32 %v718, %v719
    %v721 = vpack.c.bf16 %v720, %v720
    %722 = vst [vmem:[#allocation2] sm:$0xf] %v721
    %723 = vmatprep.subr.bf16.mxu0 %v589
    %724 = vmatpush1.bf16.msra.mxu0 %v588
    %725 = vmatprep.subr.bf16.mxu0 %v586
    %726 = vmatpush1.bf16.msra.mxu0 %v585
    %727 = vmatprep.subr.bf16.mxu0 %v583
    %728 = vmatpush1.bf16.msra.mxu0 %v582
    %729 = vmatprep.subr.bf16.mxu0 %v580
    %730 = vmatpush1.bf16.msra.mxu0 %v579
    %731 = vmatprep.subr.bf16.mxu0 %v577
    %732 = vmatpush1.bf16.msra.mxu0 %v576
    %733 = vmatprep.subr.bf16.mxu0 %v574
    %734 = vmatpush1.bf16.msra.mxu0 %v573
    %735 = vmatprep.subr.bf16.mxu0 %v571
    %736 = vmatpush1.bf16.msra.mxu0 %v570
    %737 = vmatprep.subr.bf16.mxu0 %v568
    %738 = vmatpush1.bf16.msra.mxu0 %v567
    %739 = vmatprep.subr.bf16.mxu0 0
    %740 = vmatpush2.bf16.msra.mxu0 0
    %741 = vmatprep.subr.bf16.mxu0 0
    %742 = vmatpush2.bf16.msra.mxu0 0
    %743 = vmatprep.subr.bf16.mxu0 0
    %744 = vmatpush2.bf16.msra.mxu0 0
    %745 = vmatprep.subr.bf16.mxu0 0
    %746 = vmatpush2.bf16.msra.mxu0 0
    %747 = vmatprep.subr.bf16.mxu0 0
    %748 = vmatpush2.bf16.msra.mxu0 0
    %749 = vmatprep.subr.bf16.mxu0 0
    %750 = vmatpush2.bf16.msra.mxu0 0
    %751 = vmatprep.subr.bf16.mxu0 0
    %752 = vmatpush2.bf16.msra.mxu0 0
    %753 = vmatprep.subr.bf16.mxu0 0
    %754 = vmatpush2.bf16.msra.mxu0 0
    %755 = vmatprep.mubr.bf16.mxu0 0
    %756 = vmatmul.mubr.bf16.gmra.mxu0 %v721
    %v757 = vpop.f32.mrf.mxu0
    %v758 = vadd.f32 0.0, %v757
    %v759 = vpop.f32.mrf.mxu0
    %v760 = vadd.f32 0.0, %v759
    %v761 = vpop.f32.mrf.mxu0
    %v762 = vpop.f32.mrf.mxu0
    %763 = vdwg.mxu0
    %764 = vmatprep.subr.bf16.mxu0 0
    %765 = vmatpush1.bf16.msra.mxu0 %v590
    %766 = vmatprep.subr.bf16.mxu0 0
    %767 = vmatpush1.bf16.msra.mxu0 %v587
    %768 = vmatprep.subr.bf16.mxu0 0
    %769 = vmatpush1.bf16.msra.mxu0 %v584
    %770 = vmatprep.subr.bf16.mxu0 0
    %771 = vmatpush1.bf16.msra.mxu0 %v581
    %772 = vmatprep.subr.bf16.mxu0 0
    %773 = vmatpush1.bf16.msra.mxu0 %v578
    %774 = vmatprep.subr.bf16.mxu0 0
    %775 = vmatpush1.bf16.msra.mxu0 %v575
    %776 = vmatprep.subr.bf16.mxu0 0
    %777 = vmatpush1.bf16.msra.mxu0 %v572
    %778 = vmatprep.subr.bf16.mxu0 0
    %779 = vmatpush1.bf16.msra.mxu0 %v569
    %780 = vmatprep.subr.bf16.mxu0 0
    %781 = vmatpush2.bf16.msra.mxu0 0
    %782 = vmatprep.subr.bf16.mxu0 0
    %783 = vmatpush2.bf16.msra.mxu0 0
    %784 = vmatprep.subr.bf16.mxu0 0
    %785 = vmatpush2.bf16.msra.mxu0 0
    %786 = vmatprep.subr.bf16.mxu0 0
    %787 = vmatpush2.bf16.msra.mxu0 0
    %788 = vmatprep.subr.bf16.mxu0 0
    %789 = vmatpush2.bf16.msra.mxu0 0
    %790 = vmatprep.subr.bf16.mxu0 0
    %791 = vmatpush2.bf16.msra.mxu0 0
    %792 = vmatprep.subr.bf16.mxu0 0
    %793 = vmatpush2.bf16.msra.mxu0 0
    %794 = vmatprep.subr.bf16.mxu0 0
    %795 = vmatpush2.bf16.msra.mxu0 0
    %796 = vmatprep.mubr.bf16.mxu0 0
    %797 = vmatmul.mubr.bf16.gmra.mxu0 %v721
    %v798 = vpop.f32.mrf.mxu0
    %v799 = vadd.f32 0.0, %v798
    %v800 = vpop.f32.mrf.mxu0
    %v801 = vpop.f32.mrf.mxu0
    %v802 = vpop.f32.mrf.mxu0
    %803 = vdwg.mxu0
    %s804 = scalar_lea.vmem [#allocation3], 24
    %v805 = vld [vmem:[%s804] sm:$0xff]
    %v806 = vld [vmem:[%s804 + $0x8] sm:$0xff]
    %v807 = vld [vmem:[%s804 + $0x10] sm:$0xff]
    %v808 = vadd.f32 %v805, %v758
    %v809 = vxor.u32 %v808, 2147483648
    %v810 = vmul.f32 %v809, 1.442695
    %v811 = vpow.pop %v810
    %v812 = vadd.f32 %v811, 1.0
    %v813 = vrcp.pop %v812
    %v814 = vmul.f32 1.0, %v813
    %v815 = vadd.f32 %v806, %v760
    %v816 = vxor.u32 %v815, 2147483648
    %v817 = vmul.f32 %v816, 1.442695
    %v818 = vpow.pop %v817
    %v819 = vadd.f32 %v818, 1.0
    %v820 = vrcp.pop %v819
    %v821 = vmul.f32 1.0, %v820
    %v822 = vadd.f32 %v799, %v485
    %v823 = vmul.f32 %v814, %v822
    %v824 = vadd.f32 %v807, %v823
    %v825 = vtanh.pop %v824
    %v826 = vsub.f32 1.0, %v821
    %v827 = vmul.f32 %v826, %v825
    %v828 = vmul.f32 %v821, %v720
    %v829 = vadd.f32 %v827, %v828
    %v830 = vpack.c.bf16 %v829, %v829
    %s831 = scalar_lea.vmem [#allocation2], 4
    %832 = vst [vmem:[%s831] sm:$0xf] %v830
    %833 = vmatprep.subr.bf16.mxu0 %v589
    %834 = vmatpush1.bf16.msra.mxu0 %v588
    %835 = vmatprep.subr.bf16.mxu0 %v586
    %836 = vmatpush1.bf16.msra.mxu0 %v585
    %837 = vmatprep.subr.bf16.mxu0 %v583
    %838 = vmatpush1.bf16.msra.mxu0 %v582
    %839 = vmatprep.subr.bf16.mxu0 %v580
    %840 = vmatpush1.bf16.msra.mxu0 %v579
    %841 = vmatprep.subr.bf16.mxu0 %v577
    %842 = vmatpush1.bf16.msra.mxu0 %v576
    %843 = vmatprep.subr.bf16.mxu0 %v574
    %844 = vmatpush1.bf16.msra.mxu0 %v573
    %845 = vmatprep.subr.bf16.mxu0 %v571
    %846 = vmatpush1.bf16.msra.mxu0 %v570
    %847 = vmatprep.subr.bf16.mxu0 %v568
    %848 = vmatpush1.bf16.msra.mxu0 %v567
    %849 = vmatprep.subr.bf16.mxu0 0
    %850 = vmatpush2.bf16.msra.mxu0 0
    %851 = vmatprep.subr.bf16.mxu0 0
    %852 = vmatpush2.bf16.msra.mxu0 0
    %853 = vmatprep.subr.bf16.mxu0 0
    %854 = vmatpush2.bf16.msra.mxu0 0
    %855 = vmatprep.subr.bf16.mxu0 0
    %856 = vmatpush2.bf16.msra.mxu0 0
    %857 = vmatprep.subr.bf16.mxu0 0
    %858 = vmatpush2.bf16.msra.mxu0 0
    %859 = vmatprep.subr.bf16.mxu0 0
    %860 = vmatpush2.bf16.msra.mxu0 0
    %861 = vmatprep.subr.bf16.mxu0 0
    %862 = vmatpush2.bf16.msra.mxu0 0
    %863 = vmatprep.subr.bf16.mxu0 0
    %864 = vmatpush2.bf16.msra.mxu0 0
    %865 = vmatprep.mubr.bf16.mxu0 0
    %866 = vmatmul.mubr.bf16.gmra.mxu0 %v830
    %v867 = vpop.f32.mrf.mxu0
    %v868 = vadd.f32 0.0, %v867
    %v869 = vpop.f32.mrf.mxu0
    %v870 = vadd.f32 0.0, %v869
    %v871 = vpop.f32.mrf.mxu0
    %v872 = vpop.f32.mrf.mxu0
    %873 = vdwg.mxu0
    %874 = vmatprep.subr.bf16.mxu0 0
    %875 = vmatpush1.bf16.msra.mxu0 %v590
    %876 = vmatprep.subr.bf16.mxu0 0
    %877 = vmatpush1.bf16.msra.mxu0 %v587
    %878 = vmatprep.subr.bf16.mxu0 0
    %879 = vmatpush1.bf16.msra.mxu0 %v584
    %880 = vmatprep.subr.bf16.mxu0 0
    %881 = vmatpush1.bf16.msra.mxu0 %v581
    %882 = vmatprep.subr.bf16.mxu0 0
    %883 = vmatpush1.bf16.msra.mxu0 %v578
    %884 = vmatprep.subr.bf16.mxu0 0
    %885 = vmatpush1.bf16.msra.mxu0 %v575
    %886 = vmatprep.subr.bf16.mxu0 0
    %887 = vmatpush1.bf16.msra.mxu0 %v572
    %888 = vmatprep.subr.bf16.mxu0 0
    %889 = vmatpush1.bf16.msra.mxu0 %v569
    %890 = vmatprep.subr.bf16.mxu0 0
    %891 = vmatpush2.bf16.msra.mxu0 0
    %892 = vmatprep.subr.bf16.mxu0 0
    %893 = vmatpush2.bf16.msra.mxu0 0
    %894 = vmatprep.subr.bf16.mxu0 0
    %895 = vmatpush2.bf16.msra.mxu0 0
    %896 = vmatprep.subr.bf16.mxu0 0
    %897 = vmatpush2.bf16.msra.mxu0 0
    %898 = vmatprep.subr.bf16.mxu0 0
    %899 = vmatpush2.bf16.msra.mxu0 0
    %900 = vmatprep.subr.bf16.mxu0 0
    %901 = vmatpush2.bf16.msra.mxu0 0
    %902 = vmatprep.subr.bf16.mxu0 0
    %903 = vmatpush2.bf16.msra.mxu0 0
    %904 = vmatprep.subr.bf16.mxu0 0
    %905 = vmatpush2.bf16.msra.mxu0 0
    %906 = vmatprep.mubr.bf16.mxu0 0
    %907 = vmatmul.mubr.bf16.gmra.mxu0 %v830
    %v908 = vpop.f32.mrf.mxu0
    %v909 = vadd.f32 0.0, %v908
    %v910 = vpop.f32.mrf.mxu0
    %v911 = vpop.f32.mrf.mxu0
    %v912 = vpop.f32.mrf.mxu0
    %913 = vdwg.mxu0
    %s914 = scalar_lea.vmem [#allocation3], 48
    %v915 = vld [vmem:[%s914] sm:$0xff]
    %v916 = vld [vmem:[%s914 + $0x8] sm:$0xff]
    %v917 = vld [vmem:[%s914 + $0x10] sm:$0xff]
    %v918 = vadd.f32 %v915, %v868
    %v919 = vxor.u32 %v918, 2147483648
    %v920 = vmul.f32 %v919, 1.442695
    %v921 = vpow.pop %v920
    %v922 = vadd.f32 %v921, 1.0
    %v923 = vrcp.pop %v922
    %v924 = vmul.f32 1.0, %v923
    %v925 = vadd.f32 %v916, %v870
    %v926 = vxor.u32 %v925, 2147483648
    %v927 = vmul.f32 %v926, 1.442695
    %v928 = vpow.pop %v927
    %v929 = vadd.f32 %v928, 1.0
    %v930 = vrcp.pop %v929
    %v931 = vmul.f32 1.0, %v930
    %v932 = vadd.f32 %v909, %v485
    %v933 = vmul.f32 %v924, %v932
    %v934 = vadd.f32 %v917, %v933
    %v935 = vtanh.pop %v934
    %v936 = vsub.f32 1.0, %v931
    %v937 = vmul.f32 %v936, %v935
    %v938 = vmul.f32 %v931, %v829
    %v939 = vadd.f32 %v937, %v938
    %v940 = vpack.c.bf16 %v939, %v939
    %s941 = scalar_lea.vmem [#allocation2], 8
    %942 = vst [vmem:[%s941] sm:$0xf] %v940
    %943 = vmatprep.subr.bf16.mxu0 %v589
    %944 = vmatpush1.bf16.msra.mxu0 %v588
    %945 = vmatprep.subr.bf16.mxu0 %v586
    %946 = vmatpush1.bf16.msra.mxu0 %v585
    %947 = vmatprep.subr.bf16.mxu0 %v583
    %948 = vmatpush1.bf16.msra.mxu0 %v582
    %949 = vmatprep.subr.bf16.mxu0 %v580
    %950 = vmatpush1.bf16.msra.mxu0 %v579
    %951 = vmatprep.subr.bf16.mxu0 %v577
    %952 = vmatpush1.bf16.msra.mxu0 %v576
    %953 = vmatprep.subr.bf16.mxu0 %v574
    %954 = vmatpush1.bf16.msra.mxu0 %v573
    %955 = vmatprep.subr.bf16.mxu0 %v571
    %956 = vmatpush1.bf16.msra.mxu0 %v570
    %957 = vmatprep.subr.bf16.mxu0 %v568
    %958 = vmatpush1.bf16.msra.mxu0 %v567
    %959 = vmatprep.subr.bf16.mxu0 0
    %960 = vmatpush2.bf16.msra.mxu0 0
    %961 = vmatprep.subr.bf16.mxu0 0
    %962 = vmatpush2.bf16.msra.mxu0 0
    %963 = vmatprep.subr.bf16.mxu0 0
    %964 = vmatpush2.bf16.msra.mxu0 0
    %965 = vmatprep.subr.bf16.mxu0 0
    %966 = vmatpush2.bf16.msra.mxu0 0
    %967 = vmatprep.subr.bf16.mxu0 0
    %968 = vmatpush2.bf16.msra.mxu0 0
    %969 = vmatprep.subr.bf16.mxu0 0
    %970 = vmatpush2.bf16.msra.mxu0 0
    %971 = vmatprep.subr.bf16.mxu0 0
    %972 = vmatpush2.bf16.msra.mxu0 0
    %973 = vmatprep.subr.bf16.mxu0 0
    %974 = vmatpush2.bf16.msra.mxu0 0
    %975 = vmatprep.mubr.bf16.mxu0 0
    %976 = vmatmul.mubr.bf16.gmra.mxu0 %v940
    %v977 = vpop.f32.mrf.mxu0
    %v978 = vadd.f32 0.0, %v977
    %v979 = vpop.f32.mrf.mxu0
    %v980 = vadd.f32 0.0, %v979
    %v981 = vpop.f32.mrf.mxu0
    %v982 = vpop.f32.mrf.mxu0
    %983 = vdwg.mxu0
    %984 = vmatprep.subr.bf16.mxu0 0
    %985 = vmatpush1.bf16.msra.mxu0 %v590
    %986 = vmatprep.subr.bf16.mxu0 0
    %987 = vmatpush1.bf16.msra.mxu0 %v587
    %988 = vmatprep.subr.bf16.mxu0 0
    %989 = vmatpush1.bf16.msra.mxu0 %v584
    %990 = vmatprep.subr.bf16.mxu0 0
    %991 = vmatpush1.bf16.msra.mxu0 %v581
    %992 = vmatprep.subr.bf16.mxu0 0
    %993 = vmatpush1.bf16.msra.mxu0 %v578
    %994 = vmatprep.subr.bf16.mxu0 0
    %995 = vmatpush1.bf16.msra.mxu0 %v575
    %996 = vmatprep.subr.bf16.mxu0 0
    %997 = vmatpush1.bf16.msra.mxu0 %v572
    %998 = vmatprep.subr.bf16.mxu0 0
    %999 = vmatpush1.bf16.msra.mxu0 %v569
    %1000 = vmatprep.subr.bf16.mxu0 0
    %1001 = vmatpush2.bf16.msra.mxu0 0
    %1002 = vmatprep.subr.bf16.mxu0 0
    %1003 = vmatpush2.bf16.msra.mxu0 0
    %1004 = vmatprep.subr.bf16.mxu0 0
    %1005 = vmatpush2.bf16.msra.mxu0 0
    %1006 = vmatprep.subr.bf16.mxu0 0
    %1007 = vmatpush2.bf16.msra.mxu0 0
    %1008 = vmatprep.subr.bf16.mxu0 0
    %1009 = vmatpush2.bf16.msra.mxu0 0
    %1010 = vmatprep.subr.bf16.mxu0 0
    %1011 = vmatpush2.bf16.msra.mxu0 0
    %1012 = vmatprep.subr.bf16.mxu0 0
    %1013 = vmatpush2.bf16.msra.mxu0 0
    %1014 = vmatprep.subr.bf16.mxu0 0
    %1015 = vmatpush2.bf16.msra.mxu0 0
    %1016 = vmatprep.mubr.bf16.mxu0 0
    %1017 = vmatmul.mubr.bf16.gmra.mxu0 %v940
    %v1018 = vpop.f32.mrf.mxu0
    %v1019 = vadd.f32 0.0, %v1018
    %v1020 = vpop.f32.mrf.mxu0
    %v1021 = vpop.f32.mrf.mxu0
    %v1022 = vpop.f32.mrf.mxu0
    %1023 = vdwg.mxu0
    %s1024 = scalar_lea.vmem [#allocation3], 72
    %v1025 = vld [vmem:[%s1024] sm:$0xff]
    %v1026 = vld [vmem:[%s1024 + $0x8] sm:$0xff]
    %v1027 = vld [vmem:[%s1024 + $0x10] sm:$0xff]
    %v1028 = vadd.f32 %v1025, %v978
    %v1029 = vxor.u32 %v1028, 2147483648
    %v1030 = vmul.f32 %v1029, 1.442695
    %v1031 = vpow.pop %v1030
    %v1032 = vadd.f32 %v1031, 1.0
    %v1033 = vrcp.pop %v1032
    %v1034 = vmul.f32 1.0, %v1033
    %v1035 = vadd.f32 %v1026, %v980
    %v1036 = vxor.u32 %v1035, 2147483648
    %v1037 = vmul.f32 %v1036, 1.442695
    %v1038 = vpow.pop %v1037
    %v1039 = vadd.f32 %v1038, 1.0
    %v1040 = vrcp.pop %v1039
    %v1041 = vmul.f32 1.0, %v1040
    %v1042 = vadd.f32 %v1019, %v485
    %v1043 = vmul.f32 %v1034, %v1042
    %v1044 = vadd.f32 %v1027, %v1043
    %v1045 = vtanh.pop %v1044
    %v1046 = vsub.f32 1.0, %v1041
    %v1047 = vmul.f32 %v1046, %v1045
    %v1048 = vmul.f32 %v1041, %v939
    %v1049 = vadd.f32 %v1047, %v1048
    %v1050 = vpack.c.bf16 %v1049, %v1049
    %s1051 = scalar_lea.vmem [#allocation2], 12
    %1052 = vst [vmem:[%s1051] sm:$0xf] %v1050
    %1053 = vmatprep.subr.bf16.mxu0 %v589
    %1054 = vmatpush1.bf16.msra.mxu0 %v588
    %1055 = vmatprep.subr.bf16.mxu0 %v586
    %1056 = vmatpush1.bf16.msra.mxu0 %v585
    %1057 = vmatprep.subr.bf16.mxu0 %v583
    %1058 = vmatpush1.bf16.msra.mxu0 %v582
    %1059 = vmatprep.subr.bf16.mxu0 %v580
    %1060 = vmatpush1.bf16.msra.mxu0 %v579
    %1061 = vmatprep.subr.bf16.mxu0 %v577
    %1062 = vmatpush1.bf16.msra.mxu0 %v576
    %1063 = vmatprep.subr.bf16.mxu0 %v574
    %1064 = vmatpush1.bf16.msra.mxu0 %v573
    %1065 = vmatprep.subr.bf16.mxu0 %v571
    %1066 = vmatpush1.bf16.msra.mxu0 %v570
    %1067 = vmatprep.subr.bf16.mxu0 %v568
    %1068 = vmatpush1.bf16.msra.mxu0 %v567
    %1069 = vmatprep.subr.bf16.mxu0 0
    %1070 = vmatpush2.bf16.msra.mxu0 0
    %1071 = vmatprep.subr.bf16.mxu0 0
    %1072 = vmatpush2.bf16.msra.mxu0 0
    %1073 = vmatprep.subr.bf16.mxu0 0
    %1074 = vmatpush2.bf16.msra.mxu0 0
    %1075 = vmatprep.subr.bf16.mxu0 0
    %1076 = vmatpush2.bf16.msra.mxu0 0
    %1077 = vmatprep.subr.bf16.mxu0 0
    %1078 = vmatpush2.bf16.msra.mxu0 0
    %1079 = vmatprep.subr.bf16.mxu0 0
    %1080 = vmatpush2.bf16.msra.mxu0 0
    %1081 = vmatprep.subr.bf16.mxu0 0
    %1082 = vmatpush2.bf16.msra.mxu0 0
    %1083 = vmatprep.subr.bf16.mxu0 0
    %1084 = vmatpush2.bf16.msra.mxu0 0
    %1085 = vmatprep.mubr.bf16.mxu0 0
    %1086 = vmatmul.mubr.bf16.gmra.mxu0 %v1050
    %v1087 = vpop.f32.mrf.mxu0
    %v1088 = vadd.f32 0.0, %v1087
    %v1089 = vpop.f32.mrf.mxu0
    %v1090 = vadd.f32 0.0, %v1089
    %v1091 = vpop.f32.mrf.mxu0
    %v1092 = vpop.f32.mrf.mxu0
    %1093 = vdwg.mxu0
    %1094 = vmatprep.subr.bf16.mxu0 0
    %1095 = vmatpush1.bf16.msra.mxu0 %v590
    %1096 = vmatprep.subr.bf16.mxu0 0
    %1097 = vmatpush1.bf16.msra.mxu0 %v587
    %1098 = vmatprep.subr.bf16.mxu0 0
    %1099 = vmatpush1.bf16.msra.mxu0 %v584
    %1100 = vmatprep.subr.bf16.mxu0 0
    %1101 = vmatpush1.bf16.msra.mxu0 %v581
    %1102 = vmatprep.subr.bf16.mxu0 0
    %1103 = vmatpush1.bf16.msra.mxu0 %v578
    %1104 = vmatprep.subr.bf16.mxu0 0
    %1105 = vmatpush1.bf16.msra.mxu0 %v575
    %1106 = vmatprep.subr.bf16.mxu0 0
    %1107 = vmatpush1.bf16.msra.mxu0 %v572
    %1108 = vmatprep.subr.bf16.mxu0 0
    %1109 = vmatpush1.bf16.msra.mxu0 %v569
    %1110 = vmatprep.subr.bf16.mxu0 0
    %1111 = vmatpush2.bf16.msra.mxu0 0
    %1112 = vmatprep.subr.bf16.mxu0 0
    %1113 = vmatpush2.bf16.msra.mxu0 0
    %1114 = vmatprep.subr.bf16.mxu0 0
    %1115 = vmatpush2.bf16.msra.mxu0 0
    %1116 = vmatprep.subr.bf16.mxu0 0
    %1117 = vmatpush2.bf16.msra.mxu0 0
    %1118 = vmatprep.subr.bf16.mxu0 0
    %1119 = vmatpush2.bf16.msra.mxu0 0
    %1120 = vmatprep.subr.bf16.mxu0 0
    %1121 = vmatpush2.bf16.msra.mxu0 0
    %1122 = vmatprep.subr.bf16.mxu0 0
    %1123 = vmatpush2.bf16.msra.mxu0 0
    %1124 = vmatprep.subr.bf16.mxu0 0
    %1125 = vmatpush2.bf16.msra.mxu0 0
    %1126 = vmatprep.mubr.bf16.mxu0 0
    %1127 = vmatmul.mubr.bf16.gmra.mxu0 %v1050
    %v1128 = vpop.f32.mrf.mxu0
    %v1129 = vadd.f32 0.0, %v1128
    %v1130 = vpop.f32.mrf.mxu0
    %v1131 = vpop.f32.mrf.mxu0
    %v1132 = vpop.f32.mrf.mxu0
    %1133 = vdwg.mxu0
    %s1134 = scalar_lea.vmem [#allocation3], 96
    %v1135 = vld [vmem:[%s1134] sm:$0xff]
    %v1136 = vld [vmem:[%s1134 + $0x8] sm:$0xff]
    %v1137 = vld [vmem:[%s1134 + $0x10] sm:$0xff]
    %v1138 = vadd.f32 %v1135, %v1088
    %v1139 = vxor.u32 %v1138, 2147483648
    %v1140 = vmul.f32 %v1139, 1.442695
    %v1141 = vpow.pop %v1140
    %v1142 = vadd.f32 %v1141, 1.0
    %v1143 = vrcp.pop %v1142
    %v1144 = vmul.f32 1.0, %v1143
    %v1145 = vadd.f32 %v1136, %v1090
    %v1146 = vxor.u32 %v1145, 2147483648
    %v1147 = vmul.f32 %v1146, 1.442695
    %v1148 = vpow.pop %v1147
    %v1149 = vadd.f32 %v1148, 1.0
    %v1150 = vrcp.pop %v1149
    %v1151 = vmul.f32 1.0, %v1150
    %v1152 = vadd.f32 %v1129, %v485
    %v1153 = vmul.f32 %v1144, %v1152
    %v1154 = vadd.f32 %v1137, %v1153
    %v1155 = vtanh.pop %v1154
    %v1156 = vsub.f32 1.0, %v1151
    %v1157 = vmul.f32 %v1156, %v1155
    %v1158 = vmul.f32 %v1151, %v1049
    %v1159 = vadd.f32 %v1157, %v1158
    %v1160 = vpack.c.bf16 %v1159, %v1159
    %s1161 = scalar_lea.vmem [#allocation2], 16
    %1162 = vst [vmem:[%s1161] sm:$0xf] %v1160
    %1163 = vmatprep.subr.bf16.mxu0 %v589
    %1164 = vmatpush1.bf16.msra.mxu0 %v588
    %1165 = vmatprep.subr.bf16.mxu0 %v586
    %1166 = vmatpush1.bf16.msra.mxu0 %v585
    %1167 = vmatprep.subr.bf16.mxu0 %v583
    %1168 = vmatpush1.bf16.msra.mxu0 %v582
    %1169 = vmatprep.subr.bf16.mxu0 %v580
    %1170 = vmatpush1.bf16.msra.mxu0 %v579
    %1171 = vmatprep.subr.bf16.mxu0 %v577
    %1172 = vmatpush1.bf16.msra.mxu0 %v576
    %1173 = vmatprep.subr.bf16.mxu0 %v574
    %1174 = vmatpush1.bf16.msra.mxu0 %v573
    %1175 = vmatprep.subr.bf16.mxu0 %v571
    %1176 = vmatpush1.bf16.msra.mxu0 %v570
    %1177 = vmatprep.subr.bf16.mxu0 %v568
    %1178 = vmatpush1.bf16.msra.mxu0 %v567
    %1179 = vmatprep.subr.bf16.mxu0 0
    %1180 = vmatpush2.bf16.msra.mxu0 0
    %1181 = vmatprep.subr.bf16.mxu0 0
    %1182 = vmatpush2.bf16.msra.mxu0 0
    %1183 = vmatprep.subr.bf16.mxu0 0
    %1184 = vmatpush2.bf16.msra.mxu0 0
    %1185 = vmatprep.subr.bf16.mxu0 0
    %1186 = vmatpush2.bf16.msra.mxu0 0
    %1187 = vmatprep.subr.bf16.mxu0 0
    %1188 = vmatpush2.bf16.msra.mxu0 0
    %1189 = vmatprep.subr.bf16.mxu0 0
    %1190 = vmatpush2.bf16.msra.mxu0 0
    %1191 = vmatprep.subr.bf16.mxu0 0
    %1192 = vmatpush2.bf16.msra.mxu0 0
    %1193 = vmatprep.subr.bf16.mxu0 0
    %1194 = vmatpush2.bf16.msra.mxu0 0
    %1195 = vmatprep.mubr.bf16.mxu0 0
    %1196 = vmatmul.mubr.bf16.gmra.mxu0 %v1160
    %v1197 = vpop.f32.mrf.mxu0
    %v1198 = vadd.f32 0.0, %v1197
    %v1199 = vpop.f32.mrf.mxu0
    %v1200 = vadd.f32 0.0, %v1199
    %v1201 = vpop.f32.mrf.mxu0
    %v1202 = vpop.f32.mrf.mxu0
    %1203 = vdwg.mxu0
    %1204 = vmatprep.subr.bf16.mxu0 0
    %1205 = vmatpush1.bf16.msra.mxu0 %v590
    %1206 = vmatprep.subr.bf16.mxu0 0
    %1207 = vmatpush1.bf16.msra.mxu0 %v587
    %1208 = vmatprep.subr.bf16.mxu0 0
    %1209 = vmatpush1.bf16.msra.mxu0 %v584
    %1210 = vmatprep.subr.bf16.mxu0 0
    %1211 = vmatpush1.bf16.msra.mxu0 %v581
    %1212 = vmatprep.subr.bf16.mxu0 0
    %1213 = vmatpush1.bf16.msra.mxu0 %v578
    %1214 = vmatprep.subr.bf16.mxu0 0
    %1215 = vmatpush1.bf16.msra.mxu0 %v575
    %1216 = vmatprep.subr.bf16.mxu0 0
    %1217 = vmatpush1.bf16.msra.mxu0 %v572
    %1218 = vmatprep.subr.bf16.mxu0 0
    %1219 = vmatpush1.bf16.msra.mxu0 %v569
    %1220 = vmatprep.subr.bf16.mxu0 0
    %1221 = vmatpush2.bf16.msra.mxu0 0
    %1222 = vmatprep.subr.bf16.mxu0 0
    %1223 = vmatpush2.bf16.msra.mxu0 0
    %1224 = vmatprep.subr.bf16.mxu0 0
    %1225 = vmatpush2.bf16.msra.mxu0 0
    %1226 = vmatprep.subr.bf16.mxu0 0
    %1227 = vmatpush2.bf16.msra.mxu0 0
    %1228 = vmatprep.subr.bf16.mxu0 0
    %1229 = vmatpush2.bf16.msra.mxu0 0
    %1230 = vmatprep.subr.bf16.mxu0 0
    %1231 = vmatpush2.bf16.msra.mxu0 0
    %1232 = vmatprep.subr.bf16.mxu0 0
    %1233 = vmatpush2.bf16.msra.mxu0 0
    %1234 = vmatprep.subr.bf16.mxu0 0
    %1235 = vmatpush2.bf16.msra.mxu0 0
    %1236 = vmatprep.mubr.bf16.mxu0 0
    %1237 = vmatmul.mubr.bf16.gmra.mxu0 %v1160
    %v1238 = vpop.f32.mrf.mxu0
    %v1239 = vadd.f32 0.0, %v1238
    %v1240 = vpop.f32.mrf.mxu0
    %v1241 = vpop.f32.mrf.mxu0
    %v1242 = vpop.f32.mrf.mxu0
    %1243 = vdwg.mxu0
    %s1244 = scalar_lea.vmem [#allocation3], 120
    %v1245 = vld [vmem:[%s1244] sm:$0xff]
    %v1246 = vld [vmem:[%s1244 + $0x8] sm:$0xff]
    %v1247 = vld [vmem:[%s1244 + $0x10] sm:$0xff]
    %v1248 = vadd.f32 %v1245, %v1198
    %v1249 = vxor.u32 %v1248, 2147483648
    %v1250 = vmul.f32 %v1249, 1.442695
    %v1251 = vpow.pop %v1250
    %v1252 = vadd.f32 %v1251, 1.0
    %v1253 = vrcp.pop %v1252
    %v1254 = vmul.f32 1.0, %v1253
    %v1255 = vadd.f32 %v1246, %v1200
    %v1256 = vxor.u32 %v1255, 2147483648
    %v1257 = vmul.f32 %v1256, 1.442695
    %v1258 = vpow.pop %v1257
    %v1259 = vadd.f32 %v1258, 1.0
    %v1260 = vrcp.pop %v1259
    %v1261 = vmul.f32 1.0, %v1260
    %v1262 = vadd.f32 %v1239, %v485
    %v1263 = vmul.f32 %v1254, %v1262
    %v1264 = vadd.f32 %v1247, %v1263
    %v1265 = vtanh.pop %v1264
    %v1266 = vsub.f32 1.0, %v1261
    %v1267 = vmul.f32 %v1266, %v1265
    %v1268 = vmul.f32 %v1261, %v1159
    %v1269 = vadd.f32 %v1267, %v1268
    %v1270 = vpack.c.bf16 %v1269, %v1269
    %s1271 = scalar_lea.vmem [#allocation2], 20
    %1272 = vst [vmem:[%s1271] sm:$0xf] %v1270
    %1273 = vmatprep.subr.bf16.mxu0 %v589
    %1274 = vmatpush1.bf16.msra.mxu0 %v588
    %1275 = vmatprep.subr.bf16.mxu0 %v586
    %1276 = vmatpush1.bf16.msra.mxu0 %v585
    %1277 = vmatprep.subr.bf16.mxu0 %v583
    %1278 = vmatpush1.bf16.msra.mxu0 %v582
    %1279 = vmatprep.subr.bf16.mxu0 %v580
    %1280 = vmatpush1.bf16.msra.mxu0 %v579
    %1281 = vmatprep.subr.bf16.mxu0 %v577
    %1282 = vmatpush1.bf16.msra.mxu0 %v576
    %1283 = vmatprep.subr.bf16.mxu0 %v574
    %1284 = vmatpush1.bf16.msra.mxu0 %v573
    %1285 = vmatprep.subr.bf16.mxu0 %v571
    %1286 = vmatpush1.bf16.msra.mxu0 %v570
    %1287 = vmatprep.subr.bf16.mxu0 %v568
    %1288 = vmatpush1.bf16.msra.mxu0 %v567
    %1289 = vmatprep.subr.bf16.mxu0 0
    %1290 = vmatpush2.bf16.msra.mxu0 0
    %1291 = vmatprep.subr.bf16.mxu0 0
    %1292 = vmatpush2.bf16.msra.mxu0 0
    %1293 = vmatprep.subr.bf16.mxu0 0
    %1294 = vmatpush2.bf16.msra.mxu0 0
    %1295 = vmatprep.subr.bf16.mxu0 0
    %1296 = vmatpush2.bf16.msra.mxu0 0
    %1297 = vmatprep.subr.bf16.mxu0 0
    %1298 = vmatpush2.bf16.msra.mxu0 0
    %1299 = vmatprep.subr.bf16.mxu0 0
    %1300 = vmatpush2.bf16.msra.mxu0 0
    %1301 = vmatprep.subr.bf16.mxu0 0
    %1302 = vmatpush2.bf16.msra.mxu0 0
    %1303 = vmatprep.subr.bf16.mxu0 0
    %1304 = vmatpush2.bf16.msra.mxu0 0
    %1305 = vmatprep.mubr.bf16.mxu0 0
    %1306 = vmatmul.mubr.bf16.gmra.mxu0 %v1270
    %v1307 = vpop.f32.mrf.mxu0
    %v1308 = vadd.f32 0.0, %v1307
    %v1309 = vpop.f32.mrf.mxu0
    %v1310 = vadd.f32 0.0, %v1309
    %v1311 = vpop.f32.mrf.mxu0
    %v1312 = vpop.f32.mrf.mxu0
    %1313 = vdwg.mxu0
    %1314 = vmatprep.subr.bf16.mxu0 0
    %1315 = vmatpush1.bf16.msra.mxu0 %v590
    %1316 = vmatprep.subr.bf16.mxu0 0
    %1317 = vmatpush1.bf16.msra.mxu0 %v587
    %1318 = vmatprep.subr.bf16.mxu0 0
    %1319 = vmatpush1.bf16.msra.mxu0 %v584
    %1320 = vmatprep.subr.bf16.mxu0 0
    %1321 = vmatpush1.bf16.msra.mxu0 %v581
    %1322 = vmatprep.subr.bf16.mxu0 0
    %1323 = vmatpush1.bf16.msra.mxu0 %v578
    %1324 = vmatprep.subr.bf16.mxu0 0
    %1325 = vmatpush1.bf16.msra.mxu0 %v575
    %1326 = vmatprep.subr.bf16.mxu0 0
    %1327 = vmatpush1.bf16.msra.mxu0 %v572
    %1328 = vmatprep.subr.bf16.mxu0 0
    %1329 = vmatpush1.bf16.msra.mxu0 %v569
    %1330 = vmatprep.subr.bf16.mxu0 0
    %1331 = vmatpush2.bf16.msra.mxu0 0
    %1332 = vmatprep.subr.bf16.mxu0 0
    %1333 = vmatpush2.bf16.msra.mxu0 0
    %1334 = vmatprep.subr.bf16.mxu0 0
    %1335 = vmatpush2.bf16.msra.mxu0 0
    %1336 = vmatprep.subr.bf16.mxu0 0
    %1337 = vmatpush2.bf16.msra.mxu0 0
    %1338 = vmatprep.subr.bf16.mxu0 0
    %1339 = vmatpush2.bf16.msra.mxu0 0
    %1340 = vmatprep.subr.bf16.mxu0 0
    %1341 = vmatpush2.bf16.msra.mxu0 0
    %1342 = vmatprep.subr.bf16.mxu0 0
    %1343 = vmatpush2.bf16.msra.mxu0 0
    %1344 = vmatprep.subr.bf16.mxu0 0
    %1345 = vmatpush2.bf16.msra.mxu0 0
    %1346 = vmatprep.mubr.bf16.mxu0 0
    %1347 = vmatmul.mubr.bf16.gmra.mxu0 %v1270
    %v1348 = vpop.f32.mrf.mxu0
    %v1349 = vadd.f32 0.0, %v1348
    %v1350 = vpop.f32.mrf.mxu0
    %v1351 = vpop.f32.mrf.mxu0
    %v1352 = vpop.f32.mrf.mxu0
    %1353 = vdwg.mxu0
    %s1354 = scalar_lea.vmem [#allocation3], 144
    %v1355 = vld [vmem:[%s1354] sm:$0xff]
    %v1356 = vld [vmem:[%s1354 + $0x8] sm:$0xff]
    %v1357 = vld [vmem:[%s1354 + $0x10] sm:$0xff]
    %v1358 = vadd.f32 %v1355, %v1308
    %v1359 = vxor.u32 %v1358, 2147483648
    %v1360 = vmul.f32 %v1359, 1.442695
    %v1361 = vpow.pop %v1360
    %v1362 = vadd.f32 %v1361, 1.0
    %v1363 = vrcp.pop %v1362
    %v1364 = vmul.f32 1.0, %v1363
    %v1365 = vadd.f32 %v1356, %v1310
    %v1366 = vxor.u32 %v1365, 2147483648
    %v1367 = vmul.f32 %v1366, 1.442695
    %v1368 = vpow.pop %v1367
    %v1369 = vadd.f32 %v1368, 1.0
    %v1370 = vrcp.pop %v1369
    %v1371 = vmul.f32 1.0, %v1370
    %v1372 = vadd.f32 %v1349, %v485
    %v1373 = vmul.f32 %v1364, %v1372
    %v1374 = vadd.f32 %v1357, %v1373
    %v1375 = vtanh.pop %v1374
    %v1376 = vsub.f32 1.0, %v1371
    %v1377 = vmul.f32 %v1376, %v1375
    %v1378 = vmul.f32 %v1371, %v1269
    %v1379 = vadd.f32 %v1377, %v1378
    %v1380 = vpack.c.bf16 %v1379, %v1379
    %s1381 = scalar_lea.vmem [#allocation2], 24
    %1382 = vst [vmem:[%s1381] sm:$0xf] %v1380
    %1383 = vmatprep.subr.bf16.mxu0 %v589
    %1384 = vmatpush1.bf16.msra.mxu0 %v588
    %1385 = vmatprep.subr.bf16.mxu0 %v586
    %1386 = vmatpush1.bf16.msra.mxu0 %v585
    %1387 = vmatprep.subr.bf16.mxu0 %v583
    %1388 = vmatpush1.bf16.msra.mxu0 %v582
    %1389 = vmatprep.subr.bf16.mxu0 %v580
    %1390 = vmatpush1.bf16.msra.mxu0 %v579
    %1391 = vmatprep.subr.bf16.mxu0 %v577
    %1392 = vmatpush1.bf16.msra.mxu0 %v576
    %1393 = vmatprep.subr.bf16.mxu0 %v574
    %1394 = vmatpush1.bf16.msra.mxu0 %v573
    %1395 = vmatprep.subr.bf16.mxu0 %v571
    %1396 = vmatpush1.bf16.msra.mxu0 %v570
    %1397 = vmatprep.subr.bf16.mxu0 %v568
    %1398 = vmatpush1.bf16.msra.mxu0 %v567
    %1399 = vmatprep.subr.bf16.mxu0 0
    %1400 = vmatpush2.bf16.msra.mxu0 0
    %1401 = vmatprep.subr.bf16.mxu0 0
    %1402 = vmatpush2.bf16.msra.mxu0 0
    %1403 = vmatprep.subr.bf16.mxu0 0
    %1404 = vmatpush2.bf16.msra.mxu0 0
    %1405 = vmatprep.subr.bf16.mxu0 0
    %1406 = vmatpush2.bf16.msra.mxu0 0
    %1407 = vmatprep.subr.bf16.mxu0 0
    %1408 = vmatpush2.bf16.msra.mxu0 0
    %1409 = vmatprep.subr.bf16.mxu0 0
    %1410 = vmatpush2.bf16.msra.mxu0 0
    %1411 = vmatprep.subr.bf16.mxu0 0
    %1412 = vmatpush2.bf16.msra.mxu0 0
    %1413 = vmatprep.subr.bf16.mxu0 0
    %1414 = vmatpush2.bf16.msra.mxu0 0
    %1415 = vmatprep.mubr.bf16.mxu0 0
    %1416 = vmatmul.mubr.bf16.gmra.mxu0 %v1380
    %v1417 = vpop.f32.mrf.mxu0
    %v1418 = vadd.f32 0.0, %v1417
    %v1419 = vpop.f32.mrf.mxu0
    %v1420 = vadd.f32 0.0, %v1419
    %v1421 = vpop.f32.mrf.mxu0
    %v1422 = vpop.f32.mrf.mxu0
    %1423 = vdwg.mxu0
    %1424 = vmatprep.subr.bf16.mxu0 0
    %1425 = vmatpush1.bf16.msra.mxu0 %v590
    %1426 = vmatprep.subr.bf16.mxu0 0
    %1427 = vmatpush1.bf16.msra.mxu0 %v587
    %1428 = vmatprep.subr.bf16.mxu0 0
    %1429 = vmatpush1.bf16.msra.mxu0 %v584
    %1430 = vmatprep.subr.bf16.mxu0 0
    %1431 = vmatpush1.bf16.msra.mxu0 %v581
    %1432 = vmatprep.subr.bf16.mxu0 0
    %1433 = vmatpush1.bf16.msra.mxu0 %v578
    %1434 = vmatprep.subr.bf16.mxu0 0
    %1435 = vmatpush1.bf16.msra.mxu0 %v575
    %1436 = vmatprep.subr.bf16.mxu0 0
    %1437 = vmatpush1.bf16.msra.mxu0 %v572
    %1438 = vmatprep.subr.bf16.mxu0 0
    %1439 = vmatpush1.bf16.msra.mxu0 %v569
    %1440 = vmatprep.subr.bf16.mxu0 0
    %1441 = vmatpush2.bf16.msra.mxu0 0
    %1442 = vmatprep.subr.bf16.mxu0 0
    %1443 = vmatpush2.bf16.msra.mxu0 0
    %1444 = vmatprep.subr.bf16.mxu0 0
    %1445 = vmatpush2.bf16.msra.mxu0 0
    %1446 = vmatprep.subr.bf16.mxu0 0
    %1447 = vmatpush2.bf16.msra.mxu0 0
    %1448 = vmatprep.subr.bf16.mxu0 0
    %1449 = vmatpush2.bf16.msra.mxu0 0
    %1450 = vmatprep.subr.bf16.mxu0 0
    %1451 = vmatpush2.bf16.msra.mxu0 0
    %1452 = vmatprep.subr.bf16.mxu0 0
    %1453 = vmatpush2.bf16.msra.mxu0 0
    %1454 = vmatprep.subr.bf16.mxu0 0
    %1455 = vmatpush2.bf16.msra.mxu0 0
    %1456 = vmatprep.mubr.bf16.mxu0 0
    %1457 = vmatmul.mubr.bf16.gmra.mxu0 %v1380
    %v1458 = vpop.f32.mrf.mxu0
    %v1459 = vadd.f32 0.0, %v1458
    %v1460 = vpop.f32.mrf.mxu0
    %v1461 = vpop.f32.mrf.mxu0
    %v1462 = vpop.f32.mrf.mxu0
    %1463 = vdwg.mxu0
    %s1464 = scalar_lea.vmem [#allocation3], 168
    %v1465 = vld [vmem:[%s1464] sm:$0xff]
    %v1466 = vld [vmem:[%s1464 + $0x8] sm:$0xff]
    %v1467 = vld [vmem:[%s1464 + $0x10] sm:$0xff]
    %v1468 = vadd.f32 %v1465, %v1418
    %v1469 = vxor.u32 %v1468, 2147483648
    %v1470 = vmul.f32 %v1469, 1.442695
    %v1471 = vpow.pop %v1470
    %v1472 = vadd.f32 %v1471, 1.0
    %v1473 = vrcp.pop %v1472
    %v1474 = vmul.f32 1.0, %v1473
    %v1475 = vadd.f32 %v1466, %v1420
    %v1476 = vxor.u32 %v1475, 2147483648
    %v1477 = vmul.f32 %v1476, 1.442695
    %v1478 = vpow.pop %v1477
    %v1479 = vadd.f32 %v1478, 1.0
    %v1480 = vrcp.pop %v1479
    %v1481 = vmul.f32 1.0, %v1480
    %v1482 = vadd.f32 %v1459, %v485
    %v1483 = vmul.f32 %v1474, %v1482
    %v1484 = vadd.f32 %v1467, %v1483
    %v1485 = vtanh.pop %v1484
    %v1486 = vsub.f32 1.0, %v1481
    %v1487 = vmul.f32 %v1486, %v1485
    %v1488 = vmul.f32 %v1481, %v1379
    %v1489 = vadd.f32 %v1487, %v1488
    %v1490 = vpack.c.bf16 %v1489, %v1489
    %s1491 = scalar_lea.vmem [#allocation2], 28
    %1492 = vst [vmem:[%s1491] sm:$0xf] %v1490
    %v1493 = vld [vmem:[#allocation2] sm:$0xf]
    %v1494 = vld [vmem:[#allocation2 + $0x4] sm:$0xf]
    %v1495 = vld [vmem:[#allocation2 + $0x8] sm:$0xf]
    %v1496 = vld [vmem:[#allocation2 + $0xc] sm:$0xf]
    %v1497 = vld [vmem:[#allocation2 + $0x10] sm:$0xf]
    %v1498 = vld [vmem:[#allocation2 + $0x14] sm:$0xf]
    %v1499 = vld [vmem:[#allocation2 + $0x18] sm:$0xf]
    %v1500 = vld [vmem:[#allocation2 + $0x1c] sm:$0xf]
    %s1501 = scalar_lea.vmem [#allocation7], 192
    %v1502 = vld [vmem:[%s1501] sm:$0xff]
    %v1503 = vld [vmem:[%s1501 + $0x8] sm:$0xf]
    %v1504 = vld [vmem:[%s1501 + $0xc] sm:$0xff]
    %v1505 = vld [vmem:[%s1501 + $0x14] sm:$0xf]
    %v1506 = vld [vmem:[%s1501 + $0x18] sm:$0xff]
    %v1507 = vld [vmem:[%s1501 + $0x20] sm:$0xf]
    %v1508 = vld [vmem:[%s1501 + $0x24] sm:$0xff]
    %v1509 = vld [vmem:[%s1501 + $0x2c] sm:$0xf]
    %v1510 = vld [vmem:[%s1501 + $0x30] sm:$0xff]
    %v1511 = vld [vmem:[%s1501 + $0x38] sm:$0xf]
    %v1512 = vld [vmem:[%s1501 + $0x3c] sm:$0xff]
    %v1513 = vld [vmem:[%s1501 + $0x44] sm:$0xf]
    %v1514 = vld [vmem:[%s1501 + $0x48] sm:$0xff]
    %v1515 = vld [vmem:[%s1501 + $0x50] sm:$0xf]
    %v1516 = vld [vmem:[%s1501 + $0x54] sm:$0xff]
    %v1517 = vld [vmem:[%s1501 + $0x5c] sm:$0xf]
    %v1518 = vld [vmem:[%s1501 + $0x60] sm:$0xff]
    %v1519 = vld [vmem:[%s1501 + $0x68] sm:$0xf]
    %v1520 = vld [vmem:[%s1501 + $0x6c] sm:$0xff]
    %v1521 = vld [vmem:[%s1501 + $0x74] sm:$0xf]
    %v1522 = vld [vmem:[%s1501 + $0x78] sm:$0xff]
    %v1523 = vld [vmem:[%s1501 + $0x80] sm:$0xf]
    %v1524 = vld [vmem:[%s1501 + $0x84] sm:$0xff]
    %v1525 = vld [vmem:[%s1501 + $0x8c] sm:$0xf]
    %v1526 = vld [vmem:[%s1501 + $0x90] sm:$0xff]
    %v1527 = vld [vmem:[%s1501 + $0x98] sm:$0xf]
    %v1528 = vld [vmem:[%s1501 + $0x9c] sm:$0xff]
    %v1529 = vld [vmem:[%s1501 + $0xa4] sm:$0xf]
    %v1530 = vld [vmem:[%s1501 + $0xa8] sm:$0xff]
    %v1531 = vld [vmem:[%s1501 + $0xb0] sm:$0xf]
    %v1532 = vld [vmem:[%s1501 + $0xb4] sm:$0xff]
    %v1533 = vld [vmem:[%s1501 + $0xbc] sm:$0xf]
    %s1534 = scalar_lea.vmem [#allocation9], 3
    %v1535 = vld [vmem:[%s1534] sm:$0x7]
    %v1537 = vlaneseq
    %v1538 = vshrl.u32 %v1537, 7
    %v1539 = vsub.s32 0, %v1538
    %v1540 = vrot.slane %v1535, %v1539
    %v1541 = vlaneseq
    %v1542 = vshrl.u32 %v1541, 7
    %v1543 = vsub.s32 1, %v1542
    %v1544 = vrot.slane %v1535, %v1543
    %v1545 = vlaneseq
    %v1546 = vshrl.u32 %v1545, 7
    %v1547 = vsub.s32 2, %v1546
    %v1548 = vrot.slane %v1535, %v1547
    %v1560 = vunpack.c.l.b16 %v1493
    %v1561 = vunpack.c.l.b16 %v1494
    %v1562 = vunpack.c.l.b16 %v1495
    %v1563 = vunpack.c.l.b16 %v1496
    %v1564 = vunpack.c.l.b16 %v1497
    %v1565 = vunpack.c.l.b16 %v1498
    %v1566 = vunpack.c.l.b16 %v1499
    %v1567 = vunpack.c.l.b16 %v1500
    %v1568 = vpack.c.b16 %v1561, %v1560
    %v1569 = vpack.c.b16 %v1563, %v1562
    %v1570 = vpack.c.b16 %v1565, %v1564
    %v1571 = vpack.c.b16 %v1567, %v1566
    %v1608 = vunpack.c.l.b16 %v1502
    %v1609 = vunpack.c.h.b16 %v1502
    %v1610 = vunpack.c.l.b16 %v1503
    %v1611 = vunpack.c.l.b16 %v1504
    %v1612 = vunpack.c.h.b16 %v1504
    %v1613 = vunpack.c.l.b16 %v1505
    %v1614 = vunpack.c.l.b16 %v1506
    %v1615 = vunpack.c.h.b16 %v1506
    %v1616 = vunpack.c.l.b16 %v1507
    %v1617 = vunpack.c.l.b16 %v1508
    %v1618 = vunpack.c.h.b16 %v1508
    %v1619 = vunpack.c.l.b16 %v1509
    %v1620 = vunpack.c.l.b16 %v1510
    %v1621 = vunpack.c.h.b16 %v1510
    %v1622 = vunpack.c.l.b16 %v1511
    %v1623 = vunpack.c.l.b16 %v1512
    %v1624 = vunpack.c.h.b16 %v1512
    %v1625 = vunpack.c.l.b16 %v1513
    %v1626 = vunpack.c.l.b16 %v1514
    %v1627 = vunpack.c.h.b16 %v1514
    %v1628 = vunpack.c.l.b16 %v1515
    %v1629 = vunpack.c.l.b16 %v1516
    %v1630 = vunpack.c.h.b16 %v1516
    %v1631 = vunpack.c.l.b16 %v1517
    %v1632 = vunpack.c.l.b16 %v1518
    %v1633 = vunpack.c.h.b16 %v1518
    %v1634 = vunpack.c.l.b16 %v1519
    %v1635 = vunpack.c.l.b16 %v1520
    %v1636 = vunpack.c.h.b16 %v1520
    %v1637 = vunpack.c.l.b16 %v1521
    %v1638 = vunpack.c.l.b16 %v1522
    %v1639 = vunpack.c.h.b16 %v1522
    %v1640 = vunpack.c.l.b16 %v1523
    %v1641 = vunpack.c.l.b16 %v1524
    %v1642 = vunpack.c.h.b16 %v1524
    %v1643 = vunpack.c.l.b16 %v1525
    %v1644 = vunpack.c.l.b16 %v1526
    %v1645 = vunpack.c.h.b16 %v1526
    %v1646 = vunpack.c.l.b16 %v1527
    %v1647 = vunpack.c.l.b16 %v1528
    %v1648 = vunpack.c.h.b16 %v1528
    %v1649 = vunpack.c.l.b16 %v1529
    %v1650 = vunpack.c.l.b16 %v1530
    %v1651 = vunpack.c.h.b16 %v1530
    %v1652 = vunpack.c.l.b16 %v1531
    %v1653 = vunpack.c.l.b16 %v1532
    %v1654 = vunpack.c.h.b16 %v1532
    %v1655 = vunpack.c.l.b16 %v1533
    %v1656 = vpack.c.b16 %v1611, %v1608
    %v1657 = vpack.c.b16 %v1612, %v1609
    %v1658 = vpack.c.b16 %v1613, %v1610
    %v1659 = vpack.c.b16 %v1617, %v1614
    %v1660 = vpack.c.b16 %v1618, %v1615
    %v1661 = vpack.c.b16 %v1619, %v1616
    %v1662 = vpack.c.b16 %v1623, %v1620
    %v1663 = vpack.c.b16 %v1624, %v1621
    %v1664 = vpack.c.b16 %v1625, %v1622
    %v1665 = vpack.c.b16 %v1629, %v1626
    %v1666 = vpack.c.b16 %v1630, %v1627
    %v1667 = vpack.c.b16 %v1631, %v1628
    %v1668 = vpack.c.b16 %v1635, %v1632
    %v1669 = vpack.c.b16 %v1636, %v1633
    %v1670 = vpack.c.b16 %v1637, %v1634
    %v1671 = vpack.c.b16 %v1641, %v1638
    %v1672 = vpack.c.b16 %v1642, %v1639
    %v1673 = vpack.c.b16 %v1643, %v1640
    %v1674 = vpack.c.b16 %v1647, %v1644
    %v1675 = vpack.c.b16 %v1648, %v1645
    %v1676 = vpack.c.b16 %v1649, %v1646
    %v1677 = vpack.c.b16 %v1653, %v1650
    %v1678 = vpack.c.b16 %v1654, %v1651
    %v1679 = vpack.c.b16 %v1655, %v1652
    %1704 = vmatprep.subr.bf16.mxu0 %v1678
    %1705 = vmatpush1.bf16.msra.mxu0 %v1677
    %1706 = vmatprep.subr.bf16.mxu0 %v1675
    %1707 = vmatpush1.bf16.msra.mxu0 %v1674
    %1708 = vmatprep.subr.bf16.mxu0 %v1672
    %1709 = vmatpush1.bf16.msra.mxu0 %v1671
    %1710 = vmatprep.subr.bf16.mxu0 %v1669
    %1711 = vmatpush1.bf16.msra.mxu0 %v1668
    %1712 = vmatprep.subr.bf16.mxu0 %v1666
    %1713 = vmatpush1.bf16.msra.mxu0 %v1665
    %1714 = vmatprep.subr.bf16.mxu0 %v1663
    %1715 = vmatpush1.bf16.msra.mxu0 %v1662
    %1716 = vmatprep.subr.bf16.mxu0 %v1660
    %1717 = vmatpush1.bf16.msra.mxu0 %v1659
    %1718 = vmatprep.subr.bf16.mxu0 %v1657
    %1719 = vmatpush1.bf16.msra.mxu0 %v1656
    %1720 = vmatprep.subr.bf16.mxu0 0
    %1721 = vmatpush2.bf16.msra.mxu0 0
    %1722 = vmatprep.subr.bf16.mxu0 0
    %1723 = vmatpush2.bf16.msra.mxu0 0
    %1724 = vmatprep.subr.bf16.mxu0 0
    %1725 = vmatpush2.bf16.msra.mxu0 0
    %1726 = vmatprep.subr.bf16.mxu0 0
    %1727 = vmatpush2.bf16.msra.mxu0 0
    %1728 = vmatprep.subr.bf16.mxu0 0
    %1729 = vmatpush2.bf16.msra.mxu0 0
    %1730 = vmatprep.subr.bf16.mxu0 0
    %1731 = vmatpush2.bf16.msra.mxu0 0
    %1732 = vmatprep.subr.bf16.mxu0 0
    %1733 = vmatpush2.bf16.msra.mxu0 0
    %1734 = vmatprep.subr.bf16.mxu0 0
    %1735 = vmatpush2.bf16.msra.mxu0 0
    %1736 = vmatprep.mubr.bf16.mxu0 0
    %1737 = vmatmul.mubr.bf16.gmra.mxu0 %v1568
    %v1738 = vpop.f32.mrf.mxu0
    %v1739 = vadd.f32 %v1540, %v1738
    %v1740 = vpop.f32.mrf.mxu0
    %v1741 = vadd.f32 %v1544, %v1740
    %v1742 = vpop.f32.mrf.mxu0
    %v1743 = vadd.f32 %v1540, %v1742
    %v1744 = vpop.f32.mrf.mxu0
    %v1745 = vadd.f32 %v1544, %v1744
    %1746 = vmatprep.mubr.bf16.mxu0 0
    %1747 = vmatmul.mubr.bf16.gmra.mxu0 %v1569
    %v1748 = vpop.f32.mrf.mxu0
    %v1749 = vadd.f32 %v1540, %v1748
    %v1750 = vpop.f32.mrf.mxu0
    %v1751 = vadd.f32 %v1544, %v1750
    %v1752 = vpop.f32.mrf.mxu0
    %v1753 = vadd.f32 %v1540, %v1752
    %v1754 = vpop.f32.mrf.mxu0
    %v1755 = vadd.f32 %v1544, %v1754
    %1756 = vmatprep.mubr.bf16.mxu0 0
    %1757 = vmatmul.mubr.bf16.gmra.mxu0 %v1570
    %v1758 = vpop.f32.mrf.mxu0
    %v1759 = vadd.f32 %v1540, %v1758
    %v1760 = vpop.f32.mrf.mxu0
    %v1761 = vadd.f32 %v1544, %v1760
    %v1762 = vpop.f32.mrf.mxu0
    %v1763 = vadd.f32 %v1540, %v1762
    %v1764 = vpop.f32.mrf.mxu0
    %v1765 = vadd.f32 %v1544, %v1764
    %1766 = vmatprep.mubr.bf16.mxu0 0
    %1767 = vmatmul.mubr.bf16.gmra.mxu0 %v1571
    %v1768 = vpop.f32.mrf.mxu0
    %v1769 = vadd.f32 %v1540, %v1768
    %v1770 = vpop.f32.mrf.mxu0
    %v1771 = vadd.f32 %v1544, %v1770
    %v1772 = vpop.f32.mrf.mxu0
    %v1773 = vadd.f32 %v1540, %v1772
    %v1774 = vpop.f32.mrf.mxu0
    %v1775 = vadd.f32 %v1544, %v1774
    %1776 = vdwg.mxu0
    %1777 = vmatprep.subr.bf16.mxu0 0
    %1778 = vmatpush1.bf16.msra.mxu0 %v1679
    %1779 = vmatprep.subr.bf16.mxu0 0
    %1780 = vmatpush1.bf16.msra.mxu0 %v1676
    %1781 = vmatprep.subr.bf16.mxu0 0
    %1782 = vmatpush1.bf16.msra.mxu0 %v1673
    %1783 = vmatprep.subr.bf16.mxu0 0
    %1784 = vmatpush1.bf16.msra.mxu0 %v1670
    %1785 = vmatprep.subr.bf16.mxu0 0
    %1786 = vmatpush1.bf16.msra.mxu0 %v1667
    %1787 = vmatprep.subr.bf16.mxu0 0
    %1788 = vmatpush1.bf16.msra.mxu0 %v1664
    %1789 = vmatprep.subr.bf16.mxu0 0
    %1790 = vmatpush1.bf16.msra.mxu0 %v1661
    %1791 = vmatprep.subr.bf16.mxu0 0
    %1792 = vmatpush1.bf16.msra.mxu0 %v1658
    %1793 = vmatprep.subr.bf16.mxu0 0
    %1794 = vmatpush2.bf16.msra.mxu0 0
    %1795 = vmatprep.subr.bf16.mxu0 0
    %1796 = vmatpush2.bf16.msra.mxu0 0
    %1797 = vmatprep.subr.bf16.mxu0 0
    %1798 = vmatpush2.bf16.msra.mxu0 0
    %1799 = vmatprep.subr.bf16.mxu0 0
    %1800 = vmatpush2.bf16.msra.mxu0 0
    %1801 = vmatprep.subr.bf16.mxu0 0
    %1802 = vmatpush2.bf16.msra.mxu0 0
    %1803 = vmatprep.subr.bf16.mxu0 0
    %1804 = vmatpush2.bf16.msra.mxu0 0
    %1805 = vmatprep.subr.bf16.mxu0 0
    %1806 = vmatpush2.bf16.msra.mxu0 0
    %1807 = vmatprep.subr.bf16.mxu0 0
    %1808 = vmatpush2.bf16.msra.mxu0 0
    %1809 = vmatprep.mubr.bf16.mxu0 0
    %1810 = vmatmul.mubr.bf16.gmra.mxu0 %v1568
    %v1811 = vpop.f32.mrf.mxu0
    %v1812 = vadd.f32 %v1548, %v1811
    %v1813 = vpop.f32.mrf.mxu0
    %v1814 = vpop.f32.mrf.mxu0
    %v1815 = vadd.f32 %v1548, %v1814
    %v1816 = vpop.f32.mrf.mxu0
    %1817 = vmatprep.mubr.bf16.mxu0 0
    %1818 = vmatmul.mubr.bf16.gmra.mxu0 %v1569
    %v1819 = vpop.f32.mrf.mxu0
    %v1820 = vadd.f32 %v1548, %v1819
    %v1821 = vpop.f32.mrf.mxu0
    %v1822 = vpop.f32.mrf.mxu0
    %v1823 = vadd.f32 %v1548, %v1822
    %v1824 = vpop.f32.mrf.mxu0
    %1825 = vmatprep.mubr.bf16.mxu0 0
    %1826 = vmatmul.mubr.bf16.gmra.mxu0 %v1570
    %v1827 = vpop.f32.mrf.mxu0
    %v1828 = vadd.f32 %v1548, %v1827
    %v1829 = vpop.f32.mrf.mxu0
    %v1830 = vpop.f32.mrf.mxu0
    %v1831 = vadd.f32 %v1548, %v1830
    %v1832 = vpop.f32.mrf.mxu0
    %1833 = vmatprep.mubr.bf16.mxu0 0
    %1834 = vmatmul.mubr.bf16.gmra.mxu0 %v1571
    %v1835 = vpop.f32.mrf.mxu0
    %v1836 = vadd.f32 %v1548, %v1835
    %v1837 = vpop.f32.mrf.mxu0
    %v1838 = vpop.f32.mrf.mxu0
    %v1839 = vadd.f32 %v1548, %v1838
    %v1840 = vpop.f32.mrf.mxu0
    %1841 = vdwg.mxu0
    %1842 = vst [vmem:[#allocation3] sm:$0xff] %v1739
    %1843 = vst [vmem:[#allocation3 + $0x8] sm:$0xff] %v1741
    %1844 = vst [vmem:[#allocation3 + $0x10] sm:$0xff] %v1812
    %1845 = vst [vmem:[#allocation3 + $0x18] sm:$0xff] %v1743
    %1846 = vst [vmem:[#allocation3 + $0x20] sm:$0xff] %v1745
    %1847 = vst [vmem:[#allocation3 + $0x28] sm:$0xff] %v1815
    %1848 = vst [vmem:[#allocation3 + $0x30] sm:$0xff] %v1749
    %1849 = vst [vmem:[#allocation3 + $0x38] sm:$0xff] %v1751
    %1850 = vst [vmem:[#allocation3 + $0x40] sm:$0xff] %v1820
    %1851 = vst [vmem:[#allocation3 + $0x48] sm:$0xff] %v1753
    %1852 = vst [vmem:[#allocation3 + $0x50] sm:$0xff] %v1755
    %1853 = vst [vmem:[#allocation3 + $0x58] sm:$0xff] %v1823
    %1854 = vst [vmem:[#allocation3 + $0x60] sm:$0xff] %v1759
    %1855 = vst [vmem:[#allocation3 + $0x68] sm:$0xff] %v1761
    %1856 = vst [vmem:[#allocation3 + $0x70] sm:$0xff] %v1828
    %1857 = vst [vmem:[#allocation3 + $0x78] sm:$0xff] %v1763
    %1858 = vst [vmem:[#allocation3 + $0x80] sm:$0xff] %v1765
    %1859 = vst [vmem:[#allocation3 + $0x88] sm:$0xff] %v1831
    %1860 = vst [vmem:[#allocation3 + $0x90] sm:$0xff] %v1769
    %1861 = vst [vmem:[#allocation3 + $0x98] sm:$0xff] %v1771
    %1862 = vst [vmem:[#allocation3 + $0xa0] sm:$0xff] %v1836
    %1863 = vst [vmem:[#allocation3 + $0xa8] sm:$0xff] %v1773
    %1864 = vst [vmem:[#allocation3 + $0xb0] sm:$0xff] %v1775
    %1865 = vst [vmem:[#allocation3 + $0xb8] sm:$0xff] %v1839
    %s1866 = scalar_lea.vmem [#allocation10], 192
    %v1867 = vld [vmem:[%s1866] sm:$0xff]
    %v1868 = vld [vmem:[%s1866 + $0x8] sm:$0xf]
    %v1869 = vld [vmem:[%s1866 + $0xc] sm:$0xff]
    %v1870 = vld [vmem:[%s1866 + $0x14] sm:$0xf]
    %v1871 = vld [vmem:[%s1866 + $0x18] sm:$0xff]
    %v1872 = vld [vmem:[%s1866 + $0x20] sm:$0xf]
    %v1873 = vld [vmem:[%s1866 + $0x24] sm:$0xff]
    %v1874 = vld [vmem:[%s1866 + $0x2c] sm:$0xf]
    %v1875 = vld [vmem:[%s1866 + $0x30] sm:$0xff]
    %v1876 = vld [vmem:[%s1866 + $0x38] sm:$0xf]
    %v1877 = vld [vmem:[%s1866 + $0x3c] sm:$0xff]
    %v1878 = vld [vmem:[%s1866 + $0x44] sm:$0xf]
    %v1879 = vld [vmem:[%s1866 + $0x48] sm:$0xff]
    %v1880 = vld [vmem:[%s1866 + $0x50] sm:$0xf]
    %v1881 = vld [vmem:[%s1866 + $0x54] sm:$0xff]
    %v1882 = vld [vmem:[%s1866 + $0x5c] sm:$0xf]
    %v1883 = vld [vmem:[%s1866 + $0x60] sm:$0xff]
    %v1884 = vld [vmem:[%s1866 + $0x68] sm:$0xf]
    %v1885 = vld [vmem:[%s1866 + $0x6c] sm:$0xff]
    %v1886 = vld [vmem:[%s1866 + $0x74] sm:$0xf]
    %v1887 = vld [vmem:[%s1866 + $0x78] sm:$0xff]
    %v1888 = vld [vmem:[%s1866 + $0x80] sm:$0xf]
    %v1889 = vld [vmem:[%s1866 + $0x84] sm:$0xff]
    %v1890 = vld [vmem:[%s1866 + $0x8c] sm:$0xf]
    %v1891 = vld [vmem:[%s1866 + $0x90] sm:$0xff]
    %v1892 = vld [vmem:[%s1866 + $0x98] sm:$0xf]
    %v1893 = vld [vmem:[%s1866 + $0x9c] sm:$0xff]
    %v1894 = vld [vmem:[%s1866 + $0xa4] sm:$0xf]
    %v1895 = vld [vmem:[%s1866 + $0xa8] sm:$0xff]
    %v1896 = vld [vmem:[%s1866 + $0xb0] sm:$0xf]
    %v1897 = vld [vmem:[%s1866 + $0xb4] sm:$0xff]
    %v1898 = vld [vmem:[%s1866 + $0xbc] sm:$0xf]
    %s1899 = scalar_lea.vmem %s4, 1
    %v1900 = vld [vmem:[%s1899] sm:$0x1]
    %v1902 = vlaneseq
    %v1903 = vshrl.u32 %v1902, 7
    %v1904 = vsub.s32 0, %v1903
    %v1905 = vrot.slane %v1900, %v1904
    %v1939 = vunpack.c.l.b16 %v1867
    %v1940 = vunpack.c.h.b16 %v1867
    %v1941 = vunpack.c.l.b16 %v1868
    %v1942 = vunpack.c.l.b16 %v1869
    %v1943 = vunpack.c.h.b16 %v1869
    %v1944 = vunpack.c.l.b16 %v1870
    %v1945 = vunpack.c.l.b16 %v1871
    %v1946 = vunpack.c.h.b16 %v1871
    %v1947 = vunpack.c.l.b16 %v1872
    %v1948 = vunpack.c.l.b16 %v1873
    %v1949 = vunpack.c.h.b16 %v1873
    %v1950 = vunpack.c.l.b16 %v1874
    %v1951 = vunpack.c.l.b16 %v1875
    %v1952 = vunpack.c.h.b16 %v1875
    %v1953 = vunpack.c.l.b16 %v1876
    %v1954 = vunpack.c.l.b16 %v1877
    %v1955 = vunpack.c.h.b16 %v1877
    %v1956 = vunpack.c.l.b16 %v1878
    %v1957 = vunpack.c.l.b16 %v1879
    %v1958 = vunpack.c.h.b16 %v1879
    %v1959 = vunpack.c.l.b16 %v1880
    %v1960 = vunpack.c.l.b16 %v1881
    %v1961 = vunpack.c.h.b16 %v1881
    %v1962 = vunpack.c.l.b16 %v1882
    %v1963 = vunpack.c.l.b16 %v1883
    %v1964 = vunpack.c.h.b16 %v1883
    %v1965 = vunpack.c.l.b16 %v1884
    %v1966 = vunpack.c.l.b16 %v1885
    %v1967 = vunpack.c.h.b16 %v1885
    %v1968 = vunpack.c.l.b16 %v1886
    %v1969 = vunpack.c.l.b16 %v1887
    %v1970 = vunpack.c.h.b16 %v1887
    %v1971 = vunpack.c.l.b16 %v1888
    %v1972 = vunpack.c.l.b16 %v1889
    %v1973 = vunpack.c.h.b16 %v1889
    %v1974 = vunpack.c.l.b16 %v1890
    %v1975 = vunpack.c.l.b16 %v1891
    %v1976 = vunpack.c.h.b16 %v1891
    %v1977 = vunpack.c.l.b16 %v1892
    %v1978 = vunpack.c.l.b16 %v1893
    %v1979 = vunpack.c.h.b16 %v1893
    %v1980 = vunpack.c.l.b16 %v1894
    %v1981 = vunpack.c.l.b16 %v1895
    %v1982 = vunpack.c.h.b16 %v1895
    %v1983 = vunpack.c.l.b16 %v1896
    %v1984 = vunpack.c.l.b16 %v1897
    %v1985 = vunpack.c.h.b16 %v1897
    %v1986 = vunpack.c.l.b16 %v1898
    %v1987 = vpack.c.b16 %v1942, %v1939
    %v1988 = vpack.c.b16 %v1943, %v1940
    %v1989 = vpack.c.b16 %v1944, %v1941
    %v1990 = vpack.c.b16 %v1948, %v1945
    %v1991 = vpack.c.b16 %v1949, %v1946
    %v1992 = vpack.c.b16 %v1950, %v1947
    %v1993 = vpack.c.b16 %v1954, %v1951
    %v1994 = vpack.c.b16 %v1955, %v1952
    %v1995 = vpack.c.b16 %v1956, %v1953
    %v1996 = vpack.c.b16 %v1960, %v1957
    %v1997 = vpack.c.b16 %v1961, %v1958
    %v1998 = vpack.c.b16 %v1962, %v1959
    %v1999 = vpack.c.b16 %v1966, %v1963
    %v2000 = vpack.c.b16 %v1967, %v1964
    %v2001 = vpack.c.b16 %v1968, %v1965
    %v2002 = vpack.c.b16 %v1972, %v1969
    %v2003 = vpack.c.b16 %v1973, %v1970
    %v2004 = vpack.c.b16 %v1974, %v1971
    %v2005 = vpack.c.b16 %v1978, %v1975
    %v2006 = vpack.c.b16 %v1979, %v1976
    %v2007 = vpack.c.b16 %v1980, %v1977
    %v2008 = vpack.c.b16 %v1984, %v1981
    %v2009 = vpack.c.b16 %v1985, %v1982
    %v2010 = vpack.c.b16 %v1986, %v1983
    %2035 = vmatprep.subr.bf16.mxu0 %v2009
    %2036 = vmatpush1.bf16.msra.mxu0 %v2008
    %2037 = vmatprep.subr.bf16.mxu0 %v2006
    %2038 = vmatpush1.bf16.msra.mxu0 %v2005
    %2039 = vmatprep.subr.bf16.mxu0 %v2003
    %2040 = vmatpush1.bf16.msra.mxu0 %v2002
    %2041 = vmatprep.subr.bf16.mxu0 %v2000
    %2042 = vmatpush1.bf16.msra.mxu0 %v1999
    %2043 = vmatprep.subr.bf16.mxu0 %v1997
    %2044 = vmatpush1.bf16.msra.mxu0 %v1996
    %2045 = vmatprep.subr.bf16.mxu0 %v1994
    %2046 = vmatpush1.bf16.msra.mxu0 %v1993
    %2047 = vmatprep.subr.bf16.mxu0 %v1991
    %2048 = vmatpush1.bf16.msra.mxu0 %v1990
    %2049 = vmatprep.subr.bf16.mxu0 %v1988
    %2050 = vmatpush1.bf16.msra.mxu0 %v1987
    %2051 = vmatprep.subr.bf16.mxu0 0
    %2052 = vmatpush2.bf16.msra.mxu0 0
    %2053 = vmatprep.subr.bf16.mxu0 0
    %2054 = vmatpush2.bf16.msra.mxu0 0
    %2055 = vmatprep.subr.bf16.mxu0 0
    %2056 = vmatpush2.bf16.msra.mxu0 0
    %2057 = vmatprep.subr.bf16.mxu0 0
    %2058 = vmatpush2.bf16.msra.mxu0 0
    %2059 = vmatprep.subr.bf16.mxu0 0
    %2060 = vmatpush2.bf16.msra.mxu0 0
    %2061 = vmatprep.subr.bf16.mxu0 0
    %2062 = vmatpush2.bf16.msra.mxu0 0
    %2063 = vmatprep.subr.bf16.mxu0 0
    %2064 = vmatpush2.bf16.msra.mxu0 0
    %2065 = vmatprep.subr.bf16.mxu0 0
    %2066 = vmatpush2.bf16.msra.mxu0 0
    %2067 = vmatprep.mubr.bf16.mxu0 0
    %2068 = vmatmul.mubr.bf16.gmra.mxu0 0
    %v2069 = vpop.f32.mrf.mxu0
    %v2070 = vadd.f32 0.0, %v2069
    %v2071 = vpop.f32.mrf.mxu0
    %v2072 = vadd.f32 0.0, %v2071
    %v2073 = vpop.f32.mrf.mxu0
    %v2074 = vpop.f32.mrf.mxu0
    %2075 = vdwg.mxu0
    %2076 = vmatprep.subr.bf16.mxu0 0
    %2077 = vmatpush1.bf16.msra.mxu0 %v2010
    %2078 = vmatprep.subr.bf16.mxu0 0
    %2079 = vmatpush1.bf16.msra.mxu0 %v2007
    %2080 = vmatprep.subr.bf16.mxu0 0
    %2081 = vmatpush1.bf16.msra.mxu0 %v2004
    %2082 = vmatprep.subr.bf16.mxu0 0
    %2083 = vmatpush1.bf16.msra.mxu0 %v2001
    %2084 = vmatprep.subr.bf16.mxu0 0
    %2085 = vmatpush1.bf16.msra.mxu0 %v1998
    %2086 = vmatprep.subr.bf16.mxu0 0
    %2087 = vmatpush1.bf16.msra.mxu0 %v1995
    %2088 = vmatprep.subr.bf16.mxu0 0
    %2089 = vmatpush1.bf16.msra.mxu0 %v1992
    %2090 = vmatprep.subr.bf16.mxu0 0
    %2091 = vmatpush1.bf16.msra.mxu0 %v1989
    %2092 = vmatprep.subr.bf16.mxu0 0
    %2093 = vmatpush2.bf16.msra.mxu0 0
    %2094 = vmatprep.subr.bf16.mxu0 0
    %2095 = vmatpush2.bf16.msra.mxu0 0
    %2096 = vmatprep.subr.bf16.mxu0 0
    %2097 = vmatpush2.bf16.msra.mxu0 0
    %2098 = vmatprep.subr.bf16.mxu0 0
    %2099 = vmatpush2.bf16.msra.mxu0 0
    %2100 = vmatprep.subr.bf16.mxu0 0
    %2101 = vmatpush2.bf16.msra.mxu0 0
    %2102 = vmatprep.subr.bf16.mxu0 0
    %2103 = vmatpush2.bf16.msra.mxu0 0
    %2104 = vmatprep.subr.bf16.mxu0 0
    %2105 = vmatpush2.bf16.msra.mxu0 0
    %2106 = vmatprep.subr.bf16.mxu0 0
    %2107 = vmatpush2.bf16.msra.mxu0 0
    %2108 = vmatprep.mubr.bf16.mxu0 0
    %2109 = vmatmul.mubr.bf16.gmra.mxu0 0
    %v2110 = vpop.f32.mrf.mxu0
    %v2111 = vadd.f32 0.0, %v2110
    %v2112 = vpop.f32.mrf.mxu0
    %v2113 = vpop.f32.mrf.mxu0
    %v2114 = vpop.f32.mrf.mxu0
    %2115 = vdwg.mxu0
    %v2116 = vld [vmem:[#allocation3] sm:$0xff]
    %v2117 = vld [vmem:[#allocation3 + $0x8] sm:$0xff]
    %v2118 = vld [vmem:[#allocation3 + $0x10] sm:$0xff]
    %v2119 = vadd.f32 %v2116, %v2070
    %v2120 = vxor.u32 %v2119, 2147483648
    %v2121 = vmul.f32 %v2120, 1.442695
    %v2122 = vpow.pop %v2121
    %v2123 = vadd.f32 %v2122, 1.0
    %v2124 = vrcp.pop %v2123
    %v2125 = vmul.f32 1.0, %v2124
    %v2126 = vadd.f32 %v2117, %v2072
    %v2127 = vxor.u32 %v2126, 2147483648
    %v2128 = vmul.f32 %v2127, 1.442695
    %v2129 = vpow.pop %v2128
    %v2130 = vadd.f32 %v2129, 1.0
    %v2131 = vrcp.pop %v2130
    %v2132 = vmul.f32 1.0, %v2131
    %v2133 = vadd.f32 %v2111, %v1905
    %v2134 = vmul.f32 %v2125, %v2133
    %v2135 = vadd.f32 %v2118, %v2134
    %v2136 = vtanh.pop %v2135
    %v2137 = vsub.f32 1.0, %v2132
    %v2138 = vmul.f32 %v2137, %v2136
    %v2139 = vmul.f32 %v2132, 0.0
    %v2140 = vadd.f32 %v2138, %v2139
    %v2141 = vpack.c.bf16 %v2140, %v2140
    %2142 = vst [vmem:[#allocation12] sm:$0xf] %v2141
    %2143 = vmatprep.subr.bf16.mxu0 %v2009
    %2144 = vmatpush1.bf16.msra.mxu0 %v2008
    %2145 = vmatprep.subr.bf16.mxu0 %v2006
    %2146 = vmatpush1.bf16.msra.mxu0 %v2005
    %2147 = vmatprep.subr.bf16.mxu0 %v2003
    %2148 = vmatpush1.bf16.msra.mxu0 %v2002
    %2149 = vmatprep.subr.bf16.mxu0 %v2000
    %2150 = vmatpush1.bf16.msra.mxu0 %v1999
    %2151 = vmatprep.subr.bf16.mxu0 %v1997
    %2152 = vmatpush1.bf16.msra.mxu0 %v1996
    %2153 = vmatprep.subr.bf16.mxu0 %v1994
    %2154 = vmatpush1.bf16.msra.mxu0 %v1993
    %2155 = vmatprep.subr.bf16.mxu0 %v1991
    %2156 = vmatpush1.bf16.msra.mxu0 %v1990
    %2157 = vmatprep.subr.bf16.mxu0 %v1988
    %2158 = vmatpush1.bf16.msra.mxu0 %v1987
    %2159 = vmatprep.subr.bf16.mxu0 0
    %2160 = vmatpush2.bf16.msra.mxu0 0
    %2161 = vmatprep.subr.bf16.mxu0 0
    %2162 = vmatpush2.bf16.msra.mxu0 0
    %2163 = vmatprep.subr.bf16.mxu0 0
    %2164 = vmatpush2.bf16.msra.mxu0 0
    %2165 = vmatprep.subr.bf16.mxu0 0
    %2166 = vmatpush2.bf16.msra.mxu0 0
    %2167 = vmatprep.subr.bf16.mxu0 0
    %2168 = vmatpush2.bf16.msra.mxu0 0
    %2169 = vmatprep.subr.bf16.mxu0 0
    %2170 = vmatpush2.bf16.msra.mxu0 0
    %2171 = vmatprep.subr.bf16.mxu0 0
    %2172 = vmatpush2.bf16.msra.mxu0 0
    %2173 = vmatprep.subr.bf16.mxu0 0
    %2174 = vmatpush2.bf16.msra.mxu0 0
    %2175 = vmatprep.mubr.bf16.mxu0 0
    %2176 = vmatmul.mubr.bf16.gmra.mxu0 %v2141
    %v2177 = vpop.f32.mrf.mxu0
    %v2178 = vadd.f32 0.0, %v2177
    %v2179 = vpop.f32.mrf.mxu0
    %v2180 = vadd.f32 0.0, %v2179
    %v2181 = vpop.f32.mrf.mxu0
    %v2182 = vpop.f32.mrf.mxu0
    %2183 = vdwg.mxu0
    %2184 = vmatprep.subr.bf16.mxu0 0
    %2185 = vmatpush1.bf16.msra.mxu0 %v2010
    %2186 = vmatprep.subr.bf16.mxu0 0
    %2187 = vmatpush1.bf16.msra.mxu0 %v2007
    %2188 = vmatprep.subr.bf16.mxu0 0
    %2189 = vmatpush1.bf16.msra.mxu0 %v2004
    %2190 = vmatprep.subr.bf16.mxu0 0
    %2191 = vmatpush1.bf16.msra.mxu0 %v2001
    %2192 = vmatprep.subr.bf16.mxu0 0
    %2193 = vmatpush1.bf16.msra.mxu0 %v1998
    %2194 = vmatprep.subr.bf16.mxu0 0
    %2195 = vmatpush1.bf16.msra.mxu0 %v1995
    %2196 = vmatprep.subr.bf16.mxu0 0
    %2197 = vmatpush1.bf16.msra.mxu0 %v1992
    %2198 = vmatprep.subr.bf16.mxu0 0
    %2199 = vmatpush1.bf16.msra.mxu0 %v1989
    %2200 = vmatprep.subr.bf16.mxu0 0
    %2201 = vmatpush2.bf16.msra.mxu0 0
    %2202 = vmatprep.subr.bf16.mxu0 0
    %2203 = vmatpush2.bf16.msra.mxu0 0
    %2204 = vmatprep.subr.bf16.mxu0 0
    %2205 = vmatpush2.bf16.msra.mxu0 0
    %2206 = vmatprep.subr.bf16.mxu0 0
    %2207 = vmatpush2.bf16.msra.mxu0 0
    %2208 = vmatprep.subr.bf16.mxu0 0
    %2209 = vmatpush2.bf16.msra.mxu0 0
    %2210 = vmatprep.subr.bf16.mxu0 0
    %2211 = vmatpush2.bf16.msra.mxu0 0
    %2212 = vmatprep.subr.bf16.mxu0 0
    %2213 = vmatpush2.bf16.msra.mxu0 0
    %2214 = vmatprep.subr.bf16.mxu0 0
    %2215 = vmatpush2.bf16.msra.mxu0 0
    %2216 = vmatprep.mubr.bf16.mxu0 0
    %2217 = vmatmul.mubr.bf16.gmra.mxu0 %v2141
    %v2218 = vpop.f32.mrf.mxu0
    %v2219 = vadd.f32 0.0, %v2218
    %v2220 = vpop.f32.mrf.mxu0
    %v2221 = vpop.f32.mrf.mxu0
    %v2222 = vpop.f32.mrf.mxu0
    %2223 = vdwg.mxu0
    %v2224 = vld [vmem:[%s804] sm:$0xff]
    %v2225 = vld [vmem:[%s804 + $0x8] sm:$0xff]
    %v2226 = vld [vmem:[%s804 + $0x10] sm:$0xff]
    %v2227 = vadd.f32 %v2224, %v2178
    %v2228 = vxor.u32 %v2227, 2147483648
    %v2229 = vmul.f32 %v2228, 1.442695
    %v2230 = vpow.pop %v2229
    %v2231 = vadd.f32 %v2230, 1.0
    %v2232 = vrcp.pop %v2231
    %v2233 = vmul.f32 1.0, %v2232
    %v2234 = vadd.f32 %v2225, %v2180
    %v2235 = vxor.u32 %v2234, 2147483648
    %v2236 = vmul.f32 %v2235, 1.442695
    %v2237 = vpow.pop %v2236
    %v2238 = vadd.f32 %v2237, 1.0
    %v2239 = vrcp.pop %v2238
    %v2240 = vmul.f32 1.0, %v2239
    %v2241 = vadd.f32 %v2219, %v1905
    %v2242 = vmul.f32 %v2233, %v2241
    %v2243 = vadd.f32 %v2226, %v2242
    %v2244 = vtanh.pop %v2243
    %v2245 = vsub.f32 1.0, %v2240
    %v2246 = vmul.f32 %v2245, %v2244
    %v2247 = vmul.f32 %v2240, %v2140
    %v2248 = vadd.f32 %v2246, %v2247
    %v2249 = vpack.c.bf16 %v2248, %v2248
    %s2250 = scalar_lea.vmem [#allocation12], 4
    %2251 = vst [vmem:[%s2250] sm:$0xf] %v2249
    %2252 = vmatprep.subr.bf16.mxu0 %v2009
    %2253 = vmatpush1.bf16.msra.mxu0 %v2008
    %2254 = vmatprep.subr.bf16.mxu0 %v2006
    %2255 = vmatpush1.bf16.msra.mxu0 %v2005
    %2256 = vmatprep.subr.bf16.mxu0 %v2003
    %2257 = vmatpush1.bf16.msra.mxu0 %v2002
    %2258 = vmatprep.subr.bf16.mxu0 %v2000
    %2259 = vmatpush1.bf16.msra.mxu0 %v1999
    %2260 = vmatprep.subr.bf16.mxu0 %v1997
    %2261 = vmatpush1.bf16.msra.mxu0 %v1996
    %2262 = vmatprep.subr.bf16.mxu0 %v1994
    %2263 = vmatpush1.bf16.msra.mxu0 %v1993
    %2264 = vmatprep.subr.bf16.mxu0 %v1991
    %2265 = vmatpush1.bf16.msra.mxu0 %v1990
    %2266 = vmatprep.subr.bf16.mxu0 %v1988
    %2267 = vmatpush1.bf16.msra.mxu0 %v1987
    %2268 = vmatprep.subr.bf16.mxu0 0
    %2269 = vmatpush2.bf16.msra.mxu0 0
    %2270 = vmatprep.subr.bf16.mxu0 0
    %2271 = vmatpush2.bf16.msra.mxu0 0
    %2272 = vmatprep.subr.bf16.mxu0 0
    %2273 = vmatpush2.bf16.msra.mxu0 0
    %2274 = vmatprep.subr.bf16.mxu0 0
    %2275 = vmatpush2.bf16.msra.mxu0 0
    %2276 = vmatprep.subr.bf16.mxu0 0
    %2277 = vmatpush2.bf16.msra.mxu0 0
    %2278 = vmatprep.subr.bf16.mxu0 0
    %2279 = vmatpush2.bf16.msra.mxu0 0
    %2280 = vmatprep.subr.bf16.mxu0 0
    %2281 = vmatpush2.bf16.msra.mxu0 0
    %2282 = vmatprep.subr.bf16.mxu0 0
    %2283 = vmatpush2.bf16.msra.mxu0 0
    %2284 = vmatprep.mubr.bf16.mxu0 0
    %2285 = vmatmul.mubr.bf16.gmra.mxu0 %v2249
    %v2286 = vpop.f32.mrf.mxu0
    %v2287 = vadd.f32 0.0, %v2286
    %v2288 = vpop.f32.mrf.mxu0
    %v2289 = vadd.f32 0.0, %v2288
    %v2290 = vpop.f32.mrf.mxu0
    %v2291 = vpop.f32.mrf.mxu0
    %2292 = vdwg.mxu0
    %2293 = vmatprep.subr.bf16.mxu0 0
    %2294 = vmatpush1.bf16.msra.mxu0 %v2010
    %2295 = vmatprep.subr.bf16.mxu0 0
    %2296 = vmatpush1.bf16.msra.mxu0 %v2007
    %2297 = vmatprep.subr.bf16.mxu0 0
    %2298 = vmatpush1.bf16.msra.mxu0 %v2004
    %2299 = vmatprep.subr.bf16.mxu0 0
    %2300 = vmatpush1.bf16.msra.mxu0 %v2001
    %2301 = vmatprep.subr.bf16.mxu0 0
    %2302 = vmatpush1.bf16.msra.mxu0 %v1998
    %2303 = vmatprep.subr.bf16.mxu0 0
    %2304 = vmatpush1.bf16.msra.mxu0 %v1995
    %2305 = vmatprep.subr.bf16.mxu0 0
    %2306 = vmatpush1.bf16.msra.mxu0 %v1992
    %2307 = vmatprep.subr.bf16.mxu0 0
    %2308 = vmatpush1.bf16.msra.mxu0 %v1989
    %2309 = vmatprep.subr.bf16.mxu0 0
    %2310 = vmatpush2.bf16.msra.mxu0 0
    %2311 = vmatprep.subr.bf16.mxu0 0
    %2312 = vmatpush2.bf16.msra.mxu0 0
    %2313 = vmatprep.subr.bf16.mxu0 0
    %2314 = vmatpush2.bf16.msra.mxu0 0
    %2315 = vmatprep.subr.bf16.mxu0 0
    %2316 = vmatpush2.bf16.msra.mxu0 0
    %2317 = vmatprep.subr.bf16.mxu0 0
    %2318 = vmatpush2.bf16.msra.mxu0 0
    %2319 = vmatprep.subr.bf16.mxu0 0
    %2320 = vmatpush2.bf16.msra.mxu0 0
    %2321 = vmatprep.subr.bf16.mxu0 0
    %2322 = vmatpush2.bf16.msra.mxu0 0
    %2323 = vmatprep.subr.bf16.mxu0 0
    %2324 = vmatpush2.bf16.msra.mxu0 0
    %2325 = vmatprep.mubr.bf16.mxu0 0
    %2326 = vmatmul.mubr.bf16.gmra.mxu0 %v2249
    %v2327 = vpop.f32.mrf.mxu0
    %v2328 = vadd.f32 0.0, %v2327
    %v2329 = vpop.f32.mrf.mxu0
    %v2330 = vpop.f32.mrf.mxu0
    %v2331 = vpop.f32.mrf.mxu0
    %2332 = vdwg.mxu0
    %v2333 = vld [vmem:[%s914] sm:$0xff]
    %v2334 = vld [vmem:[%s914 + $0x8] sm:$0xff]
    %v2335 = vld [vmem:[%s914 + $0x10] sm:$0xff]
    %v2336 = vadd.f32 %v2333, %v2287
    %v2337 = vxor.u32 %v2336, 2147483648
    %v2338 = vmul.f32 %v2337, 1.442695
    %v2339 = vpow.pop %v2338
    %v2340 = vadd.f32 %v2339, 1.0
    %v2341 = vrcp.pop %v2340
    %v2342 = vmul.f32 1.0, %v2341
    %v2343 = vadd.f32 %v2334, %v2289
    %v2344 = vxor.u32 %v2343, 2147483648
    %v2345 = vmul.f32 %v2344, 1.442695
    %v2346 = vpow.pop %v2345
    %v2347 = vadd.f32 %v2346, 1.0
    %v2348 = vrcp.pop %v2347
    %v2349 = vmul.f32 1.0, %v2348
    %v2350 = vadd.f32 %v2328, %v1905
    %v2351 = vmul.f32 %v2342, %v2350
    %v2352 = vadd.f32 %v2335, %v2351
    %v2353 = vtanh.pop %v2352
    %v2354 = vsub.f32 1.0, %v2349
    %v2355 = vmul.f32 %v2354, %v2353
    %v2356 = vmul.f32 %v2349, %v2248
    %v2357 = vadd.f32 %v2355, %v2356
    %v2358 = vpack.c.bf16 %v2357, %v2357
    %s2359 = scalar_lea.vmem [#allocation12], 8
    %2360 = vst [vmem:[%s2359] sm:$0xf] %v2358
    %2361 = vmatprep.subr.bf16.mxu0 %v2009
    %2362 = vmatpush1.bf16.msra.mxu0 %v2008
    %2363 = vmatprep.subr.bf16.mxu0 %v2006
    %2364 = vmatpush1.bf16.msra.mxu0 %v2005
    %2365 = vmatprep.subr.bf16.mxu0 %v2003
    %2366 = vmatpush1.bf16.msra.mxu0 %v2002
    %2367 = vmatprep.subr.bf16.mxu0 %v2000
    %2368 = vmatpush1.bf16.msra.mxu0 %v1999
    %2369 = vmatprep.subr.bf16.mxu0 %v1997
    %2370 = vmatpush1.bf16.msra.mxu0 %v1996
    %2371 = vmatprep.subr.bf16.mxu0 %v1994
    %2372 = vmatpush1.bf16.msra.mxu0 %v1993
    %2373 = vmatprep.subr.bf16.mxu0 %v1991
    %2374 = vmatpush1.bf16.msra.mxu0 %v1990
    %2375 = vmatprep.subr.bf16.mxu0 %v1988
    %2376 = vmatpush1.bf16.msra.mxu0 %v1987
    %2377 = vmatprep.subr.bf16.mxu0 0
    %2378 = vmatpush2.bf16.msra.mxu0 0
    %2379 = vmatprep.subr.bf16.mxu0 0
    %2380 = vmatpush2.bf16.msra.mxu0 0
    %2381 = vmatprep.subr.bf16.mxu0 0
    %2382 = vmatpush2.bf16.msra.mxu0 0
    %2383 = vmatprep.subr.bf16.mxu0 0
    %2384 = vmatpush2.bf16.msra.mxu0 0
    %2385 = vmatprep.subr.bf16.mxu0 0
    %2386 = vmatpush2.bf16.msra.mxu0 0
    %2387 = vmatprep.subr.bf16.mxu0 0
    %2388 = vmatpush2.bf16.msra.mxu0 0
    %2389 = vmatprep.subr.bf16.mxu0 0
    %2390 = vmatpush2.bf16.msra.mxu0 0
    %2391 = vmatprep.subr.bf16.mxu0 0
    %2392 = vmatpush2.bf16.msra.mxu0 0
    %2393 = vmatprep.mubr.bf16.mxu0 0
    %2394 = vmatmul.mubr.bf16.gmra.mxu0 %v2358
    %v2395 = vpop.f32.mrf.mxu0
    %v2396 = vadd.f32 0.0, %v2395
    %v2397 = vpop.f32.mrf.mxu0
    %v2398 = vadd.f32 0.0, %v2397
    %v2399 = vpop.f32.mrf.mxu0
    %v2400 = vpop.f32.mrf.mxu0
    %2401 = vdwg.mxu0
    %2402 = vmatprep.subr.bf16.mxu0 0
    %2403 = vmatpush1.bf16.msra.mxu0 %v2010
    %2404 = vmatprep.subr.bf16.mxu0 0
    %2405 = vmatpush1.bf16.msra.mxu0 %v2007
    %2406 = vmatprep.subr.bf16.mxu0 0
    %2407 = vmatpush1.bf16.msra.mxu0 %v2004
    %2408 = vmatprep.subr.bf16.mxu0 0
    %2409 = vmatpush1.bf16.msra.mxu0 %v2001
    %2410 = vmatprep.subr.bf16.mxu0 0
    %2411 = vmatpush1.bf16.msra.mxu0 %v1998
    %2412 = vmatprep.subr.bf16.mxu0 0
    %2413 = vmatpush1.bf16.msra.mxu0 %v1995
    %2414 = vmatprep.subr.bf16.mxu0 0
    %2415 = vmatpush1.bf16.msra.mxu0 %v1992
    %2416 = vmatprep.subr.bf16.mxu0 0
    %2417 = vmatpush1.bf16.msra.mxu0 %v1989
    %2418 = vmatprep.subr.bf16.mxu0 0
    %2419 = vmatpush2.bf16.msra.mxu0 0
    %2420 = vmatprep.subr.bf16.mxu0 0
    %2421 = vmatpush2.bf16.msra.mxu0 0
    %2422 = vmatprep.subr.bf16.mxu0 0
    %2423 = vmatpush2.bf16.msra.mxu0 0
    %2424 = vmatprep.subr.bf16.mxu0 0
    %2425 = vmatpush2.bf16.msra.mxu0 0
    %2426 = vmatprep.subr.bf16.mxu0 0
    %2427 = vmatpush2.bf16.msra.mxu0 0
    %2428 = vmatprep.subr.bf16.mxu0 0
    %2429 = vmatpush2.bf16.msra.mxu0 0
    %2430 = vmatprep.subr.bf16.mxu0 0
    %2431 = vmatpush2.bf16.msra.mxu0 0
    %2432 = vmatprep.subr.bf16.mxu0 0
    %2433 = vmatpush2.bf16.msra.mxu0 0
    %2434 = vmatprep.mubr.bf16.mxu0 0
    %2435 = vmatmul.mubr.bf16.gmra.mxu0 %v2358
    %v2436 = vpop.f32.mrf.mxu0
    %v2437 = vadd.f32 0.0, %v2436
    %v2438 = vpop.f32.mrf.mxu0
    %v2439 = vpop.f32.mrf.mxu0
    %v2440 = vpop.f32.mrf.mxu0
    %2441 = vdwg.mxu0
    %v2442 = vld [vmem:[%s1024] sm:$0xff]
    %v2443 = vld [vmem:[%s1024 + $0x8] sm:$0xff]
    %v2444 = vld [vmem:[%s1024 + $0x10] sm:$0xff]
    %v2445 = vadd.f32 %v2442, %v2396
    %v2446 = vxor.u32 %v2445, 2147483648
    %v2447 = vmul.f32 %v2446, 1.442695
    %v2448 = vpow.pop %v2447
    %v2449 = vadd.f32 %v2448, 1.0
    %v2450 = vrcp.pop %v2449
    %v2451 = vmul.f32 1.0, %v2450
    %v2452 = vadd.f32 %v2443, %v2398
    %v2453 = vxor.u32 %v2452, 2147483648
    %v2454 = vmul.f32 %v2453, 1.442695
    %v2455 = vpow.pop %v2454
    %v2456 = vadd.f32 %v2455, 1.0
    %v2457 = vrcp.pop %v2456
    %v2458 = vmul.f32 1.0, %v2457
    %v2459 = vadd.f32 %v2437, %v1905
    %v2460 = vmul.f32 %v2451, %v2459
    %v2461 = vadd.f32 %v2444, %v2460
    %v2462 = vtanh.pop %v2461
    %v2463 = vsub.f32 1.0, %v2458
    %v2464 = vmul.f32 %v2463, %v2462
    %v2465 = vmul.f32 %v2458, %v2357
    %v2466 = vadd.f32 %v2464, %v2465
    %v2467 = vpack.c.bf16 %v2466, %v2466
    %s2468 = scalar_lea.vmem [#allocation12], 12
    %2469 = vst [vmem:[%s2468] sm:$0xf] %v2467
    %2470 = vmatprep.subr.bf16.mxu0 %v2009
    %2471 = vmatpush1.bf16.msra.mxu0 %v2008
    %2472 = vmatprep.subr.bf16.mxu0 %v2006
    %2473 = vmatpush1.bf16.msra.mxu0 %v2005
    %2474 = vmatprep.subr.bf16.mxu0 %v2003
    %2475 = vmatpush1.bf16.msra.mxu0 %v2002
    %2476 = vmatprep.subr.bf16.mxu0 %v2000
    %2477 = vmatpush1.bf16.msra.mxu0 %v1999
    %2478 = vmatprep.subr.bf16.mxu0 %v1997
    %2479 = vmatpush1.bf16.msra.mxu0 %v1996
    %2480 = vmatprep.subr.bf16.mxu0 %v1994
    %2481 = vmatpush1.bf16.msra.mxu0 %v1993
    %2482 = vmatprep.subr.bf16.mxu0 %v1991
    %2483 = vmatpush1.bf16.msra.mxu0 %v1990
    %2484 = vmatprep.subr.bf16.mxu0 %v1988
    %2485 = vmatpush1.bf16.msra.mxu0 %v1987
    %2486 = vmatprep.subr.bf16.mxu0 0
    %2487 = vmatpush2.bf16.msra.mxu0 0
    %2488 = vmatprep.subr.bf16.mxu0 0
    %2489 = vmatpush2.bf16.msra.mxu0 0
    %2490 = vmatprep.subr.bf16.mxu0 0
    %2491 = vmatpush2.bf16.msra.mxu0 0
    %2492 = vmatprep.subr.bf16.mxu0 0
    %2493 = vmatpush2.bf16.msra.mxu0 0
    %2494 = vmatprep.subr.bf16.mxu0 0
    %2495 = vmatpush2.bf16.msra.mxu0 0
    %2496 = vmatprep.subr.bf16.mxu0 0
    %2497 = vmatpush2.bf16.msra.mxu0 0
    %2498 = vmatprep.subr.bf16.mxu0 0
    %2499 = vmatpush2.bf16.msra.mxu0 0
    %2500 = vmatprep.subr.bf16.mxu0 0
    %2501 = vmatpush2.bf16.msra.mxu0 0
    %2502 = vmatprep.mubr.bf16.mxu0 0
    %2503 = vmatmul.mubr.bf16.gmra.mxu0 %v2467
    %v2504 = vpop.f32.mrf.mxu0
    %v2505 = vadd.f32 0.0, %v2504
    %v2506 = vpop.f32.mrf.mxu0
    %v2507 = vadd.f32 0.0, %v2506
    %v2508 = vpop.f32.mrf.mxu0
    %v2509 = vpop.f32.mrf.mxu0
    %2510 = vdwg.mxu0
    %2511 = vmatprep.subr.bf16.mxu0 0
    %2512 = vmatpush1.bf16.msra.mxu0 %v2010
    %2513 = vmatprep.subr.bf16.mxu0 0
    %2514 = vmatpush1.bf16.msra.mxu0 %v2007
    %2515 = vmatprep.subr.bf16.mxu0 0
    %2516 = vmatpush1.bf16.msra.mxu0 %v2004
    %2517 = vmatprep.subr.bf16.mxu0 0
    %2518 = vmatpush1.bf16.msra.mxu0 %v2001
    %2519 = vmatprep.subr.bf16.mxu0 0
    %2520 = vmatpush1.bf16.msra.mxu0 %v1998
    %2521 = vmatprep.subr.bf16.mxu0 0
    %2522 = vmatpush1.bf16.msra.mxu0 %v1995
    %2523 = vmatprep.subr.bf16.mxu0 0
    %2524 = vmatpush1.bf16.msra.mxu0 %v1992
    %2525 = vmatprep.subr.bf16.mxu0 0
    %2526 = vmatpush1.bf16.msra.mxu0 %v1989
    %2527 = vmatprep.subr.bf16.mxu0 0
    %2528 = vmatpush2.bf16.msra.mxu0 0
    %2529 = vmatprep.subr.bf16.mxu0 0
    %2530 = vmatpush2.bf16.msra.mxu0 0
    %2531 = vmatprep.subr.bf16.mxu0 0
    %2532 = vmatpush2.bf16.msra.mxu0 0
    %2533 = vmatprep.subr.bf16.mxu0 0
    %2534 = vmatpush2.bf16.msra.mxu0 0
    %2535 = vmatprep.subr.bf16.mxu0 0
    %2536 = vmatpush2.bf16.msra.mxu0 0
    %2537 = vmatprep.subr.bf16.mxu0 0
    %2538 = vmatpush2.bf16.msra.mxu0 0
    %2539 = vmatprep.subr.bf16.mxu0 0
    %2540 = vmatpush2.bf16.msra.mxu0 0
    %2541 = vmatprep.subr.bf16.mxu0 0
    %2542 = vmatpush2.bf16.msra.mxu0 0
    %2543 = vmatprep.mubr.bf16.mxu0 0
    %2544 = vmatmul.mubr.bf16.gmra.mxu0 %v2467
    %v2545 = vpop.f32.mrf.mxu0
    %v2546 = vadd.f32 0.0, %v2545
    %v2547 = vpop.f32.mrf.mxu0
    %v2548 = vpop.f32.mrf.mxu0
    %v2549 = vpop.f32.mrf.mxu0
    %2550 = vdwg.mxu0
    %v2551 = vld [vmem:[%s1134] sm:$0xff]
    %v2552 = vld [vmem:[%s1134 + $0x8] sm:$0xff]
    %v2553 = vld [vmem:[%s1134 + $0x10] sm:$0xff]
    %v2554 = vadd.f32 %v2551, %v2505
    %v2555 = vxor.u32 %v2554, 2147483648
    %v2556 = vmul.f32 %v2555, 1.442695
    %v2557 = vpow.pop %v2556
    %v2558 = vadd.f32 %v2557, 1.0
    %v2559 = vrcp.pop %v2558
    %v2560 = vmul.f32 1.0, %v2559
    %v2561 = vadd.f32 %v2552, %v2507
    %v2562 = vxor.u32 %v2561, 2147483648
    %v2563 = vmul.f32 %v2562, 1.442695
    %v2564 = vpow.pop %v2563
    %v2565 = vadd.f32 %v2564, 1.0
    %v2566 = vrcp.pop %v2565
    %v2567 = vmul.f32 1.0, %v2566
    %v2568 = vadd.f32 %v2546, %v1905
    %v2569 = vmul.f32 %v2560, %v2568
    %v2570 = vadd.f32 %v2553, %v2569
    %v2571 = vtanh.pop %v2570
    %v2572 = vsub.f32 1.0, %v2567
    %v2573 = vmul.f32 %v2572, %v2571
    %v2574 = vmul.f32 %v2567, %v2466
    %v2575 = vadd.f32 %v2573, %v2574
    %v2576 = vpack.c.bf16 %v2575, %v2575
    %s2577 = scalar_lea.vmem [#allocation12], 16
    %2578 = vst [vmem:[%s2577] sm:$0xf] %v2576
    %2579 = vmatprep.subr.bf16.mxu0 %v2009
    %2580 = vmatpush1.bf16.msra.mxu0 %v2008
    %2581 = vmatprep.subr.bf16.mxu0 %v2006
    %2582 = vmatpush1.bf16.msra.mxu0 %v2005
    %2583 = vmatprep.subr.bf16.mxu0 %v2003
    %2584 = vmatpush1.bf16.msra.mxu0 %v2002
    %2585 = vmatprep.subr.bf16.mxu0 %v2000
    %2586 = vmatpush1.bf16.msra.mxu0 %v1999
    %2587 = vmatprep.subr.bf16.mxu0 %v1997
    %2588 = vmatpush1.bf16.msra.mxu0 %v1996
    %2589 = vmatprep.subr.bf16.mxu0 %v1994
    %2590 = vmatpush1.bf16.msra.mxu0 %v1993
    %2591 = vmatprep.subr.bf16.mxu0 %v1991
    %2592 = vmatpush1.bf16.msra.mxu0 %v1990
    %2593 = vmatprep.subr.bf16.mxu0 %v1988
    %2594 = vmatpush1.bf16.msra.mxu0 %v1987
    %2595 = vmatprep.subr.bf16.mxu0 0
    %2596 = vmatpush2.bf16.msra.mxu0 0
    %2597 = vmatprep.subr.bf16.mxu0 0
    %2598 = vmatpush2.bf16.msra.mxu0 0
    %2599 = vmatprep.subr.bf16.mxu0 0
    %2600 = vmatpush2.bf16.msra.mxu0 0
    %2601 = vmatprep.subr.bf16.mxu0 0
    %2602 = vmatpush2.bf16.msra.mxu0 0
    %2603 = vmatprep.subr.bf16.mxu0 0
    %2604 = vmatpush2.bf16.msra.mxu0 0
    %2605 = vmatprep.subr.bf16.mxu0 0
    %2606 = vmatpush2.bf16.msra.mxu0 0
    %2607 = vmatprep.subr.bf16.mxu0 0
    %2608 = vmatpush2.bf16.msra.mxu0 0
    %2609 = vmatprep.subr.bf16.mxu0 0
    %2610 = vmatpush2.bf16.msra.mxu0 0
    %2611 = vmatprep.mubr.bf16.mxu0 0
    %2612 = vmatmul.mubr.bf16.gmra.mxu0 %v2576
    %v2613 = vpop.f32.mrf.mxu0
    %v2614 = vadd.f32 0.0, %v2613
    %v2615 = vpop.f32.mrf.mxu0
    %v2616 = vadd.f32 0.0, %v2615
    %v2617 = vpop.f32.mrf.mxu0
    %v2618 = vpop.f32.mrf.mxu0
    %2619 = vdwg.mxu0
    %2620 = vmatprep.subr.bf16.mxu0 0
    %2621 = vmatpush1.bf16.msra.mxu0 %v2010
    %2622 = vmatprep.subr.bf16.mxu0 0
    %2623 = vmatpush1.bf16.msra.mxu0 %v2007
    %2624 = vmatprep.subr.bf16.mxu0 0
    %2625 = vmatpush1.bf16.msra.mxu0 %v2004
    %2626 = vmatprep.subr.bf16.mxu0 0
    %2627 = vmatpush1.bf16.msra.mxu0 %v2001
    %2628 = vmatprep.subr.bf16.mxu0 0
    %2629 = vmatpush1.bf16.msra.mxu0 %v1998
    %2630 = vmatprep.subr.bf16.mxu0 0
    %2631 = vmatpush1.bf16.msra.mxu0 %v1995
    %2632 = vmatprep.subr.bf16.mxu0 0
    %2633 = vmatpush1.bf16.msra.mxu0 %v1992
    %2634 = vmatprep.subr.bf16.mxu0 0
    %2635 = vmatpush1.bf16.msra.mxu0 %v1989
    %2636 = vmatprep.subr.bf16.mxu0 0
    %2637 = vmatpush2.bf16.msra.mxu0 0
    %2638 = vmatprep.subr.bf16.mxu0 0
    %2639 = vmatpush2.bf16.msra.mxu0 0
    %2640 = vmatprep.subr.bf16.mxu0 0
    %2641 = vmatpush2.bf16.msra.mxu0 0
    %2642 = vmatprep.subr.bf16.mxu0 0
    %2643 = vmatpush2.bf16.msra.mxu0 0
    %2644 = vmatprep.subr.bf16.mxu0 0
    %2645 = vmatpush2.bf16.msra.mxu0 0
    %2646 = vmatprep.subr.bf16.mxu0 0
    %2647 = vmatpush2.bf16.msra.mxu0 0
    %2648 = vmatprep.subr.bf16.mxu0 0
    %2649 = vmatpush2.bf16.msra.mxu0 0
    %2650 = vmatprep.subr.bf16.mxu0 0
    %2651 = vmatpush2.bf16.msra.mxu0 0
    %2652 = vmatprep.mubr.bf16.mxu0 0
    %2653 = vmatmul.mubr.bf16.gmra.mxu0 %v2576
    %v2654 = vpop.f32.mrf.mxu0
    %v2655 = vadd.f32 0.0, %v2654
    %v2656 = vpop.f32.mrf.mxu0
    %v2657 = vpop.f32.mrf.mxu0
    %v2658 = vpop.f32.mrf.mxu0
    %2659 = vdwg.mxu0
    %v2660 = vld [vmem:[%s1244] sm:$0xff]
    %v2661 = vld [vmem:[%s1244 + $0x8] sm:$0xff]
    %v2662 = vld [vmem:[%s1244 + $0x10] sm:$0xff]
    %v2663 = vadd.f32 %v2660, %v2614
    %v2664 = vxor.u32 %v2663, 2147483648
    %v2665 = vmul.f32 %v2664, 1.442695
    %v2666 = vpow.pop %v2665
    %v2667 = vadd.f32 %v2666, 1.0
    %v2668 = vrcp.pop %v2667
    %v2669 = vmul.f32 1.0, %v2668
    %v2670 = vadd.f32 %v2661, %v2616
    %v2671 = vxor.u32 %v2670, 2147483648
    %v2672 = vmul.f32 %v2671, 1.442695
    %v2673 = vpow.pop %v2672
    %v2674 = vadd.f32 %v2673, 1.0
    %v2675 = vrcp.pop %v2674
    %v2676 = vmul.f32 1.0, %v2675
    %v2677 = vadd.f32 %v2655, %v1905
    %v2678 = vmul.f32 %v2669, %v2677
    %v2679 = vadd.f32 %v2662, %v2678
    %v2680 = vtanh.pop %v2679
    %v2681 = vsub.f32 1.0, %v2676
    %v2682 = vmul.f32 %v2681, %v2680
    %v2683 = vmul.f32 %v2676, %v2575
    %v2684 = vadd.f32 %v2682, %v2683
    %v2685 = vpack.c.bf16 %v2684, %v2684
    %s2686 = scalar_lea.vmem [#allocation12], 20
    %2687 = vst [vmem:[%s2686] sm:$0xf] %v2685
    %2688 = vmatprep.subr.bf16.mxu0 %v2009
    %2689 = vmatpush1.bf16.msra.mxu0 %v2008
    %2690 = vmatprep.subr.bf16.mxu0 %v2006
    %2691 = vmatpush1.bf16.msra.mxu0 %v2005
    %2692 = vmatprep.subr.bf16.mxu0 %v2003
    %2693 = vmatpush1.bf16.msra.mxu0 %v2002
    %2694 = vmatprep.subr.bf16.mxu0 %v2000
    %2695 = vmatpush1.bf16.msra.mxu0 %v1999
    %2696 = vmatprep.subr.bf16.mxu0 %v1997
    %2697 = vmatpush1.bf16.msra.mxu0 %v1996
    %2698 = vmatprep.subr.bf16.mxu0 %v1994
    %2699 = vmatpush1.bf16.msra.mxu0 %v1993
    %2700 = vmatprep.subr.bf16.mxu0 %v1991
    %2701 = vmatpush1.bf16.msra.mxu0 %v1990
    %2702 = vmatprep.subr.bf16.mxu0 %v1988
    %2703 = vmatpush1.bf16.msra.mxu0 %v1987
    %2704 = vmatprep.subr.bf16.mxu0 0
    %2705 = vmatpush2.bf16.msra.mxu0 0
    %2706 = vmatprep.subr.bf16.mxu0 0
    %2707 = vmatpush2.bf16.msra.mxu0 0
    %2708 = vmatprep.subr.bf16.mxu0 0
    %2709 = vmatpush2.bf16.msra.mxu0 0
    %2710 = vmatprep.subr.bf16.mxu0 0
    %2711 = vmatpush2.bf16.msra.mxu0 0
    %2712 = vmatprep.subr.bf16.mxu0 0
    %2713 = vmatpush2.bf16.msra.mxu0 0
    %2714 = vmatprep.subr.bf16.mxu0 0
    %2715 = vmatpush2.bf16.msra.mxu0 0
    %2716 = vmatprep.subr.bf16.mxu0 0
    %2717 = vmatpush2.bf16.msra.mxu0 0
    %2718 = vmatprep.subr.bf16.mxu0 0
    %2719 = vmatpush2.bf16.msra.mxu0 0
    %2720 = vmatprep.mubr.bf16.mxu0 0
    %2721 = vmatmul.mubr.bf16.gmra.mxu0 %v2685
    %v2722 = vpop.f32.mrf.mxu0
    %v2723 = vadd.f32 0.0, %v2722
    %v2724 = vpop.f32.mrf.mxu0
    %v2725 = vadd.f32 0.0, %v2724
    %v2726 = vpop.f32.mrf.mxu0
    %v2727 = vpop.f32.mrf.mxu0
    %2728 = vdwg.mxu0
    %2729 = vmatprep.subr.bf16.mxu0 0
    %2730 = vmatpush1.bf16.msra.mxu0 %v2010
    %2731 = vmatprep.subr.bf16.mxu0 0
    %2732 = vmatpush1.bf16.msra.mxu0 %v2007
    %2733 = vmatprep.subr.bf16.mxu0 0
    %2734 = vmatpush1.bf16.msra.mxu0 %v2004
    %2735 = vmatprep.subr.bf16.mxu0 0
    %2736 = vmatpush1.bf16.msra.mxu0 %v2001
    %2737 = vmatprep.subr.bf16.mxu0 0
    %2738 = vmatpush1.bf16.msra.mxu0 %v1998
    %2739 = vmatprep.subr.bf16.mxu0 0
    %2740 = vmatpush1.bf16.msra.mxu0 %v1995
    %2741 = vmatprep.subr.bf16.mxu0 0
    %2742 = vmatpush1.bf16.msra.mxu0 %v1992
    %2743 = vmatprep.subr.bf16.mxu0 0
    %2744 = vmatpush1.bf16.msra.mxu0 %v1989
    %2745 = vmatprep.subr.bf16.mxu0 0
    %2746 = vmatpush2.bf16.msra.mxu0 0
    %2747 = vmatprep.subr.bf16.mxu0 0
    %2748 = vmatpush2.bf16.msra.mxu0 0
    %2749 = vmatprep.subr.bf16.mxu0 0
    %2750 = vmatpush2.bf16.msra.mxu0 0
    %2751 = vmatprep.subr.bf16.mxu0 0
    %2752 = vmatpush2.bf16.msra.mxu0 0
    %2753 = vmatprep.subr.bf16.mxu0 0
    %2754 = vmatpush2.bf16.msra.mxu0 0
    %2755 = vmatprep.subr.bf16.mxu0 0
    %2756 = vmatpush2.bf16.msra.mxu0 0
    %2757 = vmatprep.subr.bf16.mxu0 0
    %2758 = vmatpush2.bf16.msra.mxu0 0
    %2759 = vmatprep.subr.bf16.mxu0 0
    %2760 = vmatpush2.bf16.msra.mxu0 0
    %2761 = vmatprep.mubr.bf16.mxu0 0
    %2762 = vmatmul.mubr.bf16.gmra.mxu0 %v2685
    %v2763 = vpop.f32.mrf.mxu0
    %v2764 = vadd.f32 0.0, %v2763
    %v2765 = vpop.f32.mrf.mxu0
    %v2766 = vpop.f32.mrf.mxu0
    %v2767 = vpop.f32.mrf.mxu0
    %2768 = vdwg.mxu0
    %v2769 = vld [vmem:[%s1354] sm:$0xff]
    %v2770 = vld [vmem:[%s1354 + $0x8] sm:$0xff]
    %v2771 = vld [vmem:[%s1354 + $0x10] sm:$0xff]
    %v2772 = vadd.f32 %v2769, %v2723
    %v2773 = vxor.u32 %v2772, 2147483648
    %v2774 = vmul.f32 %v2773, 1.442695
    %v2775 = vpow.pop %v2774
    %v2776 = vadd.f32 %v2775, 1.0
    %v2777 = vrcp.pop %v2776
    %v2778 = vmul.f32 1.0, %v2777
    %v2779 = vadd.f32 %v2770, %v2725
    %v2780 = vxor.u32 %v2779, 2147483648
    %v2781 = vmul.f32 %v2780, 1.442695
    %v2782 = vpow.pop %v2781
    %v2783 = vadd.f32 %v2782, 1.0
    %v2784 = vrcp.pop %v2783
    %v2785 = vmul.f32 1.0, %v2784
    %v2786 = vadd.f32 %v2764, %v1905
    %v2787 = vmul.f32 %v2778, %v2786
    %v2788 = vadd.f32 %v2771, %v2787
    %v2789 = vtanh.pop %v2788
    %v2790 = vsub.f32 1.0, %v2785
    %v2791 = vmul.f32 %v2790, %v2789
    %v2792 = vmul.f32 %v2785, %v2684
    %v2793 = vadd.f32 %v2791, %v2792
    %v2794 = vpack.c.bf16 %v2793, %v2793
    %s2795 = scalar_lea.vmem [#allocation12], 24
    %2796 = vst [vmem:[%s2795] sm:$0xf] %v2794
    %2797 = vmatprep.subr.bf16.mxu0 %v2009
    %2798 = vmatpush1.bf16.msra.mxu0 %v2008
    %2799 = vmatprep.subr.bf16.mxu0 %v2006
    %2800 = vmatpush1.bf16.msra.mxu0 %v2005
    %2801 = vmatprep.subr.bf16.mxu0 %v2003
    %2802 = vmatpush1.bf16.msra.mxu0 %v2002
    %2803 = vmatprep.subr.bf16.mxu0 %v2000
    %2804 = vmatpush1.bf16.msra.mxu0 %v1999
    %2805 = vmatprep.subr.bf16.mxu0 %v1997
    %2806 = vmatpush1.bf16.msra.mxu0 %v1996
    %2807 = vmatprep.subr.bf16.mxu0 %v1994
    %2808 = vmatpush1.bf16.msra.mxu0 %v1993
    %2809 = vmatprep.subr.bf16.mxu0 %v1991
    %2810 = vmatpush1.bf16.msra.mxu0 %v1990
    %2811 = vmatprep.subr.bf16.mxu0 %v1988
    %2812 = vmatpush1.bf16.msra.mxu0 %v1987
    %2813 = vmatprep.subr.bf16.mxu0 0
    %2814 = vmatpush2.bf16.msra.mxu0 0
    %2815 = vmatprep.subr.bf16.mxu0 0
    %2816 = vmatpush2.bf16.msra.mxu0 0
    %2817 = vmatprep.subr.bf16.mxu0 0
    %2818 = vmatpush2.bf16.msra.mxu0 0
    %2819 = vmatprep.subr.bf16.mxu0 0
    %2820 = vmatpush2.bf16.msra.mxu0 0
    %2821 = vmatprep.subr.bf16.mxu0 0
    %2822 = vmatpush2.bf16.msra.mxu0 0
    %2823 = vmatprep.subr.bf16.mxu0 0
    %2824 = vmatpush2.bf16.msra.mxu0 0
    %2825 = vmatprep.subr.bf16.mxu0 0
    %2826 = vmatpush2.bf16.msra.mxu0 0
    %2827 = vmatprep.subr.bf16.mxu0 0
    %2828 = vmatpush2.bf16.msra.mxu0 0
    %2829 = vmatprep.mubr.bf16.mxu0 0
    %2830 = vmatmul.mubr.bf16.gmra.mxu0 %v2794
    %v2831 = vpop.f32.mrf.mxu0
    %v2832 = vadd.f32 0.0, %v2831
    %v2833 = vpop.f32.mrf.mxu0
    %v2834 = vadd.f32 0.0, %v2833
    %v2835 = vpop.f32.mrf.mxu0
    %v2836 = vpop.f32.mrf.mxu0
    %2837 = vdwg.mxu0
    %2838 = vmatprep.subr.bf16.mxu0 0
    %2839 = vmatpush1.bf16.msra.mxu0 %v2010
    %2840 = vmatprep.subr.bf16.mxu0 0
    %2841 = vmatpush1.bf16.msra.mxu0 %v2007
    %2842 = vmatprep.subr.bf16.mxu0 0
    %2843 = vmatpush1.bf16.msra.mxu0 %v2004
    %2844 = vmatprep.subr.bf16.mxu0 0
    %2845 = vmatpush1.bf16.msra.mxu0 %v2001
    %2846 = vmatprep.subr.bf16.mxu0 0
    %2847 = vmatpush1.bf16.msra.mxu0 %v1998
    %2848 = vmatprep.subr.bf16.mxu0 0
    %2849 = vmatpush1.bf16.msra.mxu0 %v1995
    %2850 = vmatprep.subr.bf16.mxu0 0
    %2851 = vmatpush1.bf16.msra.mxu0 %v1992
    %2852 = vmatprep.subr.bf16.mxu0 0
    %2853 = vmatpush1.bf16.msra.mxu0 %v1989
    %2854 = vmatprep.subr.bf16.mxu0 0
    %2855 = vmatpush2.bf16.msra.mxu0 0
    %2856 = vmatprep.subr.bf16.mxu0 0
    %2857 = vmatpush2.bf16.msra.mxu0 0
    %2858 = vmatprep.subr.bf16.mxu0 0
    %2859 = vmatpush2.bf16.msra.mxu0 0
    %2860 = vmatprep.subr.bf16.mxu0 0
    %2861 = vmatpush2.bf16.msra.mxu0 0
    %2862 = vmatprep.subr.bf16.mxu0 0
    %2863 = vmatpush2.bf16.msra.mxu0 0
    %2864 = vmatprep.subr.bf16.mxu0 0
    %2865 = vmatpush2.bf16.msra.mxu0 0
    %2866 = vmatprep.subr.bf16.mxu0 0
    %2867 = vmatpush2.bf16.msra.mxu0 0
    %2868 = vmatprep.subr.bf16.mxu0 0
    %2869 = vmatpush2.bf16.msra.mxu0 0
    %2870 = vmatprep.mubr.bf16.mxu0 0
    %2871 = vmatmul.mubr.bf16.gmra.mxu0 %v2794
    %v2872 = vpop.f32.mrf.mxu0
    %v2873 = vadd.f32 0.0, %v2872
    %v2874 = vpop.f32.mrf.mxu0
    %v2875 = vpop.f32.mrf.mxu0
    %v2876 = vpop.f32.mrf.mxu0
    %2877 = vdwg.mxu0
    %v2878 = vld [vmem:[%s1464] sm:$0xff]
    %v2879 = vld [vmem:[%s1464 + $0x8] sm:$0xff]
    %v2880 = vld [vmem:[%s1464 + $0x10] sm:$0xff]
    %v2881 = vadd.f32 %v2878, %v2832
    %v2882 = vxor.u32 %v2881, 2147483648
    %v2883 = vmul.f32 %v2882, 1.442695
    %v2884 = vpow.pop %v2883
    %v2885 = vadd.f32 %v2884, 1.0
    %v2886 = vrcp.pop %v2885
    %v2887 = vmul.f32 1.0, %v2886
    %v2888 = vadd.f32 %v2879, %v2834
    %v2889 = vxor.u32 %v2888, 2147483648
    %v2890 = vmul.f32 %v2889, 1.442695
    %v2891 = vpow.pop %v2890
    %v2892 = vadd.f32 %v2891, 1.0
    %v2893 = vrcp.pop %v2892
    %v2894 = vmul.f32 1.0, %v2893
    %v2895 = vadd.f32 %v2873, %v1905
    %v2896 = vmul.f32 %v2887, %v2895
    %v2897 = vadd.f32 %v2880, %v2896
    %v2898 = vtanh.pop %v2897
    %v2899 = vsub.f32 1.0, %v2894
    %v2900 = vmul.f32 %v2899, %v2898
    %v2901 = vmul.f32 %v2894, %v2793
    %v2902 = vadd.f32 %v2900, %v2901
    %v2903 = vpack.c.bf16 %v2902, %v2902
    %s2904 = scalar_lea.vmem [#allocation12], 28
    %2905 = vst [vmem:[%s2904] sm:$0xf] %v2903
    // Predicated region
    $region38: #{tpu_custom_call.1} parent=1 // pred_check
      _
    $region39: #{tpu_custom_call.1} parent=1 // pred_check_branch
      %2907 = sbr.rel (0) target = $region41
    $region40: #{tpu_custom_call.1} parent=1 // pred_region
      %s2909 = ssub.s32 512, 512
      %2910 = vsyncadd [#allocation6], %s2909
      %s2911 = sshll.u32 [#allocation12], 4
      %s2912 = int_to_ptr.vmem [resolvable:$true] %s2911
      %2917 = dma.vmem_to_hbm [thread:$0]  %s2912, 512, %s5, [#allocation6], 64, 64, 4
    $region41: #{tpu_custom_call.1} parent=1 // pred_fallthru
      _
    // Predicated region
    $region42: #{tpu_custom_call.1} parent=1 // pred_check
      _
    $region43: #{tpu_custom_call.1} parent=1 // pred_check_branch
      %2919 = sbr.rel (0) target = $region45
    $region44: #{tpu_custom_call.1} parent=1 // pred_region
      %2920 = dma.done [#allocation6], 512
    $region45: #{tpu_custom_call.1} parent=1 // pred_fallthru
      _
    %2921 = vsyncpa [#allocation5], 1
    %2922 = vsyncpa [#allocation8], 1
    %2923 = vsyncpa [#allocation11], 1
    %2924 = vsyncpa [#allocation6], 1

</llo_original>
